<compile_context>
chip_gen: v5e
topology: v5e:2x2
jax: 0.10.0
libtpu: 0.0.40
codegen_flags: <defaults>
</compile_context>

<pallas_src>
import functools

import jax
import jax.numpy as jnp
from jax.experimental import pallas as pl
from jax.experimental.pallas import tpu as pltpu

BP = 8        # padded batch (f32 sublane count)
O_PAD = 128   # lane-dense classifier output width


# --------------------------- Fused LSTM + FC kernel ---------------------------

def _fused_lstm_fc_kernel(x_ref, wih0_ref, wih_ref, whh_ref, b_ref,
                          wfc_ref, bfc_ref, out_ref,
                          seq_scr, gx_scr, *, T, H, L):
    """Whole LSTM stack + classifier in one kernel invocation.

    x_ref   : (T*BP, F)      bf16, time-major flattened input (row = t*BP + b)
    wih0_ref: (F, 4H)        bf16, layer-0 W_ih^T
    wih_ref : (L-1, H, 4H)   bf16, layers 1..L-1 W_ih^T
    whh_ref : (L, H, 4H)     bf16, W_hh^T for all layers
    b_ref   : (L, 4H)        f32,  b_ih + b_hh
    wfc_ref : (H, O_PAD)     bf16, classifier weight^T (lane-padded)
    bfc_ref : (1, O_PAD)     f32,  classifier bias (lane-padded)
    out_ref : (BP, O_PAD)    f32,  logits slab (only HBM writeback)
    seq_scr : (T*BP, H)      f32 VMEM scratch: current layer's hidden sequence
    gx_scr  : (T*BP, 4H)     f32 VMEM scratch: precomputed input-projection gates
    """

    def run_recurrence(whh_bf16, store_seq):
        # gx_scr already holds x_t @ W_ih^T + bias for every timestep; the loop
        # below only carries the h/c recurrence (one small MXU op per step).
        h = jnp.zeros((BP, H), jnp.float32)
        c = jnp.zeros((BP, H), jnp.float32)
        for t in range(T):  # static full unroll (T is small)
            g = gx_scr[t * BP:(t + 1) * BP, :] + jnp.dot(
                h.astype(jnp.bfloat16), whh_bf16,
                preferred_element_type=jnp.float32)
            # One activation pass over the full (BP, 4H) gate vreg each
            # (sigmoid covers i,f,o; tanh covers the g gate); all f32.
            sig = jax.nn.sigmoid(g)
            tnh = jnp.tanh(g)
            i_g = sig[:, 0 * H:1 * H]
            f_g = sig[:, 1 * H:2 * H]
            g_g = tnh[:, 2 * H:3 * H]
            o_g = sig[:, 3 * H:4 * H]
            c = f_g * c + i_g * g_g
            h = o_g * jnp.tanh(c)
            if store_seq:
                seq_scr[t * BP:(t + 1) * BP, :] = h
        return h

    # ---- layer 0: input projection for ALL timesteps in one bf16 matmul -----
    gx_scr[...] = jnp.dot(x_ref[...], wih0_ref[...],
                          preferred_element_type=jnp.float32) + b_ref[0:1, :]
    h_last = run_recurrence(whh_ref[0], store_seq=(L > 1))

    # ---- layers 1 .. L-1 -----------------------------------------------------
    for l in range(1, L):
        gx_scr[...] = jnp.dot(seq_scr[...].astype(jnp.bfloat16), wih_ref[l - 1],
                              preferred_element_type=jnp.float32) + b_ref[l:l + 1, :]
        h_last = run_recurrence(whh_ref[l], store_seq=(l < L - 1))

    # ---- classifier on h_T of the top layer (== output[:, -1, :]) -----------
    # Lane-dense (BP, 128) slab; real logits live in [:B, :output_dim].
    out_ref[...] = (jnp.dot(h_last.astype(jnp.bfloat16), wfc_ref[...],
                            preferred_element_type=jnp.float32) + bfc_ref[...])


# ------------------------------- Python wrapper -------------------------------

def lstm_classifier_forward(x, params, hidden):
    """x: (B, T, F) batch_first, like the PyTorch module. Returns (B, output_dim)."""
    x = x.astype(jnp.float32)
    B, T, F = x.shape
    L = params["whh_t"].shape[0]
    O = params["fc_w_t"].shape[1]
    assert B <= BP, "this small-batch kernel pads batch to 8 sublanes"

    # time-major, batch padded to BP sublanes, bf16 for the MXU.
    x_tm = jnp.transpose(x, (1, 0, 2))                       # (T, B, F)
    x_tm = jnp.pad(x_tm, ((0, 0), (0, BP - B), (0, 0)))      # (T, BP, F)
    x_tm = x_tm.reshape(T * BP, F).astype(jnp.bfloat16)      # (T*BP, F)

    # bf16 matmul operands; biases stay f32. Classifier padded to 128 lanes.
    wih0 = params["wih0_t"].astype(jnp.bfloat16)             # (F, 4H)
    wih_rest = params["wih_rest_t"].astype(jnp.bfloat16)     # (L-1, H, 4H)
    whh = params["whh_t"].astype(jnp.bfloat16)               # (L, H, 4H)
    bias = params["bias"].astype(jnp.float32)                # (L, 4H)
    fc_w = jnp.zeros((hidden, O_PAD), jnp.float32).at[:, :O].set(
        params["fc_w_t"]).astype(jnp.bfloat16)               # (H, 128)
    fc_b = jnp.zeros((1, O_PAD), jnp.float32).at[:, :O].set(
        params["fc_b"])                                      # (1, 128)

    kernel = functools.partial(_fused_lstm_fc_kernel, T=T, H=hidden, L=L)
    out_pad = pl.pallas_call(
        kernel,
        out_shape=jax.ShapeDtypeStruct((BP, O_PAD), jnp.float32),
        scratch_shapes=[
            pltpu.VMEM((T * BP, hidden), jnp.float32),       # inter-layer hidden seq
            pltpu.VMEM((T * BP, 4 * hidden), jnp.float32),   # precomputed gate inputs
        ],
        compiler_params=pltpu.CompilerParams(
            vmem_limit_bytes=32 * 1024 * 1024),              # guard for scaled configs
    )(x_tm, wih0, wih_rest, whh, bias, fc_w, fc_b)
    return out_pad[:B, :O]


# --------------------------- Parameter construction ---------------------------

def init_params(key, feature_size, hidden, num_layers, output_dim):
    """PyTorch-style uniform(-1/sqrt(H), 1/sqrt(H)) init, deterministic. All f32."""
    stdv = 1.0 / jnp.sqrt(jnp.float32(hidden))
    wih0_t = None
    wih_rest, whh_all, bias_all = [], [], []
    for layer_idx in range(num_layers):
        in_dim = feature_size if layer_idx == 0 else hidden
        key, k1, k2, k3, k4 = jax.random.split(key, 5)
        w_ih = jax.random.uniform(k1, (4 * hidden, in_dim), jnp.float32, -stdv, stdv)
        w_hh = jax.random.uniform(k2, (4 * hidden, hidden), jnp.float32, -stdv, stdv)
        b_ih = jax.random.uniform(k3, (4 * hidden,), jnp.float32, -stdv, stdv)
        b_hh = jax.random.uniform(k4, (4 * hidden,), jnp.float32, -stdv, stdv)
        if layer_idx == 0:
            wih0_t = w_ih.T                       # (F, 4H)
        else:
            wih_rest.append(w_ih.T)               # (H, 4H)
        whh_all.append(w_hh.T)                    # (H, 4H)
        bias_all.append(b_ih + b_hh)              # (4H,)
    key, k1, k2 = jax.random.split(key, 3)
    w_fc = jax.random.uniform(k1, (output_dim, hidden), jnp.float32, -stdv, stdv)
    b_fc = jax.random.uniform(k2, (output_dim,), jnp.float32, -stdv, stdv)
    return {
        "wih0_t": wih0_t,                           # (F, 4H)
        "wih_rest_t": jnp.stack(wih_rest, axis=0),  # (L-1, H, 4H)
        "whh_t": jnp.stack(whh_all, axis=0),        # (L, H, 4H)
        "bias": jnp.stack(bias_all, axis=0),        # (L, 4H)
        "fc_w_t": w_fc.T,                           # (H, O)
        "fc_b": b_fc.reshape(1, output_dim),        # (1, O)
    }


# ------------------------------ Pure-JAX reference ----------------------------

def ref_forward(x, params, hidden):
    """Full-precision (f32) reference matching the PyTorch forward semantics."""
    x = x.astype(jnp.float32)
    B = x.shape[0]
    L = params["whh_t"].shape[0]
    h_seq = x
    for l in range(L):
        wih = params["wih0_t"] if l == 0 else params["wih_rest_t"][l - 1]
        whh = params["whh_t"][l]
        bias = params["bias"][l]
        h = jnp.zeros((B, hidden), jnp.float32)
        c = jnp.zeros((B, hidden), jnp.float32)
        outs = []
        for t in range(h_seq.shape[1]):
            gates = h_seq[:, t, :] @ wih + h @ whh + bias
            i_g = jax.nn.sigmoid(gates[:, :hidden])
            f_g = jax.nn.sigmoid(gates[:, hidden:2 * hidden])
            g_g = jnp.tanh(gates[:, 2 * hidden:3 * hidden])
            o_g = jax.nn.sigmoid(gates[:, 3 * hidden:])
            c = f_g * c + i_g * g_g
            h = o_g * jnp.tanh(c)
            outs.append(h)
        h_seq = jnp.stack(outs, axis=1)
    return h_seq[:, -1, :] @ params["fc_w_t"] + params["fc_b"]


# ------------------------------------ Main -------------------------------------

if __name__ == "__main__":
    batch, seq, feature_size = 2, 8, 16
    hidden, num_layers, output_dim = 32, 4, 2

    key = jax.random.PRNGKey(0)
    key, kx = jax.random.split(key)
    x = jax.random.normal(kx, (batch, seq, feature_size), jnp.float32)

    params = init_params(key, feature_size, hidden, num_layers, output_dim)

    out = lstm_classifier_forward(x, params, hidden)
    out = jax.block_until_ready(out)
    assert out.shape == (batch, output_dim), out.shape

    ref = jax.block_until_ready(ref_forward(x, params, hidden))
    # bf16 MXU operands (f32 accumulation) vs. a pure-f32 reference:
    # tolerance loosened accordingly (per review).
    assert jnp.allclose(out, ref, atol=2e-2, rtol=2e-2), (out, ref)

    print("KERNEL_OK")
</pallas_src>

<mosaic_0001>
module attributes {stable_mosaic.version = 11 : i64} {
  func.func @_fused_lstm_fc_kernel(%arg0: memref<64x16xbf16, #tpu.memory_space<vmem>>, %arg1: memref<16x128xbf16, #tpu.memory_space<vmem>>, %arg2: memref<3x32x128xbf16, #tpu.memory_space<vmem>>, %arg3: memref<4x32x128xbf16, #tpu.memory_space<vmem>>, %arg4: memref<4x128xf32, #tpu.memory_space<vmem>>, %arg5: memref<32x128xbf16, #tpu.memory_space<vmem>>, %arg6: memref<1x128xf32, #tpu.memory_space<vmem>>, %arg7: memref<8x128xf32, #tpu.memory_space<vmem>>, %arg8: memref<64x32xf32, #tpu.memory_space<vmem>>, %arg9: memref<64x128xf32, #tpu.memory_space<vmem>>) attributes {dimension_semantics = [], scalar_prefetch = 0 : i64, scratch_operands = 2 : i64, tpu.core_type = #tpu.core_type<tc>} {
    %c0 = arith.constant 0 : index
    %c0_0 = arith.constant 0 : index
    %0 = vector.load %arg0[%c0, %c0_0] : memref<64x16xbf16, #tpu.memory_space<vmem>>, vector<64x16xbf16>
    %c0_1 = arith.constant 0 : index
    %c0_2 = arith.constant 0 : index
    %1 = vector.load %arg1[%c0_1, %c0_2] : memref<16x128xbf16, #tpu.memory_space<vmem>>, vector<16x128xbf16>
    %cst = arith.constant dense<0.000000e+00> : vector<64x128xf32>
    %2 = tpu.matmul %0, %1, %cst {dimension_numbers = #tpu.dot_dimension_numbers<[1], [0], [0], [1], [0, 0, 1, 1], [], []>} : vector<64x16xbf16>, vector<16x128xbf16>, vector<64x128xf32> -> vector<64x128xf32>
    %c0_3 = arith.constant 0 : index
    %c0_4 = arith.constant 0 : index
    %3 = vector.load %arg4[%c0_3, %c0_4] : memref<4x128xf32, #tpu.memory_space<vmem>>, vector<1x128xf32>
    %4 = vector.broadcast %3 : vector<1x128xf32> to vector<64x128xf32>
    %5 = arith.addf %2, %4 : vector<64x128xf32>
    %c0_5 = arith.constant 0 : index
    %c0_6 = arith.constant 0 : index
    %6 = vector.load %arg9[%c0_5, %c0_6] : memref<64x128xf32, #tpu.memory_space<vmem>>, vector<64x128xf32>
    tpu.vector_store %arg9[%c0_5, %c0_6], %5 {strides = array<i32>} : memref<64x128xf32, #tpu.memory_space<vmem>>, vector<64x128xf32>,
    %c0_7 = arith.constant 0 : index
    %c0_8 = arith.constant 0 : index
    %c0_9 = arith.constant 0 : index
    %7 = vector.load %arg3[%c0_7, %c0_8, %c0_9] : memref<4x32x128xbf16, #tpu.memory_space<vmem>>, vector<1x32x128xbf16>
    %8 = vector.shape_cast %7 : vector<1x32x128xbf16> to vector<32x128xbf16>
    %cst_10 = arith.constant 0.000000e+00 : f32
    %9 = vector.broadcast %cst_10 : f32 to vector<8x32xf32>
    %cst_11 = arith.constant 0.000000e+00 : f32
    %10 = vector.broadcast %cst_11 : f32 to vector<8x32xf32>
    %c0_12 = arith.constant 0 : index
    %c0_13 = arith.constant 0 : index
    %11 = vector.load %arg9[%c0_12, %c0_13] : memref<64x128xf32, #tpu.memory_space<vmem>>, vector<8x128xf32>
    %12 = arith.truncf %9 : vector<8x32xf32> to vector<8x32xbf16>
    %cst_14 = arith.constant dense<0.000000e+00> : vector<8x128xf32>
    %13 = tpu.matmul %12, %8, %cst_14 {dimension_numbers = #tpu.dot_dimension_numbers<[1], [0], [0], [1], [0, 0, 1, 1], [], []>} : vector<8x32xbf16>, vector<32x128xbf16>, vector<8x128xf32> -> vector<8x128xf32>
    %14 = arith.addf %11, %13 : vector<8x128xf32>
    %15 = arith.negf %14 : vector<8x128xf32>
    %16 = math.exp %15 : vector<8x128xf32>
    %cst_15 = arith.constant 1.000000e+00 : f32
    %17 = vector.broadcast %cst_15 : f32 to vector<8x128xf32>
    %18 = arith.addf %17, %16 : vector<8x128xf32>
    %19 = arith.divf %17, %18 : vector<8x128xf32>
    %20 = math.tanh %14 : vector<8x128xf32>
    %21 = vector.extract_strided_slice %19 {offsets = [0, 0], sizes = [8, 32], strides = [1, 1]} : vector<8x128xf32> to vector<8x32xf32>
    %22 = vector.extract_strided_slice %19 {offsets = [0, 32], sizes = [8, 32], strides = [1, 1]} : vector<8x128xf32> to vector<8x32xf32>
    %23 = vector.extract_strided_slice %20 {offsets = [0, 64], sizes = [8, 32], strides = [1, 1]} : vector<8x128xf32> to vector<8x32xf32>
    %24 = vector.extract_strided_slice %19 {offsets = [0, 96], sizes = [8, 32], strides = [1, 1]} : vector<8x128xf32> to vector<8x32xf32>
    %25 = arith.mulf %22, %10 : vector<8x32xf32>
    %26 = arith.mulf %21, %23 : vector<8x32xf32>
    %27 = arith.addf %25, %26 : vector<8x32xf32>
    %28 = math.tanh %27 : vector<8x32xf32>
    %29 = arith.mulf %24, %28 : vector<8x32xf32>
    %c0_16 = arith.constant 0 : index
    %c0_17 = arith.constant 0 : index
    %30 = vector.load %arg8[%c0_16, %c0_17] : memref<64x32xf32, #tpu.memory_space<vmem>>, vector<8x32xf32>
    tpu.vector_store %arg8[%c0_16, %c0_17], %29 {strides = array<i32>} : memref<64x32xf32, #tpu.memory_space<vmem>>, vector<8x32xf32>,
    %c8 = arith.constant 8 : index
    %c0_18 = arith.constant 0 : index
    %31 = vector.load %arg9[%c8, %c0_18] : memref<64x128xf32, #tpu.memory_space<vmem>>, vector<8x128xf32>
    %32 = arith.truncf %29 : vector<8x32xf32> to vector<8x32xbf16>
    %cst_19 = arith.constant dense<0.000000e+00> : vector<8x128xf32>
    %33 = tpu.matmul %32, %8, %cst_19 {dimension_numbers = #tpu.dot_dimension_numbers<[1], [0], [0], [1], [0, 0, 1, 1], [], []>} : vector<8x32xbf16>, vector<32x128xbf16>, vector<8x128xf32> -> vector<8x128xf32>
    %34 = arith.addf %31, %33 : vector<8x128xf32>
    %35 = arith.negf %34 : vector<8x128xf32>
    %36 = math.exp %35 : vector<8x128xf32>
    %cst_20 = arith.constant 1.000000e+00 : f32
    %37 = vector.broadcast %cst_20 : f32 to vector<8x128xf32>
    %38 = arith.addf %37, %36 : vector<8x128xf32>
    %39 = arith.divf %37, %38 : vector<8x128xf32>
    %40 = math.tanh %34 : vector<8x128xf32>
    %41 = vector.extract_strided_slice %39 {offsets = [0, 0], sizes = [8, 32], strides = [1, 1]} : vector<8x128xf32> to vector<8x32xf32>
    %42 = vector.extract_strided_slice %39 {offsets = [0, 32], sizes = [8, 32], strides = [1, 1]} : vector<8x128xf32> to vector<8x32xf32>
    %43 = vector.extract_strided_slice %40 {offsets = [0, 64], sizes = [8, 32], strides = [1, 1]} : vector<8x128xf32> to vector<8x32xf32>
    %44 = vector.extract_strided_slice %39 {offsets = [0, 96], sizes = [8, 32], strides = [1, 1]} : vector<8x128xf32> to vector<8x32xf32>
    %45 = arith.mulf %42, %27 : vector<8x32xf32>
    %46 = arith.mulf %41, %43 : vector<8x32xf32>
    %47 = arith.addf %45, %46 : vector<8x32xf32>
    %48 = math.tanh %47 : vector<8x32xf32>
    %49 = arith.mulf %44, %48 : vector<8x32xf32>
    %c8_21 = arith.constant 8 : index
    %c0_22 = arith.constant 0 : index
    %50 = vector.load %arg8[%c8_21, %c0_22] : memref<64x32xf32, #tpu.memory_space<vmem>>, vector<8x32xf32>
    tpu.vector_store %arg8[%c8_21, %c0_22], %49 {strides = array<i32>} : memref<64x32xf32, #tpu.memory_space<vmem>>, vector<8x32xf32>,
    %c16 = arith.constant 16 : index
    %c0_23 = arith.constant 0 : index
    %51 = vector.load %arg9[%c16, %c0_23] : memref<64x128xf32, #tpu.memory_space<vmem>>, vector<8x128xf32>
    %52 = arith.truncf %49 : vector<8x32xf32> to vector<8x32xbf16>
    %cst_24 = arith.constant dense<0.000000e+00> : vector<8x128xf32>
    %53 = tpu.matmul %52, %8, %cst_24 {dimension_numbers = #tpu.dot_dimension_numbers<[1], [0], [0], [1], [0, 0, 1, 1], [], []>} : vector<8x32xbf16>, vector<32x128xbf16>, vector<8x128xf32> -> vector<8x128xf32>
    %54 = arith.addf %51, %53 : vector<8x128xf32>
    %55 = arith.negf %54 : vector<8x128xf32>
    %56 = math.exp %55 : vector<8x128xf32>
    %cst_25 = arith.constant 1.000000e+00 : f32
    %57 = vector.broadcast %cst_25 : f32 to vector<8x128xf32>
    %58 = arith.addf %57, %56 : vector<8x128xf32>
    %59 = arith.divf %57, %58 : vector<8x128xf32>
    %60 = math.tanh %54 : vector<8x128xf32>
    %61 = vector.extract_strided_slice %59 {offsets = [0, 0], sizes = [8, 32], strides = [1, 1]} : vector<8x128xf32> to vector<8x32xf32>
    %62 = vector.extract_strided_slice %59 {offsets = [0, 32], sizes = [8, 32], strides = [1, 1]} : vector<8x128xf32> to vector<8x32xf32>
    %63 = vector.extract_strided_slice %60 {offsets = [0, 64], sizes = [8, 32], strides = [1, 1]} : vector<8x128xf32> to vector<8x32xf32>
    %64 = vector.extract_strided_slice %59 {offsets = [0, 96], sizes = [8, 32], strides = [1, 1]} : vector<8x128xf32> to vector<8x32xf32>
    %65 = arith.mulf %62, %47 : vector<8x32xf32>
    %66 = arith.mulf %61, %63 : vector<8x32xf32>
    %67 = arith.addf %65, %66 : vector<8x32xf32>
    %68 = math.tanh %67 : vector<8x32xf32>
    %69 = arith.mulf %64, %68 : vector<8x32xf32>
    %c16_26 = arith.constant 16 : index
    %c0_27 = arith.constant 0 : index
    %70 = vector.load %arg8[%c16_26, %c0_27] : memref<64x32xf32, #tpu.memory_space<vmem>>, vector<8x32xf32>
    tpu.vector_store %arg8[%c16_26, %c0_27], %69 {strides = array<i32>} : memref<64x32xf32, #tpu.memory_space<vmem>>, vector<8x32xf32>,
    %c24 = arith.constant 24 : index
    %c0_28 = arith.constant 0 : index
    %71 = vector.load %arg9[%c24, %c0_28] : memref<64x128xf32, #tpu.memory_space<vmem>>, vector<8x128xf32>
    %72 = arith.truncf %69 : vector<8x32xf32> to vector<8x32xbf16>
    %cst_29 = arith.constant dense<0.000000e+00> : vector<8x128xf32>
    %73 = tpu.matmul %72, %8, %cst_29 {dimension_numbers = #tpu.dot_dimension_numbers<[1], [0], [0], [1], [0, 0, 1, 1], [], []>} : vector<8x32xbf16>, vector<32x128xbf16>, vector<8x128xf32> -> vector<8x128xf32>
    %74 = arith.addf %71, %73 : vector<8x128xf32>
    %75 = arith.negf %74 : vector<8x128xf32>
    %76 = math.exp %75 : vector<8x128xf32>
    %cst_30 = arith.constant 1.000000e+00 : f32
    %77 = vector.broadcast %cst_30 : f32 to vector<8x128xf32>
    %78 = arith.addf %77, %76 : vector<8x128xf32>
    %79 = arith.divf %77, %78 : vector<8x128xf32>
    %80 = math.tanh %74 : vector<8x128xf32>
    %81 = vector.extract_strided_slice %79 {offsets = [0, 0], sizes = [8, 32], strides = [1, 1]} : vector<8x128xf32> to vector<8x32xf32>
    %82 = vector.extract_strided_slice %79 {offsets = [0, 32], sizes = [8, 32], strides = [1, 1]} : vector<8x128xf32> to vector<8x32xf32>
    %83 = vector.extract_strided_slice %80 {offsets = [0, 64], sizes = [8, 32], strides = [1, 1]} : vector<8x128xf32> to vector<8x32xf32>
    %84 = vector.extract_strided_slice %79 {offsets = [0, 96], sizes = [8, 32], strides = [1, 1]} : vector<8x128xf32> to vector<8x32xf32>
    %85 = arith.mulf %82, %67 : vector<8x32xf32>
    %86 = arith.mulf %81, %83 : vector<8x32xf32>
    %87 = arith.addf %85, %86 : vector<8x32xf32>
    %88 = math.tanh %87 : vector<8x32xf32>
    %89 = arith.mulf %84, %88 : vector<8x32xf32>
    %c24_31 = arith.constant 24 : index
    %c0_32 = arith.constant 0 : index
    %90 = vector.load %arg8[%c24_31, %c0_32] : memref<64x32xf32, #tpu.memory_space<vmem>>, vector<8x32xf32>
    tpu.vector_store %arg8[%c24_31, %c0_32], %89 {strides = array<i32>} : memref<64x32xf32, #tpu.memory_space<vmem>>, vector<8x32xf32>,
    %c32 = arith.constant 32 : index
    %c0_33 = arith.constant 0 : index
    %91 = vector.load %arg9[%c32, %c0_33] : memref<64x128xf32, #tpu.memory_space<vmem>>, vector<8x128xf32>
    %92 = arith.truncf %89 : vector<8x32xf32> to vector<8x32xbf16>
    %cst_34 = arith.constant dense<0.000000e+00> : vector<8x128xf32>
    %93 = tpu.matmul %92, %8, %cst_34 {dimension_numbers = #tpu.dot_dimension_numbers<[1], [0], [0], [1], [0, 0, 1, 1], [], []>} : vector<8x32xbf16>, vector<32x128xbf16>, vector<8x128xf32> -> vector<8x128xf32>
    %94 = arith.addf %91, %93 : vector<8x128xf32>
    %95 = arith.negf %94 : vector<8x128xf32>
    %96 = math.exp %95 : vector<8x128xf32>
    %cst_35 = arith.constant 1.000000e+00 : f32
    %97 = vector.broadcast %cst_35 : f32 to vector<8x128xf32>
    %98 = arith.addf %97, %96 : vector<8x128xf32>
    %99 = arith.divf %97, %98 : vector<8x128xf32>
    %100 = math.tanh %94 : vector<8x128xf32>
    %101 = vector.extract_strided_slice %99 {offsets = [0, 0], sizes = [8, 32], strides = [1, 1]} : vector<8x128xf32> to vector<8x32xf32>
    %102 = vector.extract_strided_slice %99 {offsets = [0, 32], sizes = [8, 32], strides = [1, 1]} : vector<8x128xf32> to vector<8x32xf32>
    %103 = vector.extract_strided_slice %100 {offsets = [0, 64], sizes = [8, 32], strides = [1, 1]} : vector<8x128xf32> to vector<8x32xf32>
    %104 = vector.extract_strided_slice %99 {offsets = [0, 96], sizes = [8, 32], strides = [1, 1]} : vector<8x128xf32> to vector<8x32xf32>
    %105 = arith.mulf %102, %87 : vector<8x32xf32>
    %106 = arith.mulf %101, %103 : vector<8x32xf32>
    %107 = arith.addf %105, %106 : vector<8x32xf32>
    %108 = math.tanh %107 : vector<8x32xf32>
    %109 = arith.mulf %104, %108 : vector<8x32xf32>
    %c32_36 = arith.constant 32 : index
    %c0_37 = arith.constant 0 : index
    %110 = vector.load %arg8[%c32_36, %c0_37] : memref<64x32xf32, #tpu.memory_space<vmem>>, vector<8x32xf32>
    tpu.vector_store %arg8[%c32_36, %c0_37], %109 {strides = array<i32>} : memref<64x32xf32, #tpu.memory_space<vmem>>, vector<8x32xf32>,
    %c40 = arith.constant 40 : index
    %c0_38 = arith.constant 0 : index
    %111 = vector.load %arg9[%c40, %c0_38] : memref<64x128xf32, #tpu.memory_space<vmem>>, vector<8x128xf32>
    %112 = arith.truncf %109 : vector<8x32xf32> to vector<8x32xbf16>
    %cst_39 = arith.constant dense<0.000000e+00> : vector<8x128xf32>
    %113 = tpu.matmul %112, %8, %cst_39 {dimension_numbers = #tpu.dot_dimension_numbers<[1], [0], [0], [1], [0, 0, 1, 1], [], []>} : vector<8x32xbf16>, vector<32x128xbf16>, vector<8x128xf32> -> vector<8x128xf32>
    %114 = arith.addf %111, %113 : vector<8x128xf32>
    %115 = arith.negf %114 : vector<8x128xf32>
    %116 = math.exp %115 : vector<8x128xf32>
    %cst_40 = arith.constant 1.000000e+00 : f32
    %117 = vector.broadcast %cst_40 : f32 to vector<8x128xf32>
    %118 = arith.addf %117, %116 : vector<8x128xf32>
    %119 = arith.divf %117, %118 : vector<8x128xf32>
    %120 = math.tanh %114 : vector<8x128xf32>
    %121 = vector.extract_strided_slice %119 {offsets = [0, 0], sizes = [8, 32], strides = [1, 1]} : vector<8x128xf32> to vector<8x32xf32>
    %122 = vector.extract_strided_slice %119 {offsets = [0, 32], sizes = [8, 32], strides = [1, 1]} : vector<8x128xf32> to vector<8x32xf32>
    %123 = vector.extract_strided_slice %120 {offsets = [0, 64], sizes = [8, 32], strides = [1, 1]} : vector<8x128xf32> to vector<8x32xf32>
    %124 = vector.extract_strided_slice %119 {offsets = [0, 96], sizes = [8, 32], strides = [1, 1]} : vector<8x128xf32> to vector<8x32xf32>
    %125 = arith.mulf %122, %107 : vector<8x32xf32>
    %126 = arith.mulf %121, %123 : vector<8x32xf32>
    %127 = arith.addf %125, %126 : vector<8x32xf32>
    %128 = math.tanh %127 : vector<8x32xf32>
    %129 = arith.mulf %124, %128 : vector<8x32xf32>
    %c40_41 = arith.constant 40 : index
    %c0_42 = arith.constant 0 : index
    %130 = vector.load %arg8[%c40_41, %c0_42] : memref<64x32xf32, #tpu.memory_space<vmem>>, vector<8x32xf32>
    tpu.vector_store %arg8[%c40_41, %c0_42], %129 {strides = array<i32>} : memref<64x32xf32, #tpu.memory_space<vmem>>, vector<8x32xf32>,
    %c48 = arith.constant 48 : index
    %c0_43 = arith.constant 0 : index
    %131 = vector.load %arg9[%c48, %c0_43] : memref<64x128xf32, #tpu.memory_space<vmem>>, vector<8x128xf32>
    %132 = arith.truncf %129 : vector<8x32xf32> to vector<8x32xbf16>
    %cst_44 = arith.constant dense<0.000000e+00> : vector<8x128xf32>
    %133 = tpu.matmul %132, %8, %cst_44 {dimension_numbers = #tpu.dot_dimension_numbers<[1], [0], [0], [1], [0, 0, 1, 1], [], []>} : vector<8x32xbf16>, vector<32x128xbf16>, vector<8x128xf32> -> vector<8x128xf32>
    %134 = arith.addf %131, %133 : vector<8x128xf32>
    %135 = arith.negf %134 : vector<8x128xf32>
    %136 = math.exp %135 : vector<8x128xf32>
    %cst_45 = arith.constant 1.000000e+00 : f32
    %137 = vector.broadcast %cst_45 : f32 to vector<8x128xf32>
    %138 = arith.addf %137, %136 : vector<8x128xf32>
    %139 = arith.divf %137, %138 : vector<8x128xf32>
    %140 = math.tanh %134 : vector<8x128xf32>
    %141 = vector.extract_strided_slice %139 {offsets = [0, 0], sizes = [8, 32], strides = [1, 1]} : vector<8x128xf32> to vector<8x32xf32>
    %142 = vector.extract_strided_slice %139 {offsets = [0, 32], sizes = [8, 32], strides = [1, 1]} : vector<8x128xf32> to vector<8x32xf32>
    %143 = vector.extract_strided_slice %140 {offsets = [0, 64], sizes = [8, 32], strides = [1, 1]} : vector<8x128xf32> to vector<8x32xf32>
    %144 = vector.extract_strided_slice %139 {offsets = [0, 96], sizes = [8, 32], strides = [1, 1]} : vector<8x128xf32> to vector<8x32xf32>
    %145 = arith.mulf %142, %127 : vector<8x32xf32>
    %146 = arith.mulf %141, %143 : vector<8x32xf32>
    %147 = arith.addf %145, %146 : vector<8x32xf32>
    %148 = math.tanh %147 : vector<8x32xf32>
    %149 = arith.mulf %144, %148 : vector<8x32xf32>
    %c48_46 = arith.constant 48 : index
    %c0_47 = arith.constant 0 : index
    %150 = vector.load %arg8[%c48_46, %c0_47] : memref<64x32xf32, #tpu.memory_space<vmem>>, vector<8x32xf32>
    tpu.vector_store %arg8[%c48_46, %c0_47], %149 {strides = array<i32>} : memref<64x32xf32, #tpu.memory_space<vmem>>, vector<8x32xf32>,
    %c56 = arith.constant 56 : index
    %c0_48 = arith.constant 0 : index
    %151 = vector.load %arg9[%c56, %c0_48] : memref<64x128xf32, #tpu.memory_space<vmem>>, vector<8x128xf32>
    %152 = arith.truncf %149 : vector<8x32xf32> to vector<8x32xbf16>
    %cst_49 = arith.constant dense<0.000000e+00> : vector<8x128xf32>
    %153 = tpu.matmul %152, %8, %cst_49 {dimension_numbers = #tpu.dot_dimension_numbers<[1], [0], [0], [1], [0, 0, 1, 1], [], []>} : vector<8x32xbf16>, vector<32x128xbf16>, vector<8x128xf32> -> vector<8x128xf32>
    %154 = arith.addf %151, %153 : vector<8x128xf32>
    %155 = arith.negf %154 : vector<8x128xf32>
    %156 = math.exp %155 : vector<8x128xf32>
    %cst_50 = arith.constant 1.000000e+00 : f32
    %157 = vector.broadcast %cst_50 : f32 to vector<8x128xf32>
    %158 = arith.addf %157, %156 : vector<8x128xf32>
    %159 = arith.divf %157, %158 : vector<8x128xf32>
    %160 = math.tanh %154 : vector<8x128xf32>
    %161 = vector.extract_strided_slice %159 {offsets = [0, 0], sizes = [8, 32], strides = [1, 1]} : vector<8x128xf32> to vector<8x32xf32>
    %162 = vector.extract_strided_slice %159 {offsets = [0, 32], sizes = [8, 32], strides = [1, 1]} : vector<8x128xf32> to vector<8x32xf32>
    %163 = vector.extract_strided_slice %160 {offsets = [0, 64], sizes = [8, 32], strides = [1, 1]} : vector<8x128xf32> to vector<8x32xf32>
    %164 = vector.extract_strided_slice %159 {offsets = [0, 96], sizes = [8, 32], strides = [1, 1]} : vector<8x128xf32> to vector<8x32xf32>
    %165 = arith.mulf %162, %147 : vector<8x32xf32>
    %166 = arith.mulf %161, %163 : vector<8x32xf32>
    %167 = arith.addf %165, %166 : vector<8x32xf32>
    %168 = math.tanh %167 : vector<8x32xf32>
    %169 = arith.mulf %164, %168 : vector<8x32xf32>
    %c56_51 = arith.constant 56 : index
    %c0_52 = arith.constant 0 : index
    %170 = vector.load %arg8[%c56_51, %c0_52] : memref<64x32xf32, #tpu.memory_space<vmem>>, vector<8x32xf32>
    tpu.vector_store %arg8[%c56_51, %c0_52], %169 {strides = array<i32>} : memref<64x32xf32, #tpu.memory_space<vmem>>, vector<8x32xf32>,
    %c0_53 = arith.constant 0 : index
    %c0_54 = arith.constant 0 : index
    %171 = vector.load %arg8[%c0_53, %c0_54] : memref<64x32xf32, #tpu.memory_space<vmem>>, vector<64x32xf32>
    %172 = arith.truncf %171 : vector<64x32xf32> to vector<64x32xbf16>
    %c0_55 = arith.constant 0 : index
    %c0_56 = arith.constant 0 : index
    %c0_57 = arith.constant 0 : index
    %173 = vector.load %arg2[%c0_55, %c0_56, %c0_57] : memref<3x32x128xbf16, #tpu.memory_space<vmem>>, vector<1x32x128xbf16>
    %174 = vector.shape_cast %173 : vector<1x32x128xbf16> to vector<32x128xbf16>
    %cst_58 = arith.constant dense<0.000000e+00> : vector<64x128xf32>
    %175 = tpu.matmul %172, %174, %cst_58 {dimension_numbers = #tpu.dot_dimension_numbers<[1], [0], [0], [1], [0, 0, 1, 1], [], []>} : vector<64x32xbf16>, vector<32x128xbf16>, vector<64x128xf32> -> vector<64x128xf32>
    %c1 = arith.constant 1 : index
    %c0_59 = arith.constant 0 : index
    %176 = vector.load %arg4[%c1, %c0_59] : memref<4x128xf32, #tpu.memory_space<vmem>>, vector<1x128xf32>
    %177 = vector.broadcast %176 : vector<1x128xf32> to vector<64x128xf32>
    %178 = arith.addf %175, %177 : vector<64x128xf32>
    %c0_60 = arith.constant 0 : index
    %c0_61 = arith.constant 0 : index
    %179 = vector.load %arg9[%c0_60, %c0_61] : memref<64x128xf32, #tpu.memory_space<vmem>>, vector<64x128xf32>
    tpu.vector_store %arg9[%c0_60, %c0_61], %178 {strides = array<i32>} : memref<64x128xf32, #tpu.memory_space<vmem>>, vector<64x128xf32>,
    %c1_62 = arith.constant 1 : index
    %c0_63 = arith.constant 0 : index
    %c0_64 = arith.constant 0 : index
    %180 = vector.load %arg3[%c1_62, %c0_63, %c0_64] : memref<4x32x128xbf16, #tpu.memory_space<vmem>>, vector<1x32x128xbf16>
    %181 = vector.shape_cast %180 : vector<1x32x128xbf16> to vector<32x128xbf16>
    %cst_65 = arith.constant 0.000000e+00 : f32
    %182 = vector.broadcast %cst_65 : f32 to vector<8x32xf32>
    %cst_66 = arith.constant 0.000000e+00 : f32
    %183 = vector.broadcast %cst_66 : f32 to vector<8x32xf32>
    %c0_67 = arith.constant 0 : index
    %c0_68 = arith.constant 0 : index
    %184 = vector.load %arg9[%c0_67, %c0_68] : memref<64x128xf32, #tpu.memory_space<vmem>>, vector<8x128xf32>
    %185 = arith.truncf %182 : vector<8x32xf32> to vector<8x32xbf16>
    %cst_69 = arith.constant dense<0.000000e+00> : vector<8x128xf32>
    %186 = tpu.matmul %185, %181, %cst_69 {dimension_numbers = #tpu.dot_dimension_numbers<[1], [0], [0], [1], [0, 0, 1, 1], [], []>} : vector<8x32xbf16>, vector<32x128xbf16>, vector<8x128xf32> -> vector<8x128xf32>
    %187 = arith.addf %184, %186 : vector<8x128xf32>
    %188 = arith.negf %187 : vector<8x128xf32>
    %189 = math.exp %188 : vector<8x128xf32>
    %cst_70 = arith.constant 1.000000e+00 : f32
    %190 = vector.broadcast %cst_70 : f32 to vector<8x128xf32>
    %191 = arith.addf %190, %189 : vector<8x128xf32>
    %192 = arith.divf %190, %191 : vector<8x128xf32>
    %193 = math.tanh %187 : vector<8x128xf32>
    %194 = vector.extract_strided_slice %192 {offsets = [0, 0], sizes = [8, 32], strides = [1, 1]} : vector<8x128xf32> to vector<8x32xf32>
    %195 = vector.extract_strided_slice %192 {offsets = [0, 32], sizes = [8, 32], strides = [1, 1]} : vector<8x128xf32> to vector<8x32xf32>
    %196 = vector.extract_strided_slice %193 {offsets = [0, 64], sizes = [8, 32], strides = [1, 1]} : vector<8x128xf32> to vector<8x32xf32>
    %197 = vector.extract_strided_slice %192 {offsets = [0, 96], sizes = [8, 32], strides = [1, 1]} : vector<8x128xf32> to vector<8x32xf32>
    %198 = arith.mulf %195, %183 : vector<8x32xf32>
    %199 = arith.mulf %194, %196 : vector<8x32xf32>
    %200 = arith.addf %198, %199 : vector<8x32xf32>
    %201 = math.tanh %200 : vector<8x32xf32>
    %202 = arith.mulf %197, %201 : vector<8x32xf32>
    %c0_71 = arith.constant 0 : index
    %c0_72 = arith.constant 0 : index
    %203 = vector.load %arg8[%c0_71, %c0_72] : memref<64x32xf32, #tpu.memory_space<vmem>>, vector<8x32xf32>
    tpu.vector_store %arg8[%c0_71, %c0_72], %202 {strides = array<i32>} : memref<64x32xf32, #tpu.memory_space<vmem>>, vector<8x32xf32>,
    %c8_73 = arith.constant 8 : index
    %c0_74 = arith.constant 0 : index
    %204 = vector.load %arg9[%c8_73, %c0_74] : memref<64x128xf32, #tpu.memory_space<vmem>>, vector<8x128xf32>
    %205 = arith.truncf %202 : vector<8x32xf32> to vector<8x32xbf16>
    %cst_75 = arith.constant dense<0.000000e+00> : vector<8x128xf32>
    %206 = tpu.matmul %205, %181, %cst_75 {dimension_numbers = #tpu.dot_dimension_numbers<[1], [0], [0], [1], [0, 0, 1, 1], [], []>} : vector<8x32xbf16>, vector<32x128xbf16>, vector<8x128xf32> -> vector<8x128xf32>
    %207 = arith.addf %204, %206 : vector<8x128xf32>
    %208 = arith.negf %207 : vector<8x128xf32>
    %209 = math.exp %208 : vector<8x128xf32>
    %cst_76 = arith.constant 1.000000e+00 : f32
    %210 = vector.broadcast %cst_76 : f32 to vector<8x128xf32>
    %211 = arith.addf %210, %209 : vector<8x128xf32>
    %212 = arith.divf %210, %211 : vector<8x128xf32>
    %213 = math.tanh %207 : vector<8x128xf32>
    %214 = vector.extract_strided_slice %212 {offsets = [0, 0], sizes = [8, 32], strides = [1, 1]} : vector<8x128xf32> to vector<8x32xf32>
    %215 = vector.extract_strided_slice %212 {offsets = [0, 32], sizes = [8, 32], strides = [1, 1]} : vector<8x128xf32> to vector<8x32xf32>
    %216 = vector.extract_strided_slice %213 {offsets = [0, 64], sizes = [8, 32], strides = [1, 1]} : vector<8x128xf32> to vector<8x32xf32>
    %217 = vector.extract_strided_slice %212 {offsets = [0, 96], sizes = [8, 32], strides = [1, 1]} : vector<8x128xf32> to vector<8x32xf32>
    %218 = arith.mulf %215, %200 : vector<8x32xf32>
    %219 = arith.mulf %214, %216 : vector<8x32xf32>
    %220 = arith.addf %218, %219 : vector<8x32xf32>
    %221 = math.tanh %220 : vector<8x32xf32>
    %222 = arith.mulf %217, %221 : vector<8x32xf32>
    %c8_77 = arith.constant 8 : index
    %c0_78 = arith.constant 0 : index
    %223 = vector.load %arg8[%c8_77, %c0_78] : memref<64x32xf32, #tpu.memory_space<vmem>>, vector<8x32xf32>
    tpu.vector_store %arg8[%c8_77, %c0_78], %222 {strides = array<i32>} : memref<64x32xf32, #tpu.memory_space<vmem>>, vector<8x32xf32>,
    %c16_79 = arith.constant 16 : index
    %c0_80 = arith.constant 0 : index
    %224 = vector.load %arg9[%c16_79, %c0_80] : memref<64x128xf32, #tpu.memory_space<vmem>>, vector<8x128xf32>
    %225 = arith.truncf %222 : vector<8x32xf32> to vector<8x32xbf16>
    %cst_81 = arith.constant dense<0.000000e+00> : vector<8x128xf32>
    %226 = tpu.matmul %225, %181, %cst_81 {dimension_numbers = #tpu.dot_dimension_numbers<[1], [0], [0], [1], [0, 0, 1, 1], [], []>} : vector<8x32xbf16>, vector<32x128xbf16>, vector<8x128xf32> -> vector<8x128xf32>
    %227 = arith.addf %224, %226 : vector<8x128xf32>
    %228 = arith.negf %227 : vector<8x128xf32>
    %229 = math.exp %228 : vector<8x128xf32>
    %cst_82 = arith.constant 1.000000e+00 : f32
    %230 = vector.broadcast %cst_82 : f32 to vector<8x128xf32>
    %231 = arith.addf %230, %229 : vector<8x128xf32>
    %232 = arith.divf %230, %231 : vector<8x128xf32>
    %233 = math.tanh %227 : vector<8x128xf32>
    %234 = vector.extract_strided_slice %232 {offsets = [0, 0], sizes = [8, 32], strides = [1, 1]} : vector<8x128xf32> to vector<8x32xf32>
    %235 = vector.extract_strided_slice %232 {offsets = [0, 32], sizes = [8, 32], strides = [1, 1]} : vector<8x128xf32> to vector<8x32xf32>
    %236 = vector.extract_strided_slice %233 {offsets = [0, 64], sizes = [8, 32], strides = [1, 1]} : vector<8x128xf32> to vector<8x32xf32>
    %237 = vector.extract_strided_slice %232 {offsets = [0, 96], sizes = [8, 32], strides = [1, 1]} : vector<8x128xf32> to vector<8x32xf32>
    %238 = arith.mulf %235, %220 : vector<8x32xf32>
    %239 = arith.mulf %234, %236 : vector<8x32xf32>
    %240 = arith.addf %238, %239 : vector<8x32xf32>
    %241 = math.tanh %240 : vector<8x32xf32>
    %242 = arith.mulf %237, %241 : vector<8x32xf32>
    %c16_83 = arith.constant 16 : index
    %c0_84 = arith.constant 0 : index
    %243 = vector.load %arg8[%c16_83, %c0_84] : memref<64x32xf32, #tpu.memory_space<vmem>>, vector<8x32xf32>
    tpu.vector_store %arg8[%c16_83, %c0_84], %242 {strides = array<i32>} : memref<64x32xf32, #tpu.memory_space<vmem>>, vector<8x32xf32>,
    %c24_85 = arith.constant 24 : index
    %c0_86 = arith.constant 0 : index
    %244 = vector.load %arg9[%c24_85, %c0_86] : memref<64x128xf32, #tpu.memory_space<vmem>>, vector<8x128xf32>
    %245 = arith.truncf %242 : vector<8x32xf32> to vector<8x32xbf16>
    %cst_87 = arith.constant dense<0.000000e+00> : vector<8x128xf32>
    %246 = tpu.matmul %245, %181, %cst_87 {dimension_numbers = #tpu.dot_dimension_numbers<[1], [0], [0], [1], [0, 0, 1, 1], [], []>} : vector<8x32xbf16>, vector<32x128xbf16>, vector<8x128xf32> -> vector<8x128xf32>
    %247 = arith.addf %244, %246 : vector<8x128xf32>
    %248 = arith.negf %247 : vector<8x128xf32>
    %249 = math.exp %248 : vector<8x128xf32>
    %cst_88 = arith.constant 1.000000e+00 : f32
    %250 = vector.broadcast %cst_88 : f32 to vector<8x128xf32>
    %251 = arith.addf %250, %249 : vector<8x128xf32>
    %252 = arith.divf %250, %251 : vector<8x128xf32>
    %253 = math.tanh %247 : vector<8x128xf32>
    %254 = vector.extract_strided_slice %252 {offsets = [0, 0], sizes = [8, 32], strides = [1, 1]} : vector<8x128xf32> to vector<8x32xf32>
    %255 = vector.extract_strided_slice %252 {offsets = [0, 32], sizes = [8, 32], strides = [1, 1]} : vector<8x128xf32> to vector<8x32xf32>
    %256 = vector.extract_strided_slice %253 {offsets = [0, 64], sizes = [8, 32], strides = [1, 1]} : vector<8x128xf32> to vector<8x32xf32>
    %257 = vector.extract_strided_slice %252 {offsets = [0, 96], sizes = [8, 32], strides = [1, 1]} : vector<8x128xf32> to vector<8x32xf32>
    %258 = arith.mulf %255, %240 : vector<8x32xf32>
    %259 = arith.mulf %254, %256 : vector<8x32xf32>
    %260 = arith.addf %258, %259 : vector<8x32xf32>
    %261 = math.tanh %260 : vector<8x32xf32>
    %262 = arith.mulf %257, %261 : vector<8x32xf32>
    %c24_89 = arith.constant 24 : index
    %c0_90 = arith.constant 0 : index
    %263 = vector.load %arg8[%c24_89, %c0_90] : memref<64x32xf32, #tpu.memory_space<vmem>>, vector<8x32xf32>
    tpu.vector_store %arg8[%c24_89, %c0_90], %262 {strides = array<i32>} : memref<64x32xf32, #tpu.memory_space<vmem>>, vector<8x32xf32>,
    %c32_91 = arith.constant 32 : index
    %c0_92 = arith.constant 0 : index
    %264 = vector.load %arg9[%c32_91, %c0_92] : memref<64x128xf32, #tpu.memory_space<vmem>>, vector<8x128xf32>
    %265 = arith.truncf %262 : vector<8x32xf32> to vector<8x32xbf16>
    %cst_93 = arith.constant dense<0.000000e+00> : vector<8x128xf32>
    %266 = tpu.matmul %265, %181, %cst_93 {dimension_numbers = #tpu.dot_dimension_numbers<[1], [0], [0], [1], [0, 0, 1, 1], [], []>} : vector<8x32xbf16>, vector<32x128xbf16>, vector<8x128xf32> -> vector<8x128xf32>
    %267 = arith.addf %264, %266 : vector<8x128xf32>
    %268 = arith.negf %267 : vector<8x128xf32>
    %269 = math.exp %268 : vector<8x128xf32>
    %cst_94 = arith.constant 1.000000e+00 : f32
    %270 = vector.broadcast %cst_94 : f32 to vector<8x128xf32>
    %271 = arith.addf %270, %269 : vector<8x128xf32>
    %272 = arith.divf %270, %271 : vector<8x128xf32>
    %273 = math.tanh %267 : vector<8x128xf32>
    %274 = vector.extract_strided_slice %272 {offsets = [0, 0], sizes = [8, 32], strides = [1, 1]} : vector<8x128xf32> to vector<8x32xf32>
    %275 = vector.extract_strided_slice %272 {offsets = [0, 32], sizes = [8, 32], strides = [1, 1]} : vector<8x128xf32> to vector<8x32xf32>
    %276 = vector.extract_strided_slice %273 {offsets = [0, 64], sizes = [8, 32], strides = [1, 1]} : vector<8x128xf32> to vector<8x32xf32>
    %277 = vector.extract_strided_slice %272 {offsets = [0, 96], sizes = [8, 32], strides = [1, 1]} : vector<8x128xf32> to vector<8x32xf32>
    %278 = arith.mulf %275, %260 : vector<8x32xf32>
    %279 = arith.mulf %274, %276 : vector<8x32xf32>
    %280 = arith.addf %278, %279 : vector<8x32xf32>
    %281 = math.tanh %280 : vector<8x32xf32>
    %282 = arith.mulf %277, %281 : vector<8x32xf32>
    %c32_95 = arith.constant 32 : index
    %c0_96 = arith.constant 0 : index
    %283 = vector.load %arg8[%c32_95, %c0_96] : memref<64x32xf32, #tpu.memory_space<vmem>>, vector<8x32xf32>
    tpu.vector_store %arg8[%c32_95, %c0_96], %282 {strides = array<i32>} : memref<64x32xf32, #tpu.memory_space<vmem>>, vector<8x32xf32>,
    %c40_97 = arith.constant 40 : index
    %c0_98 = arith.constant 0 : index
    %284 = vector.load %arg9[%c40_97, %c0_98] : memref<64x128xf32, #tpu.memory_space<vmem>>, vector<8x128xf32>
    %285 = arith.truncf %282 : vector<8x32xf32> to vector<8x32xbf16>
    %cst_99 = arith.constant dense<0.000000e+00> : vector<8x128xf32>
    %286 = tpu.matmul %285, %181, %cst_99 {dimension_numbers = #tpu.dot_dimension_numbers<[1], [0], [0], [1], [0, 0, 1, 1], [], []>} : vector<8x32xbf16>, vector<32x128xbf16>, vector<8x128xf32> -> vector<8x128xf32>
    %287 = arith.addf %284, %286 : vector<8x128xf32>
    %288 = arith.negf %287 : vector<8x128xf32>
    %289 = math.exp %288 : vector<8x128xf32>
    %cst_100 = arith.constant 1.000000e+00 : f32
    %290 = vector.broadcast %cst_100 : f32 to vector<8x128xf32>
    %291 = arith.addf %290, %289 : vector<8x128xf32>
    %292 = arith.divf %290, %291 : vector<8x128xf32>
    %293 = math.tanh %287 : vector<8x128xf32>
    %294 = vector.extract_strided_slice %292 {offsets = [0, 0], sizes = [8, 32], strides = [1, 1]} : vector<8x128xf32> to vector<8x32xf32>
    %295 = vector.extract_strided_slice %292 {offsets = [0, 32], sizes = [8, 32], strides = [1, 1]} : vector<8x128xf32> to vector<8x32xf32>
    %296 = vector.extract_strided_slice %293 {offsets = [0, 64], sizes = [8, 32], strides = [1, 1]} : vector<8x128xf32> to vector<8x32xf32>
    %297 = vector.extract_strided_slice %292 {offsets = [0, 96], sizes = [8, 32], strides = [1, 1]} : vector<8x128xf32> to vector<8x32xf32>
    %298 = arith.mulf %295, %280 : vector<8x32xf32>
    %299 = arith.mulf %294, %296 : vector<8x32xf32>
    %300 = arith.addf %298, %299 : vector<8x32xf32>
    %301 = math.tanh %300 : vector<8x32xf32>
    %302 = arith.mulf %297, %301 : vector<8x32xf32>
    %c40_101 = arith.constant 40 : index
    %c0_102 = arith.constant 0 : index
    %303 = vector.load %arg8[%c40_101, %c0_102] : memref<64x32xf32, #tpu.memory_space<vmem>>, vector<8x32xf32>
    tpu.vector_store %arg8[%c40_101, %c0_102], %302 {strides = array<i32>} : memref<64x32xf32, #tpu.memory_space<vmem>>, vector<8x32xf32>,
    %c48_103 = arith.constant 48 : index
    %c0_104 = arith.constant 0 : index
    %304 = vector.load %arg9[%c48_103, %c0_104] : memref<64x128xf32, #tpu.memory_space<vmem>>, vector<8x128xf32>
    %305 = arith.truncf %302 : vector<8x32xf32> to vector<8x32xbf16>
    %cst_105 = arith.constant dense<0.000000e+00> : vector<8x128xf32>
    %306 = tpu.matmul %305, %181, %cst_105 {dimension_numbers = #tpu.dot_dimension_numbers<[1], [0], [0], [1], [0, 0, 1, 1], [], []>} : vector<8x32xbf16>, vector<32x128xbf16>, vector<8x128xf32> -> vector<8x128xf32>
    %307 = arith.addf %304, %306 : vector<8x128xf32>
    %308 = arith.negf %307 : vector<8x128xf32>
    %309 = math.exp %308 : vector<8x128xf32>
    %cst_106 = arith.constant 1.000000e+00 : f32
    %310 = vector.broadcast %cst_106 : f32 to vector<8x128xf32>
    %311 = arith.addf %310, %309 : vector<8x128xf32>
    %312 = arith.divf %310, %311 : vector<8x128xf32>
    %313 = math.tanh %307 : vector<8x128xf32>
    %314 = vector.extract_strided_slice %312 {offsets = [0, 0], sizes = [8, 32], strides = [1, 1]} : vector<8x128xf32> to vector<8x32xf32>
    %315 = vector.extract_strided_slice %312 {offsets = [0, 32], sizes = [8, 32], strides = [1, 1]} : vector<8x128xf32> to vector<8x32xf32>
    %316 = vector.extract_strided_slice %313 {offsets = [0, 64], sizes = [8, 32], strides = [1, 1]} : vector<8x128xf32> to vector<8x32xf32>
    %317 = vector.extract_strided_slice %312 {offsets = [0, 96], sizes = [8, 32], strides = [1, 1]} : vector<8x128xf32> to vector<8x32xf32>
    %318 = arith.mulf %315, %300 : vector<8x32xf32>
    %319 = arith.mulf %314, %316 : vector<8x32xf32>
    %320 = arith.addf %318, %319 : vector<8x32xf32>
    %321 = math.tanh %320 : vector<8x32xf32>
    %322 = arith.mulf %317, %321 : vector<8x32xf32>
    %c48_107 = arith.constant 48 : index
    %c0_108 = arith.constant 0 : index
    %323 = vector.load %arg8[%c48_107, %c0_108] : memref<64x32xf32, #tpu.memory_space<vmem>>, vector<8x32xf32>
    tpu.vector_store %arg8[%c48_107, %c0_108], %322 {strides = array<i32>} : memref<64x32xf32, #tpu.memory_space<vmem>>, vector<8x32xf32>,
    %c56_109 = arith.constant 56 : index
    %c0_110 = arith.constant 0 : index
    %324 = vector.load %arg9[%c56_109, %c0_110] : memref<64x128xf32, #tpu.memory_space<vmem>>, vector<8x128xf32>
    %325 = arith.truncf %322 : vector<8x32xf32> to vector<8x32xbf16>
    %cst_111 = arith.constant dense<0.000000e+00> : vector<8x128xf32>
    %326 = tpu.matmul %325, %181, %cst_111 {dimension_numbers = #tpu.dot_dimension_numbers<[1], [0], [0], [1], [0, 0, 1, 1], [], []>} : vector<8x32xbf16>, vector<32x128xbf16>, vector<8x128xf32> -> vector<8x128xf32>
    %327 = arith.addf %324, %326 : vector<8x128xf32>
    %328 = arith.negf %327 : vector<8x128xf32>
    %329 = math.exp %328 : vector<8x128xf32>
    %cst_112 = arith.constant 1.000000e+00 : f32
    %330 = vector.broadcast %cst_112 : f32 to vector<8x128xf32>
    %331 = arith.addf %330, %329 : vector<8x128xf32>
    %332 = arith.divf %330, %331 : vector<8x128xf32>
    %333 = math.tanh %327 : vector<8x128xf32>
    %334 = vector.extract_strided_slice %332 {offsets = [0, 0], sizes = [8, 32], strides = [1, 1]} : vector<8x128xf32> to vector<8x32xf32>
    %335 = vector.extract_strided_slice %332 {offsets = [0, 32], sizes = [8, 32], strides = [1, 1]} : vector<8x128xf32> to vector<8x32xf32>
    %336 = vector.extract_strided_slice %333 {offsets = [0, 64], sizes = [8, 32], strides = [1, 1]} : vector<8x128xf32> to vector<8x32xf32>
    %337 = vector.extract_strided_slice %332 {offsets = [0, 96], sizes = [8, 32], strides = [1, 1]} : vector<8x128xf32> to vector<8x32xf32>
    %338 = arith.mulf %335, %320 : vector<8x32xf32>
    %339 = arith.mulf %334, %336 : vector<8x32xf32>
    %340 = arith.addf %338, %339 : vector<8x32xf32>
    %341 = math.tanh %340 : vector<8x32xf32>
    %342 = arith.mulf %337, %341 : vector<8x32xf32>
    %c56_113 = arith.constant 56 : index
    %c0_114 = arith.constant 0 : index
    %343 = vector.load %arg8[%c56_113, %c0_114] : memref<64x32xf32, #tpu.memory_space<vmem>>, vector<8x32xf32>
    tpu.vector_store %arg8[%c56_113, %c0_114], %342 {strides = array<i32>} : memref<64x32xf32, #tpu.memory_space<vmem>>, vector<8x32xf32>,
    %c0_115 = arith.constant 0 : index
    %c0_116 = arith.constant 0 : index
    %344 = vector.load %arg8[%c0_115, %c0_116] : memref<64x32xf32, #tpu.memory_space<vmem>>, vector<64x32xf32>
    %345 = arith.truncf %344 : vector<64x32xf32> to vector<64x32xbf16>
    %c1_117 = arith.constant 1 : index
    %c0_118 = arith.constant 0 : index
    %c0_119 = arith.constant 0 : index
    %346 = vector.load %arg2[%c1_117, %c0_118, %c0_119] : memref<3x32x128xbf16, #tpu.memory_space<vmem>>, vector<1x32x128xbf16>
    %347 = vector.shape_cast %346 : vector<1x32x128xbf16> to vector<32x128xbf16>
    %cst_120 = arith.constant dense<0.000000e+00> : vector<64x128xf32>
    %348 = tpu.matmul %345, %347, %cst_120 {dimension_numbers = #tpu.dot_dimension_numbers<[1], [0], [0], [1], [0, 0, 1, 1], [], []>} : vector<64x32xbf16>, vector<32x128xbf16>, vector<64x128xf32> -> vector<64x128xf32>
    %c2 = arith.constant 2 : index
    %c0_121 = arith.constant 0 : index
    %349 = vector.load %arg4[%c2, %c0_121] : memref<4x128xf32, #tpu.memory_space<vmem>>, vector<1x128xf32>
    %350 = vector.broadcast %349 : vector<1x128xf32> to vector<64x128xf32>
    %351 = arith.addf %348, %350 : vector<64x128xf32>
    %c0_122 = arith.constant 0 : index
    %c0_123 = arith.constant 0 : index
    %352 = vector.load %arg9[%c0_122, %c0_123] : memref<64x128xf32, #tpu.memory_space<vmem>>, vector<64x128xf32>
    tpu.vector_store %arg9[%c0_122, %c0_123], %351 {strides = array<i32>} : memref<64x128xf32, #tpu.memory_space<vmem>>, vector<64x128xf32>,
    %c2_124 = arith.constant 2 : index
    %c0_125 = arith.constant 0 : index
    %c0_126 = arith.constant 0 : index
    %353 = vector.load %arg3[%c2_124, %c0_125, %c0_126] : memref<4x32x128xbf16, #tpu.memory_space<vmem>>, vector<1x32x128xbf16>
    %354 = vector.shape_cast %353 : vector<1x32x128xbf16> to vector<32x128xbf16>
    %cst_127 = arith.constant 0.000000e+00 : f32
    %355 = vector.broadcast %cst_127 : f32 to vector<8x32xf32>
    %cst_128 = arith.constant 0.000000e+00 : f32
    %356 = vector.broadcast %cst_128 : f32 to vector<8x32xf32>
    %c0_129 = arith.constant 0 : index
    %c0_130 = arith.constant 0 : index
    %357 = vector.load %arg9[%c0_129, %c0_130] : memref<64x128xf32, #tpu.memory_space<vmem>>, vector<8x128xf32>
    %358 = arith.truncf %355 : vector<8x32xf32> to vector<8x32xbf16>
    %cst_131 = arith.constant dense<0.000000e+00> : vector<8x128xf32>
    %359 = tpu.matmul %358, %354, %cst_131 {dimension_numbers = #tpu.dot_dimension_numbers<[1], [0], [0], [1], [0, 0, 1, 1], [], []>} : vector<8x32xbf16>, vector<32x128xbf16>, vector<8x128xf32> -> vector<8x128xf32>
    %360 = arith.addf %357, %359 : vector<8x128xf32>
    %361 = arith.negf %360 : vector<8x128xf32>
    %362 = math.exp %361 : vector<8x128xf32>
    %cst_132 = arith.constant 1.000000e+00 : f32
    %363 = vector.broadcast %cst_132 : f32 to vector<8x128xf32>
    %364 = arith.addf %363, %362 : vector<8x128xf32>
    %365 = arith.divf %363, %364 : vector<8x128xf32>
    %366 = math.tanh %360 : vector<8x128xf32>
    %367 = vector.extract_strided_slice %365 {offsets = [0, 0], sizes = [8, 32], strides = [1, 1]} : vector<8x128xf32> to vector<8x32xf32>
    %368 = vector.extract_strided_slice %365 {offsets = [0, 32], sizes = [8, 32], strides = [1, 1]} : vector<8x128xf32> to vector<8x32xf32>
    %369 = vector.extract_strided_slice %366 {offsets = [0, 64], sizes = [8, 32], strides = [1, 1]} : vector<8x128xf32> to vector<8x32xf32>
    %370 = vector.extract_strided_slice %365 {offsets = [0, 96], sizes = [8, 32], strides = [1, 1]} : vector<8x128xf32> to vector<8x32xf32>
    %371 = arith.mulf %368, %356 : vector<8x32xf32>
    %372 = arith.mulf %367, %369 : vector<8x32xf32>
    %373 = arith.addf %371, %372 : vector<8x32xf32>
    %374 = math.tanh %373 : vector<8x32xf32>
    %375 = arith.mulf %370, %374 : vector<8x32xf32>
    %c0_133 = arith.constant 0 : index
    %c0_134 = arith.constant 0 : index
    %376 = vector.load %arg8[%c0_133, %c0_134] : memref<64x32xf32, #tpu.memory_space<vmem>>, vector<8x32xf32>
    tpu.vector_store %arg8[%c0_133, %c0_134], %375 {strides = array<i32>} : memref<64x32xf32, #tpu.memory_space<vmem>>, vector<8x32xf32>,
    %c8_135 = arith.constant 8 : index
    %c0_136 = arith.constant 0 : index
    %377 = vector.load %arg9[%c8_135, %c0_136] : memref<64x128xf32, #tpu.memory_space<vmem>>, vector<8x128xf32>
    %378 = arith.truncf %375 : vector<8x32xf32> to vector<8x32xbf16>
    %cst_137 = arith.constant dense<0.000000e+00> : vector<8x128xf32>
    %379 = tpu.matmul %378, %354, %cst_137 {dimension_numbers = #tpu.dot_dimension_numbers<[1], [0], [0], [1], [0, 0, 1, 1], [], []>} : vector<8x32xbf16>, vector<32x128xbf16>, vector<8x128xf32> -> vector<8x128xf32>
    %380 = arith.addf %377, %379 : vector<8x128xf32>
    %381 = arith.negf %380 : vector<8x128xf32>
    %382 = math.exp %381 : vector<8x128xf32>
    %cst_138 = arith.constant 1.000000e+00 : f32
    %383 = vector.broadcast %cst_138 : f32 to vector<8x128xf32>
    %384 = arith.addf %383, %382 : vector<8x128xf32>
    %385 = arith.divf %383, %384 : vector<8x128xf32>
    %386 = math.tanh %380 : vector<8x128xf32>
    %387 = vector.extract_strided_slice %385 {offsets = [0, 0], sizes = [8, 32], strides = [1, 1]} : vector<8x128xf32> to vector<8x32xf32>
    %388 = vector.extract_strided_slice %385 {offsets = [0, 32], sizes = [8, 32], strides = [1, 1]} : vector<8x128xf32> to vector<8x32xf32>
    %389 = vector.extract_strided_slice %386 {offsets = [0, 64], sizes = [8, 32], strides = [1, 1]} : vector<8x128xf32> to vector<8x32xf32>
    %390 = vector.extract_strided_slice %385 {offsets = [0, 96], sizes = [8, 32], strides = [1, 1]} : vector<8x128xf32> to vector<8x32xf32>
    %391 = arith.mulf %388, %373 : vector<8x32xf32>
    %392 = arith.mulf %387, %389 : vector<8x32xf32>
    %393 = arith.addf %391, %392 : vector<8x32xf32>
    %394 = math.tanh %393 : vector<8x32xf32>
    %395 = arith.mulf %390, %394 : vector<8x32xf32>
    %c8_139 = arith.constant 8 : index
    %c0_140 = arith.constant 0 : index
    %396 = vector.load %arg8[%c8_139, %c0_140] : memref<64x32xf32, #tpu.memory_space<vmem>>, vector<8x32xf32>
    tpu.vector_store %arg8[%c8_139, %c0_140], %395 {strides = array<i32>} : memref<64x32xf32, #tpu.memory_space<vmem>>, vector<8x32xf32>,
    %c16_141 = arith.constant 16 : index
    %c0_142 = arith.constant 0 : index
    %397 = vector.load %arg9[%c16_141, %c0_142] : memref<64x128xf32, #tpu.memory_space<vmem>>, vector<8x128xf32>
    %398 = arith.truncf %395 : vector<8x32xf32> to vector<8x32xbf16>
    %cst_143 = arith.constant dense<0.000000e+00> : vector<8x128xf32>
    %399 = tpu.matmul %398, %354, %cst_143 {dimension_numbers = #tpu.dot_dimension_numbers<[1], [0], [0], [1], [0, 0, 1, 1], [], []>} : vector<8x32xbf16>, vector<32x128xbf16>, vector<8x128xf32> -> vector<8x128xf32>
    %400 = arith.addf %397, %399 : vector<8x128xf32>
    %401 = arith.negf %400 : vector<8x128xf32>
    %402 = math.exp %401 : vector<8x128xf32>
    %cst_144 = arith.constant 1.000000e+00 : f32
    %403 = vector.broadcast %cst_144 : f32 to vector<8x128xf32>
    %404 = arith.addf %403, %402 : vector<8x128xf32>
    %405 = arith.divf %403, %404 : vector<8x128xf32>
    %406 = math.tanh %400 : vector<8x128xf32>
    %407 = vector.extract_strided_slice %405 {offsets = [0, 0], sizes = [8, 32], strides = [1, 1]} : vector<8x128xf32> to vector<8x32xf32>
    %408 = vector.extract_strided_slice %405 {offsets = [0, 32], sizes = [8, 32], strides = [1, 1]} : vector<8x128xf32> to vector<8x32xf32>
    %409 = vector.extract_strided_slice %406 {offsets = [0, 64], sizes = [8, 32], strides = [1, 1]} : vector<8x128xf32> to vector<8x32xf32>
    %410 = vector.extract_strided_slice %405 {offsets = [0, 96], sizes = [8, 32], strides = [1, 1]} : vector<8x128xf32> to vector<8x32xf32>
    %411 = arith.mulf %408, %393 : vector<8x32xf32>
    %412 = arith.mulf %407, %409 : vector<8x32xf32>
    %413 = arith.addf %411, %412 : vector<8x32xf32>
    %414 = math.tanh %413 : vector<8x32xf32>
    %415 = arith.mulf %410, %414 : vector<8x32xf32>
    %c16_145 = arith.constant 16 : index
    %c0_146 = arith.constant 0 : index
    %416 = vector.load %arg8[%c16_145, %c0_146] : memref<64x32xf32, #tpu.memory_space<vmem>>, vector<8x32xf32>
    tpu.vector_store %arg8[%c16_145, %c0_146], %415 {strides = array<i32>} : memref<64x32xf32, #tpu.memory_space<vmem>>, vector<8x32xf32>,
    %c24_147 = arith.constant 24 : index
    %c0_148 = arith.constant 0 : index
    %417 = vector.load %arg9[%c24_147, %c0_148] : memref<64x128xf32, #tpu.memory_space<vmem>>, vector<8x128xf32>
    %418 = arith.truncf %415 : vector<8x32xf32> to vector<8x32xbf16>
    %cst_149 = arith.constant dense<0.000000e+00> : vector<8x128xf32>
    %419 = tpu.matmul %418, %354, %cst_149 {dimension_numbers = #tpu.dot_dimension_numbers<[1], [0], [0], [1], [0, 0, 1, 1], [], []>} : vector<8x32xbf16>, vector<32x128xbf16>, vector<8x128xf32> -> vector<8x128xf32>
    %420 = arith.addf %417, %419 : vector<8x128xf32>
    %421 = arith.negf %420 : vector<8x128xf32>
    %422 = math.exp %421 : vector<8x128xf32>
    %cst_150 = arith.constant 1.000000e+00 : f32
    %423 = vector.broadcast %cst_150 : f32 to vector<8x128xf32>
    %424 = arith.addf %423, %422 : vector<8x128xf32>
    %425 = arith.divf %423, %424 : vector<8x128xf32>
    %426 = math.tanh %420 : vector<8x128xf32>
    %427 = vector.extract_strided_slice %425 {offsets = [0, 0], sizes = [8, 32], strides = [1, 1]} : vector<8x128xf32> to vector<8x32xf32>
    %428 = vector.extract_strided_slice %425 {offsets = [0, 32], sizes = [8, 32], strides = [1, 1]} : vector<8x128xf32> to vector<8x32xf32>
    %429 = vector.extract_strided_slice %426 {offsets = [0, 64], sizes = [8, 32], strides = [1, 1]} : vector<8x128xf32> to vector<8x32xf32>
    %430 = vector.extract_strided_slice %425 {offsets = [0, 96], sizes = [8, 32], strides = [1, 1]} : vector<8x128xf32> to vector<8x32xf32>
    %431 = arith.mulf %428, %413 : vector<8x32xf32>
    %432 = arith.mulf %427, %429 : vector<8x32xf32>
    %433 = arith.addf %431, %432 : vector<8x32xf32>
    %434 = math.tanh %433 : vector<8x32xf32>
    %435 = arith.mulf %430, %434 : vector<8x32xf32>
    %c24_151 = arith.constant 24 : index
    %c0_152 = arith.constant 0 : index
    %436 = vector.load %arg8[%c24_151, %c0_152] : memref<64x32xf32, #tpu.memory_space<vmem>>, vector<8x32xf32>
    tpu.vector_store %arg8[%c24_151, %c0_152], %435 {strides = array<i32>} : memref<64x32xf32, #tpu.memory_space<vmem>>, vector<8x32xf32>,
    %c32_153 = arith.constant 32 : index
    %c0_154 = arith.constant 0 : index
    %437 = vector.load %arg9[%c32_153, %c0_154] : memref<64x128xf32, #tpu.memory_space<vmem>>, vector<8x128xf32>
    %438 = arith.truncf %435 : vector<8x32xf32> to vector<8x32xbf16>
    %cst_155 = arith.constant dense<0.000000e+00> : vector<8x128xf32>
    %439 = tpu.matmul %438, %354, %cst_155 {dimension_numbers = #tpu.dot_dimension_numbers<[1], [0], [0], [1], [0, 0, 1, 1], [], []>} : vector<8x32xbf16>, vector<32x128xbf16>, vector<8x128xf32> -> vector<8x128xf32>
    %440 = arith.addf %437, %439 : vector<8x128xf32>
    %441 = arith.negf %440 : vector<8x128xf32>
    %442 = math.exp %441 : vector<8x128xf32>
    %cst_156 = arith.constant 1.000000e+00 : f32
    %443 = vector.broadcast %cst_156 : f32 to vector<8x128xf32>
    %444 = arith.addf %443, %442 : vector<8x128xf32>
    %445 = arith.divf %443, %444 : vector<8x128xf32>
    %446 = math.tanh %440 : vector<8x128xf32>
    %447 = vector.extract_strided_slice %445 {offsets = [0, 0], sizes = [8, 32], strides = [1, 1]} : vector<8x128xf32> to vector<8x32xf32>
    %448 = vector.extract_strided_slice %445 {offsets = [0, 32], sizes = [8, 32], strides = [1, 1]} : vector<8x128xf32> to vector<8x32xf32>
    %449 = vector.extract_strided_slice %446 {offsets = [0, 64], sizes = [8, 32], strides = [1, 1]} : vector<8x128xf32> to vector<8x32xf32>
    %450 = vector.extract_strided_slice %445 {offsets = [0, 96], sizes = [8, 32], strides = [1, 1]} : vector<8x128xf32> to vector<8x32xf32>
    %451 = arith.mulf %448, %433 : vector<8x32xf32>
    %452 = arith.mulf %447, %449 : vector<8x32xf32>
    %453 = arith.addf %451, %452 : vector<8x32xf32>
    %454 = math.tanh %453 : vector<8x32xf32>
    %455 = arith.mulf %450, %454 : vector<8x32xf32>
    %c32_157 = arith.constant 32 : index
    %c0_158 = arith.constant 0 : index
    %456 = vector.load %arg8[%c32_157, %c0_158] : memref<64x32xf32, #tpu.memory_space<vmem>>, vector<8x32xf32>
    tpu.vector_store %arg8[%c32_157, %c0_158], %455 {strides = array<i32>} : memref<64x32xf32, #tpu.memory_space<vmem>>, vector<8x32xf32>,
    %c40_159 = arith.constant 40 : index
    %c0_160 = arith.constant 0 : index
    %457 = vector.load %arg9[%c40_159, %c0_160] : memref<64x128xf32, #tpu.memory_space<vmem>>, vector<8x128xf32>
    %458 = arith.truncf %455 : vector<8x32xf32> to vector<8x32xbf16>
    %cst_161 = arith.constant dense<0.000000e+00> : vector<8x128xf32>
    %459 = tpu.matmul %458, %354, %cst_161 {dimension_numbers = #tpu.dot_dimension_numbers<[1], [0], [0], [1], [0, 0, 1, 1], [], []>} : vector<8x32xbf16>, vector<32x128xbf16>, vector<8x128xf32> -> vector<8x128xf32>
    %460 = arith.addf %457, %459 : vector<8x128xf32>
    %461 = arith.negf %460 : vector<8x128xf32>
    %462 = math.exp %461 : vector<8x128xf32>
    %cst_162 = arith.constant 1.000000e+00 : f32
    %463 = vector.broadcast %cst_162 : f32 to vector<8x128xf32>
    %464 = arith.addf %463, %462 : vector<8x128xf32>
    %465 = arith.divf %463, %464 : vector<8x128xf32>
    %466 = math.tanh %460 : vector<8x128xf32>
    %467 = vector.extract_strided_slice %465 {offsets = [0, 0], sizes = [8, 32], strides = [1, 1]} : vector<8x128xf32> to vector<8x32xf32>
    %468 = vector.extract_strided_slice %465 {offsets = [0, 32], sizes = [8, 32], strides = [1, 1]} : vector<8x128xf32> to vector<8x32xf32>
    %469 = vector.extract_strided_slice %466 {offsets = [0, 64], sizes = [8, 32], strides = [1, 1]} : vector<8x128xf32> to vector<8x32xf32>
    %470 = vector.extract_strided_slice %465 {offsets = [0, 96], sizes = [8, 32], strides = [1, 1]} : vector<8x128xf32> to vector<8x32xf32>
    %471 = arith.mulf %468, %453 : vector<8x32xf32>
    %472 = arith.mulf %467, %469 : vector<8x32xf32>
    %473 = arith.addf %471, %472 : vector<8x32xf32>
    %474 = math.tanh %473 : vector<8x32xf32>
    %475 = arith.mulf %470, %474 : vector<8x32xf32>
    %c40_163 = arith.constant 40 : index
    %c0_164 = arith.constant 0 : index
    %476 = vector.load %arg8[%c40_163, %c0_164] : memref<64x32xf32, #tpu.memory_space<vmem>>, vector<8x32xf32>
    tpu.vector_store %arg8[%c40_163, %c0_164], %475 {strides = array<i32>} : memref<64x32xf32, #tpu.memory_space<vmem>>, vector<8x32xf32>,
    %c48_165 = arith.constant 48 : index
    %c0_166 = arith.constant 0 : index
    %477 = vector.load %arg9[%c48_165, %c0_166] : memref<64x128xf32, #tpu.memory_space<vmem>>, vector<8x128xf32>
    %478 = arith.truncf %475 : vector<8x32xf32> to vector<8x32xbf16>
    %cst_167 = arith.constant dense<0.000000e+00> : vector<8x128xf32>
    %479 = tpu.matmul %478, %354, %cst_167 {dimension_numbers = #tpu.dot_dimension_numbers<[1], [0], [0], [1], [0, 0, 1, 1], [], []>} : vector<8x32xbf16>, vector<32x128xbf16>, vector<8x128xf32> -> vector<8x128xf32>
    %480 = arith.addf %477, %479 : vector<8x128xf32>
    %481 = arith.negf %480 : vector<8x128xf32>
    %482 = math.exp %481 : vector<8x128xf32>
    %cst_168 = arith.constant 1.000000e+00 : f32
    %483 = vector.broadcast %cst_168 : f32 to vector<8x128xf32>
    %484 = arith.addf %483, %482 : vector<8x128xf32>
    %485 = arith.divf %483, %484 : vector<8x128xf32>
    %486 = math.tanh %480 : vector<8x128xf32>
    %487 = vector.extract_strided_slice %485 {offsets = [0, 0], sizes = [8, 32], strides = [1, 1]} : vector<8x128xf32> to vector<8x32xf32>
    %488 = vector.extract_strided_slice %485 {offsets = [0, 32], sizes = [8, 32], strides = [1, 1]} : vector<8x128xf32> to vector<8x32xf32>
    %489 = vector.extract_strided_slice %486 {offsets = [0, 64], sizes = [8, 32], strides = [1, 1]} : vector<8x128xf32> to vector<8x32xf32>
    %490 = vector.extract_strided_slice %485 {offsets = [0, 96], sizes = [8, 32], strides = [1, 1]} : vector<8x128xf32> to vector<8x32xf32>
    %491 = arith.mulf %488, %473 : vector<8x32xf32>
    %492 = arith.mulf %487, %489 : vector<8x32xf32>
    %493 = arith.addf %491, %492 : vector<8x32xf32>
    %494 = math.tanh %493 : vector<8x32xf32>
    %495 = arith.mulf %490, %494 : vector<8x32xf32>
    %c48_169 = arith.constant 48 : index
    %c0_170 = arith.constant 0 : index
    %496 = vector.load %arg8[%c48_169, %c0_170] : memref<64x32xf32, #tpu.memory_space<vmem>>, vector<8x32xf32>
    tpu.vector_store %arg8[%c48_169, %c0_170], %495 {strides = array<i32>} : memref<64x32xf32, #tpu.memory_space<vmem>>, vector<8x32xf32>,
    %c56_171 = arith.constant 56 : index
    %c0_172 = arith.constant 0 : index
    %497 = vector.load %arg9[%c56_171, %c0_172] : memref<64x128xf32, #tpu.memory_space<vmem>>, vector<8x128xf32>
    %498 = arith.truncf %495 : vector<8x32xf32> to vector<8x32xbf16>
    %cst_173 = arith.constant dense<0.000000e+00> : vector<8x128xf32>
    %499 = tpu.matmul %498, %354, %cst_173 {dimension_numbers = #tpu.dot_dimension_numbers<[1], [0], [0], [1], [0, 0, 1, 1], [], []>} : vector<8x32xbf16>, vector<32x128xbf16>, vector<8x128xf32> -> vector<8x128xf32>
    %500 = arith.addf %497, %499 : vector<8x128xf32>
    %501 = arith.negf %500 : vector<8x128xf32>
    %502 = math.exp %501 : vector<8x128xf32>
    %cst_174 = arith.constant 1.000000e+00 : f32
    %503 = vector.broadcast %cst_174 : f32 to vector<8x128xf32>
    %504 = arith.addf %503, %502 : vector<8x128xf32>
    %505 = arith.divf %503, %504 : vector<8x128xf32>
    %506 = math.tanh %500 : vector<8x128xf32>
    %507 = vector.extract_strided_slice %505 {offsets = [0, 0], sizes = [8, 32], strides = [1, 1]} : vector<8x128xf32> to vector<8x32xf32>
    %508 = vector.extract_strided_slice %505 {offsets = [0, 32], sizes = [8, 32], strides = [1, 1]} : vector<8x128xf32> to vector<8x32xf32>
    %509 = vector.extract_strided_slice %506 {offsets = [0, 64], sizes = [8, 32], strides = [1, 1]} : vector<8x128xf32> to vector<8x32xf32>
    %510 = vector.extract_strided_slice %505 {offsets = [0, 96], sizes = [8, 32], strides = [1, 1]} : vector<8x128xf32> to vector<8x32xf32>
    %511 = arith.mulf %508, %493 : vector<8x32xf32>
    %512 = arith.mulf %507, %509 : vector<8x32xf32>
    %513 = arith.addf %511, %512 : vector<8x32xf32>
    %514 = math.tanh %513 : vector<8x32xf32>
    %515 = arith.mulf %510, %514 : vector<8x32xf32>
    %c56_175 = arith.constant 56 : index
    %c0_176 = arith.constant 0 : index
    %516 = vector.load %arg8[%c56_175, %c0_176] : memref<64x32xf32, #tpu.memory_space<vmem>>, vector<8x32xf32>
    tpu.vector_store %arg8[%c56_175, %c0_176], %515 {strides = array<i32>} : memref<64x32xf32, #tpu.memory_space<vmem>>, vector<8x32xf32>,
    %c0_177 = arith.constant 0 : index
    %c0_178 = arith.constant 0 : index
    %517 = vector.load %arg8[%c0_177, %c0_178] : memref<64x32xf32, #tpu.memory_space<vmem>>, vector<64x32xf32>
    %518 = arith.truncf %517 : vector<64x32xf32> to vector<64x32xbf16>
    %c2_179 = arith.constant 2 : index
    %c0_180 = arith.constant 0 : index
    %c0_181 = arith.constant 0 : index
    %519 = vector.load %arg2[%c2_179, %c0_180, %c0_181] : memref<3x32x128xbf16, #tpu.memory_space<vmem>>, vector<1x32x128xbf16>
    %520 = vector.shape_cast %519 : vector<1x32x128xbf16> to vector<32x128xbf16>
    %cst_182 = arith.constant dense<0.000000e+00> : vector<64x128xf32>
    %521 = tpu.matmul %518, %520, %cst_182 {dimension_numbers = #tpu.dot_dimension_numbers<[1], [0], [0], [1], [0, 0, 1, 1], [], []>} : vector<64x32xbf16>, vector<32x128xbf16>, vector<64x128xf32> -> vector<64x128xf32>
    %c3 = arith.constant 3 : index
    %c0_183 = arith.constant 0 : index
    %522 = vector.load %arg4[%c3, %c0_183] : memref<4x128xf32, #tpu.memory_space<vmem>>, vector<1x128xf32>
    %523 = vector.broadcast %522 : vector<1x128xf32> to vector<64x128xf32>
    %524 = arith.addf %521, %523 : vector<64x128xf32>
    %c0_184 = arith.constant 0 : index
    %c0_185 = arith.constant 0 : index
    %525 = vector.load %arg9[%c0_184, %c0_185] : memref<64x128xf32, #tpu.memory_space<vmem>>, vector<64x128xf32>
    tpu.vector_store %arg9[%c0_184, %c0_185], %524 {strides = array<i32>} : memref<64x128xf32, #tpu.memory_space<vmem>>, vector<64x128xf32>,
    %c3_186 = arith.constant 3 : index
    %c0_187 = arith.constant 0 : index
    %c0_188 = arith.constant 0 : index
    %526 = vector.load %arg3[%c3_186, %c0_187, %c0_188] : memref<4x32x128xbf16, #tpu.memory_space<vmem>>, vector<1x32x128xbf16>
    %527 = vector.shape_cast %526 : vector<1x32x128xbf16> to vector<32x128xbf16>
    %cst_189 = arith.constant 0.000000e+00 : f32
    %528 = vector.broadcast %cst_189 : f32 to vector<8x32xf32>
    %cst_190 = arith.constant 0.000000e+00 : f32
    %529 = vector.broadcast %cst_190 : f32 to vector<8x32xf32>
    %c0_191 = arith.constant 0 : index
    %c0_192 = arith.constant 0 : index
    %530 = vector.load %arg9[%c0_191, %c0_192] : memref<64x128xf32, #tpu.memory_space<vmem>>, vector<8x128xf32>
    %531 = arith.truncf %528 : vector<8x32xf32> to vector<8x32xbf16>
    %cst_193 = arith.constant dense<0.000000e+00> : vector<8x128xf32>
    %532 = tpu.matmul %531, %527, %cst_193 {dimension_numbers = #tpu.dot_dimension_numbers<[1], [0], [0], [1], [0, 0, 1, 1], [], []>} : vector<8x32xbf16>, vector<32x128xbf16>, vector<8x128xf32> -> vector<8x128xf32>
    %533 = arith.addf %530, %532 : vector<8x128xf32>
    %534 = arith.negf %533 : vector<8x128xf32>
    %535 = math.exp %534 : vector<8x128xf32>
    %cst_194 = arith.constant 1.000000e+00 : f32
    %536 = vector.broadcast %cst_194 : f32 to vector<8x128xf32>
    %537 = arith.addf %536, %535 : vector<8x128xf32>
    %538 = arith.divf %536, %537 : vector<8x128xf32>
    %539 = math.tanh %533 : vector<8x128xf32>
    %540 = vector.extract_strided_slice %538 {offsets = [0, 0], sizes = [8, 32], strides = [1, 1]} : vector<8x128xf32> to vector<8x32xf32>
    %541 = vector.extract_strided_slice %538 {offsets = [0, 32], sizes = [8, 32], strides = [1, 1]} : vector<8x128xf32> to vector<8x32xf32>
    %542 = vector.extract_strided_slice %539 {offsets = [0, 64], sizes = [8, 32], strides = [1, 1]} : vector<8x128xf32> to vector<8x32xf32>
    %543 = vector.extract_strided_slice %538 {offsets = [0, 96], sizes = [8, 32], strides = [1, 1]} : vector<8x128xf32> to vector<8x32xf32>
    %544 = arith.mulf %541, %529 : vector<8x32xf32>
    %545 = arith.mulf %540, %542 : vector<8x32xf32>
    %546 = arith.addf %544, %545 : vector<8x32xf32>
    %547 = math.tanh %546 : vector<8x32xf32>
    %548 = arith.mulf %543, %547 : vector<8x32xf32>
    %c8_195 = arith.constant 8 : index
    %c0_196 = arith.constant 0 : index
    %549 = vector.load %arg9[%c8_195, %c0_196] : memref<64x128xf32, #tpu.memory_space<vmem>>, vector<8x128xf32>
    %550 = arith.truncf %548 : vector<8x32xf32> to vector<8x32xbf16>
    %cst_197 = arith.constant dense<0.000000e+00> : vector<8x128xf32>
    %551 = tpu.matmul %550, %527, %cst_197 {dimension_numbers = #tpu.dot_dimension_numbers<[1], [0], [0], [1], [0, 0, 1, 1], [], []>} : vector<8x32xbf16>, vector<32x128xbf16>, vector<8x128xf32> -> vector<8x128xf32>
    %552 = arith.addf %549, %551 : vector<8x128xf32>
    %553 = arith.negf %552 : vector<8x128xf32>
    %554 = math.exp %553 : vector<8x128xf32>
    %cst_198 = arith.constant 1.000000e+00 : f32
    %555 = vector.broadcast %cst_198 : f32 to vector<8x128xf32>
    %556 = arith.addf %555, %554 : vector<8x128xf32>
    %557 = arith.divf %555, %556 : vector<8x128xf32>
    %558 = math.tanh %552 : vector<8x128xf32>
    %559 = vector.extract_strided_slice %557 {offsets = [0, 0], sizes = [8, 32], strides = [1, 1]} : vector<8x128xf32> to vector<8x32xf32>
    %560 = vector.extract_strided_slice %557 {offsets = [0, 32], sizes = [8, 32], strides = [1, 1]} : vector<8x128xf32> to vector<8x32xf32>
    %561 = vector.extract_strided_slice %558 {offsets = [0, 64], sizes = [8, 32], strides = [1, 1]} : vector<8x128xf32> to vector<8x32xf32>
    %562 = vector.extract_strided_slice %557 {offsets = [0, 96], sizes = [8, 32], strides = [1, 1]} : vector<8x128xf32> to vector<8x32xf32>
    %563 = arith.mulf %560, %546 : vector<8x32xf32>
    %564 = arith.mulf %559, %561 : vector<8x32xf32>
    %565 = arith.addf %563, %564 : vector<8x32xf32>
    %566 = math.tanh %565 : vector<8x32xf32>
    %567 = arith.mulf %562, %566 : vector<8x32xf32>
    %c16_199 = arith.constant 16 : index
    %c0_200 = arith.constant 0 : index
    %568 = vector.load %arg9[%c16_199, %c0_200] : memref<64x128xf32, #tpu.memory_space<vmem>>, vector<8x128xf32>
    %569 = arith.truncf %567 : vector<8x32xf32> to vector<8x32xbf16>
    %cst_201 = arith.constant dense<0.000000e+00> : vector<8x128xf32>
    %570 = tpu.matmul %569, %527, %cst_201 {dimension_numbers = #tpu.dot_dimension_numbers<[1], [0], [0], [1], [0, 0, 1, 1], [], []>} : vector<8x32xbf16>, vector<32x128xbf16>, vector<8x128xf32> -> vector<8x128xf32>
    %571 = arith.addf %568, %570 : vector<8x128xf32>
    %572 = arith.negf %571 : vector<8x128xf32>
    %573 = math.exp %572 : vector<8x128xf32>
    %cst_202 = arith.constant 1.000000e+00 : f32
    %574 = vector.broadcast %cst_202 : f32 to vector<8x128xf32>
    %575 = arith.addf %574, %573 : vector<8x128xf32>
    %576 = arith.divf %574, %575 : vector<8x128xf32>
    %577 = math.tanh %571 : vector<8x128xf32>
    %578 = vector.extract_strided_slice %576 {offsets = [0, 0], sizes = [8, 32], strides = [1, 1]} : vector<8x128xf32> to vector<8x32xf32>
    %579 = vector.extract_strided_slice %576 {offsets = [0, 32], sizes = [8, 32], strides = [1, 1]} : vector<8x128xf32> to vector<8x32xf32>
    %580 = vector.extract_strided_slice %577 {offsets = [0, 64], sizes = [8, 32], strides = [1, 1]} : vector<8x128xf32> to vector<8x32xf32>
    %581 = vector.extract_strided_slice %576 {offsets = [0, 96], sizes = [8, 32], strides = [1, 1]} : vector<8x128xf32> to vector<8x32xf32>
    %582 = arith.mulf %579, %565 : vector<8x32xf32>
    %583 = arith.mulf %578, %580 : vector<8x32xf32>
    %584 = arith.addf %582, %583 : vector<8x32xf32>
    %585 = math.tanh %584 : vector<8x32xf32>
    %586 = arith.mulf %581, %585 : vector<8x32xf32>
    %c24_203 = arith.constant 24 : index
    %c0_204 = arith.constant 0 : index
    %587 = vector.load %arg9[%c24_203, %c0_204] : memref<64x128xf32, #tpu.memory_space<vmem>>, vector<8x128xf32>
    %588 = arith.truncf %586 : vector<8x32xf32> to vector<8x32xbf16>
    %cst_205 = arith.constant dense<0.000000e+00> : vector<8x128xf32>
    %589 = tpu.matmul %588, %527, %cst_205 {dimension_numbers = #tpu.dot_dimension_numbers<[1], [0], [0], [1], [0, 0, 1, 1], [], []>} : vector<8x32xbf16>, vector<32x128xbf16>, vector<8x128xf32> -> vector<8x128xf32>
    %590 = arith.addf %587, %589 : vector<8x128xf32>
    %591 = arith.negf %590 : vector<8x128xf32>
    %592 = math.exp %591 : vector<8x128xf32>
    %cst_206 = arith.constant 1.000000e+00 : f32
    %593 = vector.broadcast %cst_206 : f32 to vector<8x128xf32>
    %594 = arith.addf %593, %592 : vector<8x128xf32>
    %595 = arith.divf %593, %594 : vector<8x128xf32>
    %596 = math.tanh %590 : vector<8x128xf32>
    %597 = vector.extract_strided_slice %595 {offsets = [0, 0], sizes = [8, 32], strides = [1, 1]} : vector<8x128xf32> to vector<8x32xf32>
    %598 = vector.extract_strided_slice %595 {offsets = [0, 32], sizes = [8, 32], strides = [1, 1]} : vector<8x128xf32> to vector<8x32xf32>
    %599 = vector.extract_strided_slice %596 {offsets = [0, 64], sizes = [8, 32], strides = [1, 1]} : vector<8x128xf32> to vector<8x32xf32>
    %600 = vector.extract_strided_slice %595 {offsets = [0, 96], sizes = [8, 32], strides = [1, 1]} : vector<8x128xf32> to vector<8x32xf32>
    %601 = arith.mulf %598, %584 : vector<8x32xf32>
    %602 = arith.mulf %597, %599 : vector<8x32xf32>
    %603 = arith.addf %601, %602 : vector<8x32xf32>
    %604 = math.tanh %603 : vector<8x32xf32>
    %605 = arith.mulf %600, %604 : vector<8x32xf32>
    %c32_207 = arith.constant 32 : index
    %c0_208 = arith.constant 0 : index
    %606 = vector.load %arg9[%c32_207, %c0_208] : memref<64x128xf32, #tpu.memory_space<vmem>>, vector<8x128xf32>
    %607 = arith.truncf %605 : vector<8x32xf32> to vector<8x32xbf16>
    %cst_209 = arith.constant dense<0.000000e+00> : vector<8x128xf32>
    %608 = tpu.matmul %607, %527, %cst_209 {dimension_numbers = #tpu.dot_dimension_numbers<[1], [0], [0], [1], [0, 0, 1, 1], [], []>} : vector<8x32xbf16>, vector<32x128xbf16>, vector<8x128xf32> -> vector<8x128xf32>
    %609 = arith.addf %606, %608 : vector<8x128xf32>
    %610 = arith.negf %609 : vector<8x128xf32>
    %611 = math.exp %610 : vector<8x128xf32>
    %cst_210 = arith.constant 1.000000e+00 : f32
    %612 = vector.broadcast %cst_210 : f32 to vector<8x128xf32>
    %613 = arith.addf %612, %611 : vector<8x128xf32>
    %614 = arith.divf %612, %613 : vector<8x128xf32>
    %615 = math.tanh %609 : vector<8x128xf32>
    %616 = vector.extract_strided_slice %614 {offsets = [0, 0], sizes = [8, 32], strides = [1, 1]} : vector<8x128xf32> to vector<8x32xf32>
    %617 = vector.extract_strided_slice %614 {offsets = [0, 32], sizes = [8, 32], strides = [1, 1]} : vector<8x128xf32> to vector<8x32xf32>
    %618 = vector.extract_strided_slice %615 {offsets = [0, 64], sizes = [8, 32], strides = [1, 1]} : vector<8x128xf32> to vector<8x32xf32>
    %619 = vector.extract_strided_slice %614 {offsets = [0, 96], sizes = [8, 32], strides = [1, 1]} : vector<8x128xf32> to vector<8x32xf32>
    %620 = arith.mulf %617, %603 : vector<8x32xf32>
    %621 = arith.mulf %616, %618 : vector<8x32xf32>
    %622 = arith.addf %620, %621 : vector<8x32xf32>
    %623 = math.tanh %622 : vector<8x32xf32>
    %624 = arith.mulf %619, %623 : vector<8x32xf32>
    %c40_211 = arith.constant 40 : index
    %c0_212 = arith.constant 0 : index
    %625 = vector.load %arg9[%c40_211, %c0_212] : memref<64x128xf32, #tpu.memory_space<vmem>>, vector<8x128xf32>
    %626 = arith.truncf %624 : vector<8x32xf32> to vector<8x32xbf16>
    %cst_213 = arith.constant dense<0.000000e+00> : vector<8x128xf32>
    %627 = tpu.matmul %626, %527, %cst_213 {dimension_numbers = #tpu.dot_dimension_numbers<[1], [0], [0], [1], [0, 0, 1, 1], [], []>} : vector<8x32xbf16>, vector<32x128xbf16>, vector<8x128xf32> -> vector<8x128xf32>
    %628 = arith.addf %625, %627 : vector<8x128xf32>
    %629 = arith.negf %628 : vector<8x128xf32>
    %630 = math.exp %629 : vector<8x128xf32>
    %cst_214 = arith.constant 1.000000e+00 : f32
    %631 = vector.broadcast %cst_214 : f32 to vector<8x128xf32>
    %632 = arith.addf %631, %630 : vector<8x128xf32>
    %633 = arith.divf %631, %632 : vector<8x128xf32>
    %634 = math.tanh %628 : vector<8x128xf32>
    %635 = vector.extract_strided_slice %633 {offsets = [0, 0], sizes = [8, 32], strides = [1, 1]} : vector<8x128xf32> to vector<8x32xf32>
    %636 = vector.extract_strided_slice %633 {offsets = [0, 32], sizes = [8, 32], strides = [1, 1]} : vector<8x128xf32> to vector<8x32xf32>
    %637 = vector.extract_strided_slice %634 {offsets = [0, 64], sizes = [8, 32], strides = [1, 1]} : vector<8x128xf32> to vector<8x32xf32>
    %638 = vector.extract_strided_slice %633 {offsets = [0, 96], sizes = [8, 32], strides = [1, 1]} : vector<8x128xf32> to vector<8x32xf32>
    %639 = arith.mulf %636, %622 : vector<8x32xf32>
    %640 = arith.mulf %635, %637 : vector<8x32xf32>
    %641 = arith.addf %639, %640 : vector<8x32xf32>
    %642 = math.tanh %641 : vector<8x32xf32>
    %643 = arith.mulf %638, %642 : vector<8x32xf32>
    %c48_215 = arith.constant 48 : index
    %c0_216 = arith.constant 0 : index
    %644 = vector.load %arg9[%c48_215, %c0_216] : memref<64x128xf32, #tpu.memory_space<vmem>>, vector<8x128xf32>
    %645 = arith.truncf %643 : vector<8x32xf32> to vector<8x32xbf16>
    %cst_217 = arith.constant dense<0.000000e+00> : vector<8x128xf32>
    %646 = tpu.matmul %645, %527, %cst_217 {dimension_numbers = #tpu.dot_dimension_numbers<[1], [0], [0], [1], [0, 0, 1, 1], [], []>} : vector<8x32xbf16>, vector<32x128xbf16>, vector<8x128xf32> -> vector<8x128xf32>
    %647 = arith.addf %644, %646 : vector<8x128xf32>
    %648 = arith.negf %647 : vector<8x128xf32>
    %649 = math.exp %648 : vector<8x128xf32>
    %cst_218 = arith.constant 1.000000e+00 : f32
    %650 = vector.broadcast %cst_218 : f32 to vector<8x128xf32>
    %651 = arith.addf %650, %649 : vector<8x128xf32>
    %652 = arith.divf %650, %651 : vector<8x128xf32>
    %653 = math.tanh %647 : vector<8x128xf32>
    %654 = vector.extract_strided_slice %652 {offsets = [0, 0], sizes = [8, 32], strides = [1, 1]} : vector<8x128xf32> to vector<8x32xf32>
    %655 = vector.extract_strided_slice %652 {offsets = [0, 32], sizes = [8, 32], strides = [1, 1]} : vector<8x128xf32> to vector<8x32xf32>
    %656 = vector.extract_strided_slice %653 {offsets = [0, 64], sizes = [8, 32], strides = [1, 1]} : vector<8x128xf32> to vector<8x32xf32>
    %657 = vector.extract_strided_slice %652 {offsets = [0, 96], sizes = [8, 32], strides = [1, 1]} : vector<8x128xf32> to vector<8x32xf32>
    %658 = arith.mulf %655, %641 : vector<8x32xf32>
    %659 = arith.mulf %654, %656 : vector<8x32xf32>
    %660 = arith.addf %658, %659 : vector<8x32xf32>
    %661 = math.tanh %660 : vector<8x32xf32>
    %662 = arith.mulf %657, %661 : vector<8x32xf32>
    %c56_219 = arith.constant 56 : index
    %c0_220 = arith.constant 0 : index
    %663 = vector.load %arg9[%c56_219, %c0_220] : memref<64x128xf32, #tpu.memory_space<vmem>>, vector<8x128xf32>
    %664 = arith.truncf %662 : vector<8x32xf32> to vector<8x32xbf16>
    %cst_221 = arith.constant dense<0.000000e+00> : vector<8x128xf32>
    %665 = tpu.matmul %664, %527, %cst_221 {dimension_numbers = #tpu.dot_dimension_numbers<[1], [0], [0], [1], [0, 0, 1, 1], [], []>} : vector<8x32xbf16>, vector<32x128xbf16>, vector<8x128xf32> -> vector<8x128xf32>
    %666 = arith.addf %663, %665 : vector<8x128xf32>
    %667 = arith.negf %666 : vector<8x128xf32>
    %668 = math.exp %667 : vector<8x128xf32>
    %cst_222 = arith.constant 1.000000e+00 : f32
    %669 = vector.broadcast %cst_222 : f32 to vector<8x128xf32>
    %670 = arith.addf %669, %668 : vector<8x128xf32>
    %671 = arith.divf %669, %670 : vector<8x128xf32>
    %672 = math.tanh %666 : vector<8x128xf32>
    %673 = vector.extract_strided_slice %671 {offsets = [0, 0], sizes = [8, 32], strides = [1, 1]} : vector<8x128xf32> to vector<8x32xf32>
    %674 = vector.extract_strided_slice %671 {offsets = [0, 32], sizes = [8, 32], strides = [1, 1]} : vector<8x128xf32> to vector<8x32xf32>
    %675 = vector.extract_strided_slice %672 {offsets = [0, 64], sizes = [8, 32], strides = [1, 1]} : vector<8x128xf32> to vector<8x32xf32>
    %676 = vector.extract_strided_slice %671 {offsets = [0, 96], sizes = [8, 32], strides = [1, 1]} : vector<8x128xf32> to vector<8x32xf32>
    %677 = arith.mulf %674, %660 : vector<8x32xf32>
    %678 = arith.mulf %673, %675 : vector<8x32xf32>
    %679 = arith.addf %677, %678 : vector<8x32xf32>
    %680 = math.tanh %679 : vector<8x32xf32>
    %681 = arith.mulf %676, %680 : vector<8x32xf32>
    %682 = arith.truncf %681 : vector<8x32xf32> to vector<8x32xbf16>
    %c0_223 = arith.constant 0 : index
    %c0_224 = arith.constant 0 : index
    %683 = vector.load %arg5[%c0_223, %c0_224] : memref<32x128xbf16, #tpu.memory_space<vmem>>, vector<32x128xbf16>
    %cst_225 = arith.constant dense<0.000000e+00> : vector<8x128xf32>
    %684 = tpu.matmul %682, %683, %cst_225 {dimension_numbers = #tpu.dot_dimension_numbers<[1], [0], [0], [1], [0, 0, 1, 1], [], []>} : vector<8x32xbf16>, vector<32x128xbf16>, vector<8x128xf32> -> vector<8x128xf32>
    %c0_226 = arith.constant 0 : index
    %c0_227 = arith.constant 0 : index
    %685 = vector.load %arg6[%c0_226, %c0_227] : memref<1x128xf32, #tpu.memory_space<vmem>>, vector<1x128xf32>
    %686 = vector.broadcast %685 : vector<1x128xf32> to vector<8x128xf32>
    %687 = arith.addf %684, %686 : vector<8x128xf32>
    %c0_228 = arith.constant 0 : index
    %c0_229 = arith.constant 0 : index
    %688 = vector.load %arg7[%c0_228, %c0_229] : memref<8x128xf32, #tpu.memory_space<vmem>>, vector<8x128xf32>
    tpu.vector_store %arg7[%c0_228, %c0_229], %687 {strides = array<i32>} : memref<8x128xf32, #tpu.memory_space<vmem>>, vector<8x128xf32>,
    return
  }
}

</mosaic_0001>

<llo_original>
// kernel: tpu_custom_call.1
$region0: #{tpu_custom_call.1}
  #allocation0 [shape = 'u32[]', space=smem, size = 0x4, offset = 0x4, fixed_abs, tag = 'smem constant byte address 0x4 - core index']
  #allocation1 [shape = 'u32[72,128]{1,0:T(1,128)}', space=vmem, size = 0x9000, scoped, tag = 'internal scratch']
  #allocation2 [shape = 'f32[64,32]{1,0:T(8,128)}', space=vmem, size = 0x8000, scoped, tag = 'scratch operand']
  #allocation3 [shape = 'f32[64,128]{1,0:T(8,128)}', space=vmem, size = 0x8000, scoped, tag = 'scratch operand']
  %s0 = inlined_call_operand.vmem [shape: bf16[64,16], index: 0, kind: input, shape index: {}]
  %s1 = inlined_call_operand.vmem [shape: bf16[16,128], index: 1, kind: input, shape index: {}]
  %s2 = inlined_call_operand.hbm [shape: bf16[3,32,128], index: 2, kind: input, shape index: {}]
  %s3 = inlined_call_operand.hbm [shape: bf16[4,32,128], index: 3, kind: input, shape index: {}]
  %s4 = inlined_call_operand.vmem [shape: f32[4,128], index: 4, kind: input, shape index: {}]
  %s5 = inlined_call_operand.vmem [shape: bf16[32,128], index: 5, kind: input, shape index: {}]
  %s6 = inlined_call_operand.vmem [shape: f32[1,128], index: 6, kind: input, shape index: {}]
  %s7 = inlined_call_operand.hbm [shape: f32[8,128], index: 7, kind: output, shape index: {}]
  %s8 = sld [smem:[#allocation0]]
  $region46: #{tpu_custom_call.1} parent=0
    _
  %s10 = ssub.s32 1, %s8
  %s11 = scalar_select 0, %s10, %s8
  $region1: #{tpu_custom_call.1} parent=0
    #allocation4 [shape = 'u8[24576]{0}', space=vmem, size = 0x6000, scoped, tag = 'input window, operand 2, single buffered']
    #allocation5 [shape = 's32[1]{0}', space=sflag, size = 0x4, scoped, tag = 'scoped memory for tpu_custom_call.1']
    #allocation6 [shape = 's32[1]{0}', space=sflag, size = 0x4, scoped, tag = 'scoped memory for tpu_custom_call.1']
    #allocation7 [shape = 'u8[32768]{0}', space=vmem, size = 0x8000, scoped, tag = 'input window, operand 3, single buffered']
    #allocation8 [shape = 's32[1]{0}', space=sflag, size = 0x4, scoped, tag = 'scoped memory for tpu_custom_call.1']
    #allocation9 [shape = 'u8[4096]{0}', space=vmem, size = 0x1000, scoped, tag = 'output window, operand 0, single buffered']
    %12 = vsyncpa [#allocation5], 0
    %13 = vsyncpa [#allocation8], 0
    %14 = vsyncpa [#allocation6], 0
    // Predicated region
    $region2: #{tpu_custom_call.1} parent=1 // pred_check
      _
    $region3: #{tpu_custom_call.1} parent=1 // pred_check_branch
      %16 = sbr.rel (0) target = $region5
    $region4: #{tpu_custom_call.1} parent=1 // pred_region
      _
    $region5: #{tpu_custom_call.1} parent=1 // pred_fallthru
      _
    // Predicated region
    $region6: #{tpu_custom_call.1} parent=1 // pred_check
      _
    $region7: #{tpu_custom_call.1} parent=1 // pred_check_branch
      %18 = sbr.rel (0) target = $region9
    $region8: #{tpu_custom_call.1} parent=1 // pred_region
      _
    $region9: #{tpu_custom_call.1} parent=1 // pred_fallthru
      _
    // Predicated region
    $region10: #{tpu_custom_call.1} parent=1 // pred_check
      _
    $region11: #{tpu_custom_call.1} parent=1 // pred_check_branch
      %20 = sbr.rel (0) target = $region13
    $region12: #{tpu_custom_call.1} parent=1 // pred_region
      %22 = vsyncadd [#allocation5], 0
      %s23 = sshll.u32 %s2, 4
      %s24 = int_to_ptr.hbm [resolvable:$true] %s23
      %s25 = sshll.u32 [#allocation4], 4
      %s26 = int_to_ptr.vmem [resolvable:$true] %s25
      %31 = dma.hbm_to_vmem [thread:$0]  %s24, 768, %s26, [#allocation5], 64, 64, 4
    $region13: #{tpu_custom_call.1} parent=1 // pred_fallthru
      _
    // Predicated region
    $region14: #{tpu_custom_call.1} parent=1 // pred_check
      _
    $region15: #{tpu_custom_call.1} parent=1 // pred_check_branch
      %33 = sbr.rel (0) target = $region17
    $region16: #{tpu_custom_call.1} parent=1 // pred_region
      %35 = vsyncadd [#allocation8], 0
      %s36 = sshll.u32 %s3, 4
      %s37 = int_to_ptr.hbm [resolvable:$true] %s36
      %s38 = sshll.u32 [#allocation7], 4
      %s39 = int_to_ptr.vmem [resolvable:$true] %s38
      %44 = dma.hbm_to_vmem [thread:$0]  %s37, 1024, %s39, [#allocation8], 64, 64, 4
    $region17: #{tpu_custom_call.1} parent=1 // pred_fallthru
      _
    // Predicated region
    $region18: #{tpu_custom_call.1} parent=1 // pred_check
      _
    $region19: #{tpu_custom_call.1} parent=1 // pred_check_branch
      %46 = sbr.rel (0) target = $region21
    $region20: #{tpu_custom_call.1} parent=1 // pred_region
      _
    $region21: #{tpu_custom_call.1} parent=1 // pred_fallthru
      _
    // Predicated region
    $region22: #{tpu_custom_call.1} parent=1 // pred_check
      _
    $region23: #{tpu_custom_call.1} parent=1 // pred_check_branch
      %48 = sbr.rel (0) target = $region25
    $region24: #{tpu_custom_call.1} parent=1 // pred_region
      _
    $region25: #{tpu_custom_call.1} parent=1 // pred_fallthru
      _
    // Predicated region
    $region26: #{tpu_custom_call.1} parent=1 // pred_check
      _
    $region27: #{tpu_custom_call.1} parent=1 // pred_check_branch
      %50 = sbr.rel (0) target = $region29
    $region28: #{tpu_custom_call.1} parent=1 // pred_region
      _
    $region29: #{tpu_custom_call.1} parent=1 // pred_fallthru
      _
    // Predicated region
    $region30: #{tpu_custom_call.1} parent=1 // pred_check
      _
    $region31: #{tpu_custom_call.1} parent=1 // pred_check_branch
      %52 = sbr.rel (0) target = $region33
    $region32: #{tpu_custom_call.1} parent=1 // pred_region
      %54 = dma.done [#allocation5], 768
    $region33: #{tpu_custom_call.1} parent=1 // pred_fallthru
      _
    // Predicated region
    $region34: #{tpu_custom_call.1} parent=1 // pred_check
      _
    $region35: #{tpu_custom_call.1} parent=1 // pred_check_branch
      %56 = sbr.rel (0) target = $region37
    $region36: #{tpu_custom_call.1} parent=1 // pred_region
      %58 = dma.done [#allocation8], 1024
    $region37: #{tpu_custom_call.1} parent=1 // pred_fallthru
      _
    %v60 = vld [vmem:[%s0] sm:$0xf]
    %v61 = vld [vmem:[%s0 + $0x4] sm:$0xf]
    %v62 = vld [vmem:[%s0 + $0x8] sm:$0xf]
    %v63 = vld [vmem:[%s0 + $0xc] sm:$0xf]
    %v64 = vld [vmem:[%s0 + $0x10] sm:$0xf]
    %v65 = vld [vmem:[%s0 + $0x14] sm:$0xf]
    %v66 = vld [vmem:[%s0 + $0x18] sm:$0xf]
    %v67 = vld [vmem:[%s0 + $0x1c] sm:$0xf]
    %v68 = vld [vmem:[%s1] sm:$0xf]
    %v69 = vld [vmem:[%s1 + $0x4] sm:$0xf]
    %v70 = vld [vmem:[%s4] sm:$0x1]
    %v71 = vperm.slane %v70, 0
    %v80 = vunpack.c.l.b16 %v60
    %v81 = vunpack.c.l.b16 %v61
    %v82 = vunpack.c.l.b16 %v62
    %v83 = vunpack.c.l.b16 %v63
    %v84 = vunpack.c.l.b16 %v64
    %v85 = vunpack.c.l.b16 %v65
    %v86 = vunpack.c.l.b16 %v66
    %v87 = vunpack.c.l.b16 %v67
    %v88 = vpack.c.b16 %v81, %v80
    %v89 = vpack.c.b16 %v83, %v82
    %v90 = vpack.c.b16 %v85, %v84
    %v91 = vpack.c.b16 %v87, %v86
    %v94 = vunpack.c.l.b16 %v68
    %v95 = vunpack.c.l.b16 %v69
    %v96 = vpack.c.b16 %v95, %v94
    %vm98 = vcmask 130048
    %v100 = vsel %vm98, %v88, 0
    %v103 = vsel %vm98, %v89, 0
    %v106 = vsel %vm98, %v90, 0
    %v109 = vsel %vm98, %v91, 0
    %111 = vmatpush.bf16.msra.mxu0 0
    %112 = vmatpush.bf16.msra.mxu0 0
    %113 = vmatpush.bf16.msra.mxu0 0
    %114 = vmatpush.bf16.msra.mxu0 0
    %115 = vmatpush.bf16.msra.mxu0 0
    %116 = vmatpush.bf16.msra.mxu0 0
    %117 = vmatpush.bf16.msra.mxu0 0
    %118 = vmatpush.bf16.msra.mxu0 %v96
    %119 = vmatmul.bf16.gmra.mxu0 %v100
    %v120 = vpop.f32.mrf.mxu0
    %v121 = vadd.f32 %v71, %v120
    %v122 = vpop.f32.mrf.mxu0
    %v123 = vadd.f32 %v71, %v122
    %124 = vmatmul.bf16.gmra.mxu0 %v103
    %v125 = vpop.f32.mrf.mxu0
    %v126 = vadd.f32 %v71, %v125
    %v127 = vpop.f32.mrf.mxu0
    %v128 = vadd.f32 %v71, %v127
    %129 = vmatmul.bf16.gmra.mxu0 %v106
    %v130 = vpop.f32.mrf.mxu0
    %v131 = vadd.f32 %v71, %v130
    %v132 = vpop.f32.mrf.mxu0
    %v133 = vadd.f32 %v71, %v132
    %134 = vmatmul.bf16.gmra.mxu0 %v109
    %v135 = vpop.f32.mrf.mxu0
    %v136 = vadd.f32 %v71, %v135
    %v137 = vpop.f32.mrf.mxu0
    %v138 = vadd.f32 %v71, %v137
    %139 = vdwg.mxu0
    %140 = vst [vmem:[#allocation3] sm:$0xff] %v121
    %141 = vst [vmem:[#allocation3 + $0x8] sm:$0xff] %v123
    %142 = vst [vmem:[#allocation3 + $0x10] sm:$0xff] %v126
    %143 = vst [vmem:[#allocation3 + $0x18] sm:$0xff] %v128
    %144 = vst [vmem:[#allocation3 + $0x20] sm:$0xff] %v131
    %145 = vst [vmem:[#allocation3 + $0x28] sm:$0xff] %v133
    %146 = vst [vmem:[#allocation3 + $0x30] sm:$0xff] %v136
    %147 = vst [vmem:[#allocation3 + $0x38] sm:$0xff] %v138
    %v148 = vld [vmem:[#allocation7] sm:$0xf]
    %v149 = vld [vmem:[#allocation7 + $0x4] sm:$0xf]
    %v150 = vld [vmem:[#allocation7 + $0x8] sm:$0xf]
    %v151 = vld [vmem:[#allocation7 + $0xc] sm:$0xf]
    %v152 = vld [vmem:[#allocation3] sm:$0xff]
    %v157 = vunpack.c.l.b16 %v148
    %v158 = vunpack.c.l.b16 %v149
    %v159 = vunpack.c.l.b16 %v150
    %v160 = vunpack.c.l.b16 %v151
    %v161 = vpack.c.b16 %v158, %v157
    %v162 = vpack.c.b16 %v160, %v159
    %vm165 = vcmask 261120
    %v167 = vsel %vm165, 0, 0
    %169 = vmatpush.bf16.msra.mxu0 0
    %170 = vmatpush.bf16.msra.mxu0 0
    %171 = vmatpush.bf16.msra.mxu0 0
    %172 = vmatpush.bf16.msra.mxu0 0
    %173 = vmatpush.bf16.msra.mxu0 0
    %174 = vmatpush.bf16.msra.mxu0 0
    %175 = vmatpush.bf16.msra.mxu0 %v162
    %176 = vmatpush.bf16.msra.mxu0 %v161
    %177 = vmatmul.bf16.gmra.mxu0 %v167
    %v178 = vpop.f32.mrf.mxu0
    %v179 = vadd.f32 0.0, %v178
    %v180 = vpop.f32.mrf.mxu0
    %181 = vdwg.mxu0
    %v182 = vadd.f32 %v152, %v179
    %v183 = vxor.u32 %v182, 2147483648
    %v184 = vmul.f32 %v183, 1.442695
    %v185 = vpow.pop %v184
    %v186 = vadd.f32 %v185, 1.0
    %v187 = vrcp.pop %v186
    %v188 = vmul.f32 %v186, %v187
    %v189 = vsub.f32 1.0, %v188
    %v190 = vmul.f32 %v187, %v189
    %v191 = vadd.f32 %v187, %v190
    %vm192 = vweird.f32 %v186
    %vm193 = vweird.f32 %v187
    %vm194 = vmor %vm192, %vm193
    %v195 = vsel %vm194, %v187, %v191
    %v196 = vand.u32 2147483647, %v186
    %vm197 = vcmp.eq.f32.partialorder %v196, 8.507059e+37
    %v198 = vand.u32 %v186, 2147483648
    %v199 = vor.u32 1.1754944e-38, %v198
    %v200 = vsel %vm197, %v199, %v195
    %v201 = vmul.f32 1.0, %v200
    %v202 = vtanh.pop %v182
    %v203 = vmul.f32 %v201, 0.0
    %205 = vrot.lane.b32.xlu0 %v202, 64
    %v206 = vpop.permute.xlu0 %205
    %v208 = vmul.f32 %v201, %v206
    %210 = vrot.lane.b32.xlu0 %v208, 32
    %v211 = vpop.permute.xlu0 %210
    %v213 = vadd.f32 %v203, %v211
    %v214 = vtanh.pop %v213
    %216 = vrot.lane.b32.xlu0 %v214, 64
    %v217 = vpop.permute.xlu0 %216
    %v219 = vmul.f32 %v201, %v217
    %221 = vrot.lane.b32.xlu0 %v219, 32
    %v222 = vpop.permute.xlu0 %221
    %224 = vst.msk [vmem:[#allocation2] sm:$0xff] %vm165, %v222
    %v225 = vld [vmem:[#allocation3 + $0x8] sm:$0xff]
    %v226 = vpack.c.bf16 %v219, %v219
    %228 = vrot.lane.b32.xlu0 %v226, 32
    %v229 = vpop.permute.xlu0 %228
    %v231 = vsel %vm165, %v229, 0
    %233 = vmatpush.bf16.msra.mxu0 0
    %234 = vmatpush.bf16.msra.mxu0 0
    %235 = vmatpush.bf16.msra.mxu0 0
    %236 = vmatpush.bf16.msra.mxu0 0
    %237 = vmatpush.bf16.msra.mxu0 0
    %238 = vmatpush.bf16.msra.mxu0 0
    %239 = vmatpush.bf16.msra.mxu0 %v162
    %240 = vmatpush.bf16.msra.mxu0 %v161
    %241 = vmatmul.bf16.gmra.mxu0 %v231
    %v242 = vpop.f32.mrf.mxu0
    %v243 = vadd.f32 0.0, %v242
    %v244 = vpop.f32.mrf.mxu0
    %245 = vdwg.mxu0
    %v246 = vadd.f32 %v225, %v243
    %v247 = vxor.u32 %v246, 2147483648
    %v248 = vmul.f32 %v247, 1.442695
    %v249 = vpow.pop %v248
    %v250 = vadd.f32 %v249, 1.0
    %v251 = vrcp.pop %v250
    %v252 = vmul.f32 %v250, %v251
    %v253 = vsub.f32 1.0, %v252
    %v254 = vmul.f32 %v251, %v253
    %v255 = vadd.f32 %v251, %v254
    %vm256 = vweird.f32 %v250
    %vm257 = vweird.f32 %v251
    %vm258 = vmor %vm256, %vm257
    %v259 = vsel %vm258, %v251, %v255
    %v260 = vand.u32 2147483647, %v250
    %vm261 = vcmp.eq.f32.partialorder %v260, 8.507059e+37
    %v262 = vand.u32 %v250, 2147483648
    %v263 = vor.u32 1.1754944e-38, %v262
    %v264 = vsel %vm261, %v263, %v259
    %v265 = vmul.f32 1.0, %v264
    %v266 = vtanh.pop %v246
    %v267 = vmul.f32 %v265, %v213
    %269 = vrot.lane.b32.xlu0 %v266, 64
    %v270 = vpop.permute.xlu0 %269
    %v272 = vmul.f32 %v265, %v270
    %274 = vrot.lane.b32.xlu0 %v272, 32
    %v275 = vpop.permute.xlu0 %274
    %v277 = vadd.f32 %v267, %v275
    %v278 = vtanh.pop %v277
    %280 = vrot.lane.b32.xlu0 %v278, 64
    %v281 = vpop.permute.xlu0 %280
    %v283 = vmul.f32 %v265, %v281
    %285 = vrot.lane.b32.xlu0 %v283, 32
    %v286 = vpop.permute.xlu0 %285
    %288 = vst.msk [vmem:[#allocation2 + $0x8] sm:$0xff] %vm165, %v286
    %v289 = vld [vmem:[#allocation3 + $0x10] sm:$0xff]
    %v290 = vpack.c.bf16 %v283, %v283
    %292 = vrot.lane.b32.xlu0 %v290, 32
    %v293 = vpop.permute.xlu0 %292
    %v295 = vsel %vm165, %v293, 0
    %297 = vmatpush.bf16.msra.mxu0 0
    %298 = vmatpush.bf16.msra.mxu0 0
    %299 = vmatpush.bf16.msra.mxu0 0
    %300 = vmatpush.bf16.msra.mxu0 0
    %301 = vmatpush.bf16.msra.mxu0 0
    %302 = vmatpush.bf16.msra.mxu0 0
    %303 = vmatpush.bf16.msra.mxu0 %v162
    %304 = vmatpush.bf16.msra.mxu0 %v161
    %305 = vmatmul.bf16.gmra.mxu0 %v295
    %v306 = vpop.f32.mrf.mxu0
    %v307 = vadd.f32 0.0, %v306
    %v308 = vpop.f32.mrf.mxu0
    %309 = vdwg.mxu0
    %v310 = vadd.f32 %v289, %v307
    %v311 = vxor.u32 %v310, 2147483648
    %v312 = vmul.f32 %v311, 1.442695
    %v313 = vpow.pop %v312
    %v314 = vadd.f32 %v313, 1.0
    %v315 = vrcp.pop %v314
    %v316 = vmul.f32 %v314, %v315
    %v317 = vsub.f32 1.0, %v316
    %v318 = vmul.f32 %v315, %v317
    %v319 = vadd.f32 %v315, %v318
    %vm320 = vweird.f32 %v314
    %vm321 = vweird.f32 %v315
    %vm322 = vmor %vm320, %vm321
    %v323 = vsel %vm322, %v315, %v319
    %v324 = vand.u32 2147483647, %v314
    %vm325 = vcmp.eq.f32.partialorder %v324, 8.507059e+37
    %v326 = vand.u32 %v314, 2147483648
    %v327 = vor.u32 1.1754944e-38, %v326
    %v328 = vsel %vm325, %v327, %v323
    %v329 = vmul.f32 1.0, %v328
    %v330 = vtanh.pop %v310
    %v331 = vmul.f32 %v329, %v277
    %333 = vrot.lane.b32.xlu0 %v330, 64
    %v334 = vpop.permute.xlu0 %333
    %v336 = vmul.f32 %v329, %v334
    %338 = vrot.lane.b32.xlu0 %v336, 32
    %v339 = vpop.permute.xlu0 %338
    %v341 = vadd.f32 %v331, %v339
    %v342 = vtanh.pop %v341
    %344 = vrot.lane.b32.xlu0 %v342, 64
    %v345 = vpop.permute.xlu0 %344
    %v347 = vmul.f32 %v329, %v345
    %349 = vrot.lane.b32.xlu0 %v347, 32
    %v350 = vpop.permute.xlu0 %349
    %352 = vst.msk [vmem:[#allocation2 + $0x10] sm:$0xff] %vm165, %v350
    %v353 = vld [vmem:[#allocation3 + $0x18] sm:$0xff]
    %v354 = vpack.c.bf16 %v347, %v347
    %356 = vrot.lane.b32.xlu0 %v354, 32
    %v357 = vpop.permute.xlu0 %356
    %v359 = vsel %vm165, %v357, 0
    %361 = vmatpush.bf16.msra.mxu0 0
    %362 = vmatpush.bf16.msra.mxu0 0
    %363 = vmatpush.bf16.msra.mxu0 0
    %364 = vmatpush.bf16.msra.mxu0 0
    %365 = vmatpush.bf16.msra.mxu0 0
    %366 = vmatpush.bf16.msra.mxu0 0
    %367 = vmatpush.bf16.msra.mxu0 %v162
    %368 = vmatpush.bf16.msra.mxu0 %v161
    %369 = vmatmul.bf16.gmra.mxu0 %v359
    %v370 = vpop.f32.mrf.mxu0
    %v371 = vadd.f32 0.0, %v370
    %v372 = vpop.f32.mrf.mxu0
    %373 = vdwg.mxu0
    %v374 = vadd.f32 %v353, %v371
    %v375 = vxor.u32 %v374, 2147483648
    %v376 = vmul.f32 %v375, 1.442695
    %v377 = vpow.pop %v376
    %v378 = vadd.f32 %v377, 1.0
    %v379 = vrcp.pop %v378
    %v380 = vmul.f32 %v378, %v379
    %v381 = vsub.f32 1.0, %v380
    %v382 = vmul.f32 %v379, %v381
    %v383 = vadd.f32 %v379, %v382
    %vm384 = vweird.f32 %v378
    %vm385 = vweird.f32 %v379
    %vm386 = vmor %vm384, %vm385
    %v387 = vsel %vm386, %v379, %v383
    %v388 = vand.u32 2147483647, %v378
    %vm389 = vcmp.eq.f32.partialorder %v388, 8.507059e+37
    %v390 = vand.u32 %v378, 2147483648
    %v391 = vor.u32 1.1754944e-38, %v390
    %v392 = vsel %vm389, %v391, %v387
    %v393 = vmul.f32 1.0, %v392
    %v394 = vtanh.pop %v374
    %v395 = vmul.f32 %v393, %v341
    %397 = vrot.lane.b32.xlu0 %v394, 64
    %v398 = vpop.permute.xlu0 %397
    %v400 = vmul.f32 %v393, %v398
    %402 = vrot.lane.b32.xlu0 %v400, 32
    %v403 = vpop.permute.xlu0 %402
    %v405 = vadd.f32 %v395, %v403
    %v406 = vtanh.pop %v405
    %408 = vrot.lane.b32.xlu0 %v406, 64
    %v409 = vpop.permute.xlu0 %408
    %v411 = vmul.f32 %v393, %v409
    %413 = vrot.lane.b32.xlu0 %v411, 32
    %v414 = vpop.permute.xlu0 %413
    %416 = vst.msk [vmem:[#allocation2 + $0x18] sm:$0xff] %vm165, %v414
    %v417 = vld [vmem:[#allocation3 + $0x20] sm:$0xff]
    %v418 = vpack.c.bf16 %v411, %v411
    %420 = vrot.lane.b32.xlu0 %v418, 32
    %v421 = vpop.permute.xlu0 %420
    %v423 = vsel %vm165, %v421, 0
    %425 = vmatpush.bf16.msra.mxu0 0
    %426 = vmatpush.bf16.msra.mxu0 0
    %427 = vmatpush.bf16.msra.mxu0 0
    %428 = vmatpush.bf16.msra.mxu0 0
    %429 = vmatpush.bf16.msra.mxu0 0
    %430 = vmatpush.bf16.msra.mxu0 0
    %431 = vmatpush.bf16.msra.mxu0 %v162
    %432 = vmatpush.bf16.msra.mxu0 %v161
    %433 = vmatmul.bf16.gmra.mxu0 %v423
    %v434 = vpop.f32.mrf.mxu0
    %v435 = vadd.f32 0.0, %v434
    %v436 = vpop.f32.mrf.mxu0
    %437 = vdwg.mxu0
    %v438 = vadd.f32 %v417, %v435
    %v439 = vxor.u32 %v438, 2147483648
    %v440 = vmul.f32 %v439, 1.442695
    %v441 = vpow.pop %v440
    %v442 = vadd.f32 %v441, 1.0
    %v443 = vrcp.pop %v442
    %v444 = vmul.f32 %v442, %v443
    %v445 = vsub.f32 1.0, %v444
    %v446 = vmul.f32 %v443, %v445
    %v447 = vadd.f32 %v443, %v446
    %vm448 = vweird.f32 %v442
    %vm449 = vweird.f32 %v443
    %vm450 = vmor %vm448, %vm449
    %v451 = vsel %vm450, %v443, %v447
    %v452 = vand.u32 2147483647, %v442
    %vm453 = vcmp.eq.f32.partialorder %v452, 8.507059e+37
    %v454 = vand.u32 %v442, 2147483648
    %v455 = vor.u32 1.1754944e-38, %v454
    %v456 = vsel %vm453, %v455, %v451
    %v457 = vmul.f32 1.0, %v456
    %v458 = vtanh.pop %v438
    %v459 = vmul.f32 %v457, %v405
    %461 = vrot.lane.b32.xlu0 %v458, 64
    %v462 = vpop.permute.xlu0 %461
    %v464 = vmul.f32 %v457, %v462
    %466 = vrot.lane.b32.xlu0 %v464, 32
    %v467 = vpop.permute.xlu0 %466
    %v469 = vadd.f32 %v459, %v467
    %v470 = vtanh.pop %v469
    %472 = vrot.lane.b32.xlu0 %v470, 64
    %v473 = vpop.permute.xlu0 %472
    %v475 = vmul.f32 %v457, %v473
    %477 = vrot.lane.b32.xlu0 %v475, 32
    %v478 = vpop.permute.xlu0 %477
    %480 = vst.msk [vmem:[#allocation2 + $0x20] sm:$0xff] %vm165, %v478
    %v481 = vld [vmem:[#allocation3 + $0x28] sm:$0xff]
    %v482 = vpack.c.bf16 %v475, %v475
    %484 = vrot.lane.b32.xlu0 %v482, 32
    %v485 = vpop.permute.xlu0 %484
    %v487 = vsel %vm165, %v485, 0
    %489 = vmatpush.bf16.msra.mxu0 0
    %490 = vmatpush.bf16.msra.mxu0 0
    %491 = vmatpush.bf16.msra.mxu0 0
    %492 = vmatpush.bf16.msra.mxu0 0
    %493 = vmatpush.bf16.msra.mxu0 0
    %494 = vmatpush.bf16.msra.mxu0 0
    %495 = vmatpush.bf16.msra.mxu0 %v162
    %496 = vmatpush.bf16.msra.mxu0 %v161
    %497 = vmatmul.bf16.gmra.mxu0 %v487
    %v498 = vpop.f32.mrf.mxu0
    %v499 = vadd.f32 0.0, %v498
    %v500 = vpop.f32.mrf.mxu0
    %501 = vdwg.mxu0
    %v502 = vadd.f32 %v481, %v499
    %v503 = vxor.u32 %v502, 2147483648
    %v504 = vmul.f32 %v503, 1.442695
    %v505 = vpow.pop %v504
    %v506 = vadd.f32 %v505, 1.0
    %v507 = vrcp.pop %v506
    %v508 = vmul.f32 %v506, %v507
    %v509 = vsub.f32 1.0, %v508
    %v510 = vmul.f32 %v507, %v509
    %v511 = vadd.f32 %v507, %v510
    %vm512 = vweird.f32 %v506
    %vm513 = vweird.f32 %v507
    %vm514 = vmor %vm512, %vm513
    %v515 = vsel %vm514, %v507, %v511
    %v516 = vand.u32 2147483647, %v506
    %vm517 = vcmp.eq.f32.partialorder %v516, 8.507059e+37
    %v518 = vand.u32 %v506, 2147483648
    %v519 = vor.u32 1.1754944e-38, %v518
    %v520 = vsel %vm517, %v519, %v515
    %v521 = vmul.f32 1.0, %v520
    %v522 = vtanh.pop %v502
    %v523 = vmul.f32 %v521, %v469
    %525 = vrot.lane.b32.xlu0 %v522, 64
    %v526 = vpop.permute.xlu0 %525
    %v528 = vmul.f32 %v521, %v526
    %530 = vrot.lane.b32.xlu0 %v528, 32
    %v531 = vpop.permute.xlu0 %530
    %v533 = vadd.f32 %v523, %v531
    %v534 = vtanh.pop %v533
    %536 = vrot.lane.b32.xlu0 %v534, 64
    %v537 = vpop.permute.xlu0 %536
    %v539 = vmul.f32 %v521, %v537
    %541 = vrot.lane.b32.xlu0 %v539, 32
    %v542 = vpop.permute.xlu0 %541
    %544 = vst.msk [vmem:[#allocation2 + $0x28] sm:$0xff] %vm165, %v542
    %v545 = vld [vmem:[#allocation3 + $0x30] sm:$0xff]
    %v546 = vpack.c.bf16 %v539, %v539
    %548 = vrot.lane.b32.xlu0 %v546, 32
    %v549 = vpop.permute.xlu0 %548
    %v551 = vsel %vm165, %v549, 0
    %553 = vmatpush.bf16.msra.mxu0 0
    %554 = vmatpush.bf16.msra.mxu0 0
    %555 = vmatpush.bf16.msra.mxu0 0
    %556 = vmatpush.bf16.msra.mxu0 0
    %557 = vmatpush.bf16.msra.mxu0 0
    %558 = vmatpush.bf16.msra.mxu0 0
    %559 = vmatpush.bf16.msra.mxu0 %v162
    %560 = vmatpush.bf16.msra.mxu0 %v161
    %561 = vmatmul.bf16.gmra.mxu0 %v551
    %v562 = vpop.f32.mrf.mxu0
    %v563 = vadd.f32 0.0, %v562
    %v564 = vpop.f32.mrf.mxu0
    %565 = vdwg.mxu0
    %v566 = vadd.f32 %v545, %v563
    %v567 = vxor.u32 %v566, 2147483648
    %v568 = vmul.f32 %v567, 1.442695
    %v569 = vpow.pop %v568
    %v570 = vadd.f32 %v569, 1.0
    %v571 = vrcp.pop %v570
    %v572 = vmul.f32 %v570, %v571
    %v573 = vsub.f32 1.0, %v572
    %v574 = vmul.f32 %v571, %v573
    %v575 = vadd.f32 %v571, %v574
    %vm576 = vweird.f32 %v570
    %vm577 = vweird.f32 %v571
    %vm578 = vmor %vm576, %vm577
    %v579 = vsel %vm578, %v571, %v575
    %v580 = vand.u32 2147483647, %v570
    %vm581 = vcmp.eq.f32.partialorder %v580, 8.507059e+37
    %v582 = vand.u32 %v570, 2147483648
    %v583 = vor.u32 1.1754944e-38, %v582
    %v584 = vsel %vm581, %v583, %v579
    %v585 = vmul.f32 1.0, %v584
    %v586 = vtanh.pop %v566
    %v587 = vmul.f32 %v585, %v533
    %589 = vrot.lane.b32.xlu0 %v586, 64
    %v590 = vpop.permute.xlu0 %589
    %v592 = vmul.f32 %v585, %v590
    %594 = vrot.lane.b32.xlu0 %v592, 32
    %v595 = vpop.permute.xlu0 %594
    %v597 = vadd.f32 %v587, %v595
    %v598 = vtanh.pop %v597
    %600 = vrot.lane.b32.xlu0 %v598, 64
    %v601 = vpop.permute.xlu0 %600
    %v603 = vmul.f32 %v585, %v601
    %605 = vrot.lane.b32.xlu0 %v603, 32
    %v606 = vpop.permute.xlu0 %605
    %608 = vst.msk [vmem:[#allocation2 + $0x30] sm:$0xff] %vm165, %v606
    %v609 = vld [vmem:[#allocation3 + $0x38] sm:$0xff]
    %v610 = vpack.c.bf16 %v603, %v603
    %612 = vrot.lane.b32.xlu0 %v610, 32
    %v613 = vpop.permute.xlu0 %612
    %v615 = vsel %vm165, %v613, 0
    %617 = vmatpush.bf16.msra.mxu0 0
    %618 = vmatpush.bf16.msra.mxu0 0
    %619 = vmatpush.bf16.msra.mxu0 0
    %620 = vmatpush.bf16.msra.mxu0 0
    %621 = vmatpush.bf16.msra.mxu0 0
    %622 = vmatpush.bf16.msra.mxu0 0
    %623 = vmatpush.bf16.msra.mxu0 %v162
    %624 = vmatpush.bf16.msra.mxu0 %v161
    %625 = vmatmul.bf16.gmra.mxu0 %v615
    %v626 = vpop.f32.mrf.mxu0
    %v627 = vadd.f32 0.0, %v626
    %v628 = vpop.f32.mrf.mxu0
    %629 = vdwg.mxu0
    %v630 = vadd.f32 %v609, %v627
    %v631 = vxor.u32 %v630, 2147483648
    %v632 = vmul.f32 %v631, 1.442695
    %v633 = vpow.pop %v632
    %v634 = vadd.f32 %v633, 1.0
    %v635 = vrcp.pop %v634
    %v636 = vmul.f32 %v634, %v635
    %v637 = vsub.f32 1.0, %v636
    %v638 = vmul.f32 %v635, %v637
    %v639 = vadd.f32 %v635, %v638
    %vm640 = vweird.f32 %v634
    %vm641 = vweird.f32 %v635
    %vm642 = vmor %vm640, %vm641
    %v643 = vsel %vm642, %v635, %v639
    %v644 = vand.u32 2147483647, %v634
    %vm645 = vcmp.eq.f32.partialorder %v644, 8.507059e+37
    %v646 = vand.u32 %v634, 2147483648
    %v647 = vor.u32 1.1754944e-38, %v646
    %v648 = vsel %vm645, %v647, %v643
    %v649 = vmul.f32 1.0, %v648
    %v650 = vtanh.pop %v630
    %v651 = vmul.f32 %v649, %v597
    %653 = vrot.lane.b32.xlu0 %v650, 64
    %v654 = vpop.permute.xlu0 %653
    %v656 = vmul.f32 %v649, %v654
    %658 = vrot.lane.b32.xlu0 %v656, 32
    %v659 = vpop.permute.xlu0 %658
    %v661 = vadd.f32 %v651, %v659
    %v662 = vtanh.pop %v661
    %664 = vrot.lane.b32.xlu0 %v662, 64
    %v665 = vpop.permute.xlu0 %664
    %v667 = vmul.f32 %v649, %v665
    %669 = vrot.lane.b32.xlu0 %v667, 32
    %v670 = vpop.permute.xlu0 %669
    %672 = vst.msk [vmem:[#allocation2 + $0x38] sm:$0xff] %vm165, %v670
    %v673 = vld [vmem:[#allocation2] sm:$0xff]
    %v674 = vld [vmem:[#allocation2 + $0x8] sm:$0xff]
    %v675 = vld [vmem:[#allocation2 + $0x10] sm:$0xff]
    %v676 = vld [vmem:[#allocation2 + $0x18] sm:$0xff]
    %v677 = vld [vmem:[#allocation2 + $0x20] sm:$0xff]
    %v678 = vld [vmem:[#allocation2 + $0x28] sm:$0xff]
    %v679 = vld [vmem:[#allocation2 + $0x30] sm:$0xff]
    %v680 = vld [vmem:[#allocation2 + $0x38] sm:$0xff]
    %v681 = vpack.c.bf16 %v674, %v673
    %v682 = vpack.c.bf16 %v676, %v675
    %v683 = vpack.c.bf16 %v678, %v677
    %v684 = vpack.c.bf16 %v680, %v679
    %v685 = vld [vmem:[#allocation4] sm:$0xf]
    %v686 = vld [vmem:[#allocation4 + $0x4] sm:$0xf]
    %v687 = vld [vmem:[#allocation4 + $0x8] sm:$0xf]
    %v688 = vld [vmem:[#allocation4 + $0xc] sm:$0xf]
    %v689 = vld [vmem:[%s4 + $0x1] sm:$0x1]
    %v690 = vperm.slane %v689, 0
    %v695 = vunpack.c.l.b16 %v685
    %v696 = vunpack.c.l.b16 %v686
    %v697 = vunpack.c.l.b16 %v687
    %v698 = vunpack.c.l.b16 %v688
    %v699 = vpack.c.b16 %v696, %v695
    %v700 = vpack.c.b16 %v698, %v697
    %v704 = vsel %vm165, %v681, 0
    %v707 = vsel %vm165, %v682, 0
    %v710 = vsel %vm165, %v683, 0
    %v713 = vsel %vm165, %v684, 0
    %715 = vmatpush.bf16.msra.mxu0 0
    %716 = vmatpush.bf16.msra.mxu0 0
    %717 = vmatpush.bf16.msra.mxu0 0
    %718 = vmatpush.bf16.msra.mxu0 0
    %719 = vmatpush.bf16.msra.mxu0 0
    %720 = vmatpush.bf16.msra.mxu0 0
    %721 = vmatpush.bf16.msra.mxu0 %v700
    %722 = vmatpush.bf16.msra.mxu0 %v699
    %723 = vmatmul.bf16.gmra.mxu0 %v704
    %v724 = vpop.f32.mrf.mxu0
    %v725 = vadd.f32 %v690, %v724
    %v726 = vpop.f32.mrf.mxu0
    %v727 = vadd.f32 %v690, %v726
    %728 = vmatmul.bf16.gmra.mxu0 %v707
    %v729 = vpop.f32.mrf.mxu0
    %v730 = vadd.f32 %v690, %v729
    %v731 = vpop.f32.mrf.mxu0
    %v732 = vadd.f32 %v690, %v731
    %733 = vmatmul.bf16.gmra.mxu0 %v710
    %v734 = vpop.f32.mrf.mxu0
    %v735 = vadd.f32 %v690, %v734
    %v736 = vpop.f32.mrf.mxu0
    %v737 = vadd.f32 %v690, %v736
    %738 = vmatmul.bf16.gmra.mxu0 %v713
    %v739 = vpop.f32.mrf.mxu0
    %v740 = vadd.f32 %v690, %v739
    %v741 = vpop.f32.mrf.mxu0
    %v742 = vadd.f32 %v690, %v741
    %743 = vdwg.mxu0
    %744 = vst [vmem:[#allocation3] sm:$0xff] %v725
    %745 = vst [vmem:[#allocation3 + $0x8] sm:$0xff] %v727
    %746 = vst [vmem:[#allocation3 + $0x10] sm:$0xff] %v730
    %747 = vst [vmem:[#allocation3 + $0x18] sm:$0xff] %v732
    %748 = vst [vmem:[#allocation3 + $0x20] sm:$0xff] %v735
    %749 = vst [vmem:[#allocation3 + $0x28] sm:$0xff] %v737
    %750 = vst [vmem:[#allocation3 + $0x30] sm:$0xff] %v740
    %751 = vst [vmem:[#allocation3 + $0x38] sm:$0xff] %v742
    %s752 = scalar_lea.vmem [#allocation7], 16
    %v753 = vld [vmem:[%s752] sm:$0xf]
    %v754 = vld [vmem:[%s752 + $0x4] sm:$0xf]
    %v755 = vld [vmem:[%s752 + $0x8] sm:$0xf]
    %v756 = vld [vmem:[%s752 + $0xc] sm:$0xf]
    %v757 = vld [vmem:[#allocation3] sm:$0xff]
    %v762 = vunpack.c.l.b16 %v753
    %v763 = vunpack.c.l.b16 %v754
    %v764 = vunpack.c.l.b16 %v755
    %v765 = vunpack.c.l.b16 %v756
    %v766 = vpack.c.b16 %v763, %v762
    %v767 = vpack.c.b16 %v765, %v764
    %770 = vmatpush.bf16.msra.mxu0 0
    %771 = vmatpush.bf16.msra.mxu0 0
    %772 = vmatpush.bf16.msra.mxu0 0
    %773 = vmatpush.bf16.msra.mxu0 0
    %774 = vmatpush.bf16.msra.mxu0 0
    %775 = vmatpush.bf16.msra.mxu0 0
    %776 = vmatpush.bf16.msra.mxu0 %v767
    %777 = vmatpush.bf16.msra.mxu0 %v766
    %778 = vmatmul.bf16.gmra.mxu0 %v167
    %v779 = vpop.f32.mrf.mxu0
    %v780 = vadd.f32 0.0, %v779
    %v781 = vpop.f32.mrf.mxu0
    %782 = vdwg.mxu0
    %v783 = vadd.f32 %v757, %v780
    %v784 = vxor.u32 %v783, 2147483648
    %v785 = vmul.f32 %v784, 1.442695
    %v786 = vpow.pop %v785
    %v787 = vadd.f32 %v786, 1.0
    %v788 = vrcp.pop %v787
    %v789 = vmul.f32 %v787, %v788
    %v790 = vsub.f32 1.0, %v789
    %v791 = vmul.f32 %v788, %v790
    %v792 = vadd.f32 %v788, %v791
    %vm793 = vweird.f32 %v787
    %vm794 = vweird.f32 %v788
    %vm795 = vmor %vm793, %vm794
    %v796 = vsel %vm795, %v788, %v792
    %v797 = vand.u32 2147483647, %v787
    %vm798 = vcmp.eq.f32.partialorder %v797, 8.507059e+37
    %v799 = vand.u32 %v787, 2147483648
    %v800 = vor.u32 1.1754944e-38, %v799
    %v801 = vsel %vm798, %v800, %v796
    %v802 = vmul.f32 1.0, %v801
    %v803 = vtanh.pop %v783
    %v804 = vmul.f32 %v802, 0.0
    %806 = vrot.lane.b32.xlu0 %v803, 64
    %v807 = vpop.permute.xlu0 %806
    %v809 = vmul.f32 %v802, %v807
    %811 = vrot.lane.b32.xlu0 %v809, 32
    %v812 = vpop.permute.xlu0 %811
    %v814 = vadd.f32 %v804, %v812
    %v815 = vtanh.pop %v814
    %817 = vrot.lane.b32.xlu0 %v815, 64
    %v818 = vpop.permute.xlu0 %817
    %v820 = vmul.f32 %v802, %v818
    %822 = vrot.lane.b32.xlu0 %v820, 32
    %v823 = vpop.permute.xlu0 %822
    %825 = vst.msk [vmem:[#allocation2] sm:$0xff] %vm165, %v823
    %v826 = vld [vmem:[#allocation3 + $0x8] sm:$0xff]
    %v827 = vpack.c.bf16 %v820, %v820
    %829 = vrot.lane.b32.xlu0 %v827, 32
    %v830 = vpop.permute.xlu0 %829
    %v832 = vsel %vm165, %v830, 0
    %834 = vmatpush.bf16.msra.mxu0 0
    %835 = vmatpush.bf16.msra.mxu0 0
    %836 = vmatpush.bf16.msra.mxu0 0
    %837 = vmatpush.bf16.msra.mxu0 0
    %838 = vmatpush.bf16.msra.mxu0 0
    %839 = vmatpush.bf16.msra.mxu0 0
    %840 = vmatpush.bf16.msra.mxu0 %v767
    %841 = vmatpush.bf16.msra.mxu0 %v766
    %842 = vmatmul.bf16.gmra.mxu0 %v832
    %v843 = vpop.f32.mrf.mxu0
    %v844 = vadd.f32 0.0, %v843
    %v845 = vpop.f32.mrf.mxu0
    %846 = vdwg.mxu0
    %v847 = vadd.f32 %v826, %v844
    %v848 = vxor.u32 %v847, 2147483648
    %v849 = vmul.f32 %v848, 1.442695
    %v850 = vpow.pop %v849
    %v851 = vadd.f32 %v850, 1.0
    %v852 = vrcp.pop %v851
    %v853 = vmul.f32 %v851, %v852
    %v854 = vsub.f32 1.0, %v853
    %v855 = vmul.f32 %v852, %v854
    %v856 = vadd.f32 %v852, %v855
    %vm857 = vweird.f32 %v851
    %vm858 = vweird.f32 %v852
    %vm859 = vmor %vm857, %vm858
    %v860 = vsel %vm859, %v852, %v856
    %v861 = vand.u32 2147483647, %v851
    %vm862 = vcmp.eq.f32.partialorder %v861, 8.507059e+37
    %v863 = vand.u32 %v851, 2147483648
    %v864 = vor.u32 1.1754944e-38, %v863
    %v865 = vsel %vm862, %v864, %v860
    %v866 = vmul.f32 1.0, %v865
    %v867 = vtanh.pop %v847
    %v868 = vmul.f32 %v866, %v814
    %870 = vrot.lane.b32.xlu0 %v867, 64
    %v871 = vpop.permute.xlu0 %870
    %v873 = vmul.f32 %v866, %v871
    %875 = vrot.lane.b32.xlu0 %v873, 32
    %v876 = vpop.permute.xlu0 %875
    %v878 = vadd.f32 %v868, %v876
    %v879 = vtanh.pop %v878
    %881 = vrot.lane.b32.xlu0 %v879, 64
    %v882 = vpop.permute.xlu0 %881
    %v884 = vmul.f32 %v866, %v882
    %886 = vrot.lane.b32.xlu0 %v884, 32
    %v887 = vpop.permute.xlu0 %886
    %889 = vst.msk [vmem:[#allocation2 + $0x8] sm:$0xff] %vm165, %v887
    %v890 = vld [vmem:[#allocation3 + $0x10] sm:$0xff]
    %v891 = vpack.c.bf16 %v884, %v884
    %893 = vrot.lane.b32.xlu0 %v891, 32
    %v894 = vpop.permute.xlu0 %893
    %v896 = vsel %vm165, %v894, 0
    %898 = vmatpush.bf16.msra.mxu0 0
    %899 = vmatpush.bf16.msra.mxu0 0
    %900 = vmatpush.bf16.msra.mxu0 0
    %901 = vmatpush.bf16.msra.mxu0 0
    %902 = vmatpush.bf16.msra.mxu0 0
    %903 = vmatpush.bf16.msra.mxu0 0
    %904 = vmatpush.bf16.msra.mxu0 %v767
    %905 = vmatpush.bf16.msra.mxu0 %v766
    %906 = vmatmul.bf16.gmra.mxu0 %v896
    %v907 = vpop.f32.mrf.mxu0
    %v908 = vadd.f32 0.0, %v907
    %v909 = vpop.f32.mrf.mxu0
    %910 = vdwg.mxu0
    %v911 = vadd.f32 %v890, %v908
    %v912 = vxor.u32 %v911, 2147483648
    %v913 = vmul.f32 %v912, 1.442695
    %v914 = vpow.pop %v913
    %v915 = vadd.f32 %v914, 1.0
    %v916 = vrcp.pop %v915
    %v917 = vmul.f32 %v915, %v916
    %v918 = vsub.f32 1.0, %v917
    %v919 = vmul.f32 %v916, %v918
    %v920 = vadd.f32 %v916, %v919
    %vm921 = vweird.f32 %v915
    %vm922 = vweird.f32 %v916
    %vm923 = vmor %vm921, %vm922
    %v924 = vsel %vm923, %v916, %v920
    %v925 = vand.u32 2147483647, %v915
    %vm926 = vcmp.eq.f32.partialorder %v925, 8.507059e+37
    %v927 = vand.u32 %v915, 2147483648
    %v928 = vor.u32 1.1754944e-38, %v927
    %v929 = vsel %vm926, %v928, %v924
    %v930 = vmul.f32 1.0, %v929
    %v931 = vtanh.pop %v911
    %v932 = vmul.f32 %v930, %v878
    %934 = vrot.lane.b32.xlu0 %v931, 64
    %v935 = vpop.permute.xlu0 %934
    %v937 = vmul.f32 %v930, %v935
    %939 = vrot.lane.b32.xlu0 %v937, 32
    %v940 = vpop.permute.xlu0 %939
    %v942 = vadd.f32 %v932, %v940
    %v943 = vtanh.pop %v942
    %945 = vrot.lane.b32.xlu0 %v943, 64
    %v946 = vpop.permute.xlu0 %945
    %v948 = vmul.f32 %v930, %v946
    %950 = vrot.lane.b32.xlu0 %v948, 32
    %v951 = vpop.permute.xlu0 %950
    %953 = vst.msk [vmem:[#allocation2 + $0x10] sm:$0xff] %vm165, %v951
    %v954 = vld [vmem:[#allocation3 + $0x18] sm:$0xff]
    %v955 = vpack.c.bf16 %v948, %v948
    %957 = vrot.lane.b32.xlu0 %v955, 32
    %v958 = vpop.permute.xlu0 %957
    %v960 = vsel %vm165, %v958, 0
    %962 = vmatpush.bf16.msra.mxu0 0
    %963 = vmatpush.bf16.msra.mxu0 0
    %964 = vmatpush.bf16.msra.mxu0 0
    %965 = vmatpush.bf16.msra.mxu0 0
    %966 = vmatpush.bf16.msra.mxu0 0
    %967 = vmatpush.bf16.msra.mxu0 0
    %968 = vmatpush.bf16.msra.mxu0 %v767
    %969 = vmatpush.bf16.msra.mxu0 %v766
    %970 = vmatmul.bf16.gmra.mxu0 %v960
    %v971 = vpop.f32.mrf.mxu0
    %v972 = vadd.f32 0.0, %v971
    %v973 = vpop.f32.mrf.mxu0
    %974 = vdwg.mxu0
    %v975 = vadd.f32 %v954, %v972
    %v976 = vxor.u32 %v975, 2147483648
    %v977 = vmul.f32 %v976, 1.442695
    %v978 = vpow.pop %v977
    %v979 = vadd.f32 %v978, 1.0
    %v980 = vrcp.pop %v979
    %v981 = vmul.f32 %v979, %v980
    %v982 = vsub.f32 1.0, %v981
    %v983 = vmul.f32 %v980, %v982
    %v984 = vadd.f32 %v980, %v983
    %vm985 = vweird.f32 %v979
    %vm986 = vweird.f32 %v980
    %vm987 = vmor %vm985, %vm986
    %v988 = vsel %vm987, %v980, %v984
    %v989 = vand.u32 2147483647, %v979
    %vm990 = vcmp.eq.f32.partialorder %v989, 8.507059e+37
    %v991 = vand.u32 %v979, 2147483648
    %v992 = vor.u32 1.1754944e-38, %v991
    %v993 = vsel %vm990, %v992, %v988
    %v994 = vmul.f32 1.0, %v993
    %v995 = vtanh.pop %v975
    %v996 = vmul.f32 %v994, %v942
    %998 = vrot.lane.b32.xlu0 %v995, 64
    %v999 = vpop.permute.xlu0 %998
    %v1001 = vmul.f32 %v994, %v999
    %1003 = vrot.lane.b32.xlu0 %v1001, 32
    %v1004 = vpop.permute.xlu0 %1003
    %v1006 = vadd.f32 %v996, %v1004
    %v1007 = vtanh.pop %v1006
    %1009 = vrot.lane.b32.xlu0 %v1007, 64
    %v1010 = vpop.permute.xlu0 %1009
    %v1012 = vmul.f32 %v994, %v1010
    %1014 = vrot.lane.b32.xlu0 %v1012, 32
    %v1015 = vpop.permute.xlu0 %1014
    %1017 = vst.msk [vmem:[#allocation2 + $0x18] sm:$0xff] %vm165, %v1015
    %v1018 = vld [vmem:[#allocation3 + $0x20] sm:$0xff]
    %v1019 = vpack.c.bf16 %v1012, %v1012
    %1021 = vrot.lane.b32.xlu0 %v1019, 32
    %v1022 = vpop.permute.xlu0 %1021
    %v1024 = vsel %vm165, %v1022, 0
    %1026 = vmatpush.bf16.msra.mxu0 0
    %1027 = vmatpush.bf16.msra.mxu0 0
    %1028 = vmatpush.bf16.msra.mxu0 0
    %1029 = vmatpush.bf16.msra.mxu0 0
    %1030 = vmatpush.bf16.msra.mxu0 0
    %1031 = vmatpush.bf16.msra.mxu0 0
    %1032 = vmatpush.bf16.msra.mxu0 %v767
    %1033 = vmatpush.bf16.msra.mxu0 %v766
    %1034 = vmatmul.bf16.gmra.mxu0 %v1024
    %v1035 = vpop.f32.mrf.mxu0
    %v1036 = vadd.f32 0.0, %v1035
    %v1037 = vpop.f32.mrf.mxu0
    %1038 = vdwg.mxu0
    %v1039 = vadd.f32 %v1018, %v1036
    %v1040 = vxor.u32 %v1039, 2147483648
    %v1041 = vmul.f32 %v1040, 1.442695
    %v1042 = vpow.pop %v1041
    %v1043 = vadd.f32 %v1042, 1.0
    %v1044 = vrcp.pop %v1043
    %v1045 = vmul.f32 %v1043, %v1044
    %v1046 = vsub.f32 1.0, %v1045
    %v1047 = vmul.f32 %v1044, %v1046
    %v1048 = vadd.f32 %v1044, %v1047
    %vm1049 = vweird.f32 %v1043
    %vm1050 = vweird.f32 %v1044
    %vm1051 = vmor %vm1049, %vm1050
    %v1052 = vsel %vm1051, %v1044, %v1048
    %v1053 = vand.u32 2147483647, %v1043
    %vm1054 = vcmp.eq.f32.partialorder %v1053, 8.507059e+37
    %v1055 = vand.u32 %v1043, 2147483648
    %v1056 = vor.u32 1.1754944e-38, %v1055
    %v1057 = vsel %vm1054, %v1056, %v1052
    %v1058 = vmul.f32 1.0, %v1057
    %v1059 = vtanh.pop %v1039
    %v1060 = vmul.f32 %v1058, %v1006
    %1062 = vrot.lane.b32.xlu0 %v1059, 64
    %v1063 = vpop.permute.xlu0 %1062
    %v1065 = vmul.f32 %v1058, %v1063
    %1067 = vrot.lane.b32.xlu0 %v1065, 32
    %v1068 = vpop.permute.xlu0 %1067
    %v1070 = vadd.f32 %v1060, %v1068
    %v1071 = vtanh.pop %v1070
    %1073 = vrot.lane.b32.xlu0 %v1071, 64
    %v1074 = vpop.permute.xlu0 %1073
    %v1076 = vmul.f32 %v1058, %v1074
    %1078 = vrot.lane.b32.xlu0 %v1076, 32
    %v1079 = vpop.permute.xlu0 %1078
    %1081 = vst.msk [vmem:[#allocation2 + $0x20] sm:$0xff] %vm165, %v1079
    %v1082 = vld [vmem:[#allocation3 + $0x28] sm:$0xff]
    %v1083 = vpack.c.bf16 %v1076, %v1076
    %1085 = vrot.lane.b32.xlu0 %v1083, 32
    %v1086 = vpop.permute.xlu0 %1085
    %v1088 = vsel %vm165, %v1086, 0
    %1090 = vmatpush.bf16.msra.mxu0 0
    %1091 = vmatpush.bf16.msra.mxu0 0
    %1092 = vmatpush.bf16.msra.mxu0 0
    %1093 = vmatpush.bf16.msra.mxu0 0
    %1094 = vmatpush.bf16.msra.mxu0 0
    %1095 = vmatpush.bf16.msra.mxu0 0
    %1096 = vmatpush.bf16.msra.mxu0 %v767
    %1097 = vmatpush.bf16.msra.mxu0 %v766
    %1098 = vmatmul.bf16.gmra.mxu0 %v1088
    %v1099 = vpop.f32.mrf.mxu0
    %v1100 = vadd.f32 0.0, %v1099
    %v1101 = vpop.f32.mrf.mxu0
    %1102 = vdwg.mxu0
    %v1103 = vadd.f32 %v1082, %v1100
    %v1104 = vxor.u32 %v1103, 2147483648
    %v1105 = vmul.f32 %v1104, 1.442695
    %v1106 = vpow.pop %v1105
    %v1107 = vadd.f32 %v1106, 1.0
    %v1108 = vrcp.pop %v1107
    %v1109 = vmul.f32 %v1107, %v1108
    %v1110 = vsub.f32 1.0, %v1109
    %v1111 = vmul.f32 %v1108, %v1110
    %v1112 = vadd.f32 %v1108, %v1111
    %vm1113 = vweird.f32 %v1107
    %vm1114 = vweird.f32 %v1108
    %vm1115 = vmor %vm1113, %vm1114
    %v1116 = vsel %vm1115, %v1108, %v1112
    %v1117 = vand.u32 2147483647, %v1107
    %vm1118 = vcmp.eq.f32.partialorder %v1117, 8.507059e+37
    %v1119 = vand.u32 %v1107, 2147483648
    %v1120 = vor.u32 1.1754944e-38, %v1119
    %v1121 = vsel %vm1118, %v1120, %v1116
    %v1122 = vmul.f32 1.0, %v1121
    %v1123 = vtanh.pop %v1103
    %v1124 = vmul.f32 %v1122, %v1070
    %1126 = vrot.lane.b32.xlu0 %v1123, 64
    %v1127 = vpop.permute.xlu0 %1126
    %v1129 = vmul.f32 %v1122, %v1127
    %1131 = vrot.lane.b32.xlu0 %v1129, 32
    %v1132 = vpop.permute.xlu0 %1131
    %v1134 = vadd.f32 %v1124, %v1132
    %v1135 = vtanh.pop %v1134
    %1137 = vrot.lane.b32.xlu0 %v1135, 64
    %v1138 = vpop.permute.xlu0 %1137
    %v1140 = vmul.f32 %v1122, %v1138
    %1142 = vrot.lane.b32.xlu0 %v1140, 32
    %v1143 = vpop.permute.xlu0 %1142
    %1145 = vst.msk [vmem:[#allocation2 + $0x28] sm:$0xff] %vm165, %v1143
    %v1146 = vld [vmem:[#allocation3 + $0x30] sm:$0xff]
    %v1147 = vpack.c.bf16 %v1140, %v1140
    %1149 = vrot.lane.b32.xlu0 %v1147, 32
    %v1150 = vpop.permute.xlu0 %1149
    %v1152 = vsel %vm165, %v1150, 0
    %1154 = vmatpush.bf16.msra.mxu0 0
    %1155 = vmatpush.bf16.msra.mxu0 0
    %1156 = vmatpush.bf16.msra.mxu0 0
    %1157 = vmatpush.bf16.msra.mxu0 0
    %1158 = vmatpush.bf16.msra.mxu0 0
    %1159 = vmatpush.bf16.msra.mxu0 0
    %1160 = vmatpush.bf16.msra.mxu0 %v767
    %1161 = vmatpush.bf16.msra.mxu0 %v766
    %1162 = vmatmul.bf16.gmra.mxu0 %v1152
    %v1163 = vpop.f32.mrf.mxu0
    %v1164 = vadd.f32 0.0, %v1163
    %v1165 = vpop.f32.mrf.mxu0
    %1166 = vdwg.mxu0
    %v1167 = vadd.f32 %v1146, %v1164
    %v1168 = vxor.u32 %v1167, 2147483648
    %v1169 = vmul.f32 %v1168, 1.442695
    %v1170 = vpow.pop %v1169
    %v1171 = vadd.f32 %v1170, 1.0
    %v1172 = vrcp.pop %v1171
    %v1173 = vmul.f32 %v1171, %v1172
    %v1174 = vsub.f32 1.0, %v1173
    %v1175 = vmul.f32 %v1172, %v1174
    %v1176 = vadd.f32 %v1172, %v1175
    %vm1177 = vweird.f32 %v1171
    %vm1178 = vweird.f32 %v1172
    %vm1179 = vmor %vm1177, %vm1178
    %v1180 = vsel %vm1179, %v1172, %v1176
    %v1181 = vand.u32 2147483647, %v1171
    %vm1182 = vcmp.eq.f32.partialorder %v1181, 8.507059e+37
    %v1183 = vand.u32 %v1171, 2147483648
    %v1184 = vor.u32 1.1754944e-38, %v1183
    %v1185 = vsel %vm1182, %v1184, %v1180
    %v1186 = vmul.f32 1.0, %v1185
    %v1187 = vtanh.pop %v1167
    %v1188 = vmul.f32 %v1186, %v1134
    %1190 = vrot.lane.b32.xlu0 %v1187, 64
    %v1191 = vpop.permute.xlu0 %1190
    %v1193 = vmul.f32 %v1186, %v1191
    %1195 = vrot.lane.b32.xlu0 %v1193, 32
    %v1196 = vpop.permute.xlu0 %1195
    %v1198 = vadd.f32 %v1188, %v1196
    %v1199 = vtanh.pop %v1198
    %1201 = vrot.lane.b32.xlu0 %v1199, 64
    %v1202 = vpop.permute.xlu0 %1201
    %v1204 = vmul.f32 %v1186, %v1202
    %1206 = vrot.lane.b32.xlu0 %v1204, 32
    %v1207 = vpop.permute.xlu0 %1206
    %1209 = vst.msk [vmem:[#allocation2 + $0x30] sm:$0xff] %vm165, %v1207
    %v1210 = vld [vmem:[#allocation3 + $0x38] sm:$0xff]
    %v1211 = vpack.c.bf16 %v1204, %v1204
    %1213 = vrot.lane.b32.xlu0 %v1211, 32
    %v1214 = vpop.permute.xlu0 %1213
    %v1216 = vsel %vm165, %v1214, 0
    %1218 = vmatpush.bf16.msra.mxu0 0
    %1219 = vmatpush.bf16.msra.mxu0 0
    %1220 = vmatpush.bf16.msra.mxu0 0
    %1221 = vmatpush.bf16.msra.mxu0 0
    %1222 = vmatpush.bf16.msra.mxu0 0
    %1223 = vmatpush.bf16.msra.mxu0 0
    %1224 = vmatpush.bf16.msra.mxu0 %v767
    %1225 = vmatpush.bf16.msra.mxu0 %v766
    %1226 = vmatmul.bf16.gmra.mxu0 %v1216
    %v1227 = vpop.f32.mrf.mxu0
    %v1228 = vadd.f32 0.0, %v1227
    %v1229 = vpop.f32.mrf.mxu0
    %1230 = vdwg.mxu0
    %v1231 = vadd.f32 %v1210, %v1228
    %v1232 = vxor.u32 %v1231, 2147483648
    %v1233 = vmul.f32 %v1232, 1.442695
    %v1234 = vpow.pop %v1233
    %v1235 = vadd.f32 %v1234, 1.0
    %v1236 = vrcp.pop %v1235
    %v1237 = vmul.f32 %v1235, %v1236
    %v1238 = vsub.f32 1.0, %v1237
    %v1239 = vmul.f32 %v1236, %v1238
    %v1240 = vadd.f32 %v1236, %v1239
    %vm1241 = vweird.f32 %v1235
    %vm1242 = vweird.f32 %v1236
    %vm1243 = vmor %vm1241, %vm1242
    %v1244 = vsel %vm1243, %v1236, %v1240
    %v1245 = vand.u32 2147483647, %v1235
    %vm1246 = vcmp.eq.f32.partialorder %v1245, 8.507059e+37
    %v1247 = vand.u32 %v1235, 2147483648
    %v1248 = vor.u32 1.1754944e-38, %v1247
    %v1249 = vsel %vm1246, %v1248, %v1244
    %v1250 = vmul.f32 1.0, %v1249
    %v1251 = vtanh.pop %v1231
    %v1252 = vmul.f32 %v1250, %v1198
    %1254 = vrot.lane.b32.xlu0 %v1251, 64
    %v1255 = vpop.permute.xlu0 %1254
    %v1257 = vmul.f32 %v1250, %v1255
    %1259 = vrot.lane.b32.xlu0 %v1257, 32
    %v1260 = vpop.permute.xlu0 %1259
    %v1262 = vadd.f32 %v1252, %v1260
    %v1263 = vtanh.pop %v1262
    %1265 = vrot.lane.b32.xlu0 %v1263, 64
    %v1266 = vpop.permute.xlu0 %1265
    %v1268 = vmul.f32 %v1250, %v1266
    %1270 = vrot.lane.b32.xlu0 %v1268, 32
    %v1271 = vpop.permute.xlu0 %1270
    %1273 = vst.msk [vmem:[#allocation2 + $0x38] sm:$0xff] %vm165, %v1271
    %v1274 = vld [vmem:[#allocation2] sm:$0xff]
    %v1275 = vld [vmem:[#allocation2 + $0x8] sm:$0xff]
    %v1276 = vld [vmem:[#allocation2 + $0x10] sm:$0xff]
    %v1277 = vld [vmem:[#allocation2 + $0x18] sm:$0xff]
    %v1278 = vld [vmem:[#allocation2 + $0x20] sm:$0xff]
    %v1279 = vld [vmem:[#allocation2 + $0x28] sm:$0xff]
    %v1280 = vld [vmem:[#allocation2 + $0x30] sm:$0xff]
    %v1281 = vld [vmem:[#allocation2 + $0x38] sm:$0xff]
    %v1282 = vpack.c.bf16 %v1275, %v1274
    %v1283 = vpack.c.bf16 %v1277, %v1276
    %v1284 = vpack.c.bf16 %v1279, %v1278
    %v1285 = vpack.c.bf16 %v1281, %v1280
    %s1286 = scalar_lea.vmem [#allocation4], 16
    %v1287 = vld [vmem:[%s1286] sm:$0xf]
    %v1288 = vld [vmem:[%s1286 + $0x4] sm:$0xf]
    %v1289 = vld [vmem:[%s1286 + $0x8] sm:$0xf]
    %v1290 = vld [vmem:[%s1286 + $0xc] sm:$0xf]
    %v1291 = vld [vmem:[%s4 + $0x2] sm:$0x1]
    %v1292 = vperm.slane %v1291, 0
    %v1297 = vunpack.c.l.b16 %v1287
    %v1298 = vunpack.c.l.b16 %v1288
    %v1299 = vunpack.c.l.b16 %v1289
    %v1300 = vunpack.c.l.b16 %v1290
    %v1301 = vpack.c.b16 %v1298, %v1297
    %v1302 = vpack.c.b16 %v1300, %v1299
    %v1306 = vsel %vm165, %v1282, 0
    %v1309 = vsel %vm165, %v1283, 0
    %v1312 = vsel %vm165, %v1284, 0
    %v1315 = vsel %vm165, %v1285, 0
    %1317 = vmatpush.bf16.msra.mxu0 0
    %1318 = vmatpush.bf16.msra.mxu0 0
    %1319 = vmatpush.bf16.msra.mxu0 0
    %1320 = vmatpush.bf16.msra.mxu0 0
    %1321 = vmatpush.bf16.msra.mxu0 0
    %1322 = vmatpush.bf16.msra.mxu0 0
    %1323 = vmatpush.bf16.msra.mxu0 %v1302
    %1324 = vmatpush.bf16.msra.mxu0 %v1301
    %1325 = vmatmul.bf16.gmra.mxu0 %v1306
    %v1326 = vpop.f32.mrf.mxu0
    %v1327 = vadd.f32 %v1292, %v1326
    %v1328 = vpop.f32.mrf.mxu0
    %v1329 = vadd.f32 %v1292, %v1328
    %1330 = vmatmul.bf16.gmra.mxu0 %v1309
    %v1331 = vpop.f32.mrf.mxu0
    %v1332 = vadd.f32 %v1292, %v1331
    %v1333 = vpop.f32.mrf.mxu0
    %v1334 = vadd.f32 %v1292, %v1333
    %1335 = vmatmul.bf16.gmra.mxu0 %v1312
    %v1336 = vpop.f32.mrf.mxu0
    %v1337 = vadd.f32 %v1292, %v1336
    %v1338 = vpop.f32.mrf.mxu0
    %v1339 = vadd.f32 %v1292, %v1338
    %1340 = vmatmul.bf16.gmra.mxu0 %v1315
    %v1341 = vpop.f32.mrf.mxu0
    %v1342 = vadd.f32 %v1292, %v1341
    %v1343 = vpop.f32.mrf.mxu0
    %v1344 = vadd.f32 %v1292, %v1343
    %1345 = vdwg.mxu0
    %1346 = vst [vmem:[#allocation3] sm:$0xff] %v1327
    %1347 = vst [vmem:[#allocation3 + $0x8] sm:$0xff] %v1329
    %1348 = vst [vmem:[#allocation3 + $0x10] sm:$0xff] %v1332
    %1349 = vst [vmem:[#allocation3 + $0x18] sm:$0xff] %v1334
    %1350 = vst [vmem:[#allocation3 + $0x20] sm:$0xff] %v1337
    %1351 = vst [vmem:[#allocation3 + $0x28] sm:$0xff] %v1339
    %1352 = vst [vmem:[#allocation3 + $0x30] sm:$0xff] %v1342
    %1353 = vst [vmem:[#allocation3 + $0x38] sm:$0xff] %v1344
    %s1354 = scalar_lea.vmem [#allocation7], 32
    %v1355 = vld [vmem:[%s1354] sm:$0xf]
    %v1356 = vld [vmem:[%s1354 + $0x4] sm:$0xf]
    %v1357 = vld [vmem:[%s1354 + $0x8] sm:$0xf]
    %v1358 = vld [vmem:[%s1354 + $0xc] sm:$0xf]
    %v1359 = vld [vmem:[#allocation3] sm:$0xff]
    %v1364 = vunpack.c.l.b16 %v1355
    %v1365 = vunpack.c.l.b16 %v1356
    %v1366 = vunpack.c.l.b16 %v1357
    %v1367 = vunpack.c.l.b16 %v1358
    %v1368 = vpack.c.b16 %v1365, %v1364
    %v1369 = vpack.c.b16 %v1367, %v1366
    %1372 = vmatpush.bf16.msra.mxu0 0
    %1373 = vmatpush.bf16.msra.mxu0 0
    %1374 = vmatpush.bf16.msra.mxu0 0
    %1375 = vmatpush.bf16.msra.mxu0 0
    %1376 = vmatpush.bf16.msra.mxu0 0
    %1377 = vmatpush.bf16.msra.mxu0 0
    %1378 = vmatpush.bf16.msra.mxu0 %v1369
    %1379 = vmatpush.bf16.msra.mxu0 %v1368
    %1380 = vmatmul.bf16.gmra.mxu0 %v167
    %v1381 = vpop.f32.mrf.mxu0
    %v1382 = vadd.f32 0.0, %v1381
    %v1383 = vpop.f32.mrf.mxu0
    %1384 = vdwg.mxu0
    %v1385 = vadd.f32 %v1359, %v1382
    %v1386 = vxor.u32 %v1385, 2147483648
    %v1387 = vmul.f32 %v1386, 1.442695
    %v1388 = vpow.pop %v1387
    %v1389 = vadd.f32 %v1388, 1.0
    %v1390 = vrcp.pop %v1389
    %v1391 = vmul.f32 %v1389, %v1390
    %v1392 = vsub.f32 1.0, %v1391
    %v1393 = vmul.f32 %v1390, %v1392
    %v1394 = vadd.f32 %v1390, %v1393
    %vm1395 = vweird.f32 %v1389
    %vm1396 = vweird.f32 %v1390
    %vm1397 = vmor %vm1395, %vm1396
    %v1398 = vsel %vm1397, %v1390, %v1394
    %v1399 = vand.u32 2147483647, %v1389
    %vm1400 = vcmp.eq.f32.partialorder %v1399, 8.507059e+37
    %v1401 = vand.u32 %v1389, 2147483648
    %v1402 = vor.u32 1.1754944e-38, %v1401
    %v1403 = vsel %vm1400, %v1402, %v1398
    %v1404 = vmul.f32 1.0, %v1403
    %v1405 = vtanh.pop %v1385
    %v1406 = vmul.f32 %v1404, 0.0
    %1408 = vrot.lane.b32.xlu0 %v1405, 64
    %v1409 = vpop.permute.xlu0 %1408
    %v1411 = vmul.f32 %v1404, %v1409
    %1413 = vrot.lane.b32.xlu0 %v1411, 32
    %v1414 = vpop.permute.xlu0 %1413
    %v1416 = vadd.f32 %v1406, %v1414
    %v1417 = vtanh.pop %v1416
    %1419 = vrot.lane.b32.xlu0 %v1417, 64
    %v1420 = vpop.permute.xlu0 %1419
    %v1422 = vmul.f32 %v1404, %v1420
    %1424 = vrot.lane.b32.xlu0 %v1422, 32
    %v1425 = vpop.permute.xlu0 %1424
    %1427 = vst.msk [vmem:[#allocation2] sm:$0xff] %vm165, %v1425
    %v1428 = vld [vmem:[#allocation3 + $0x8] sm:$0xff]
    %v1429 = vpack.c.bf16 %v1422, %v1422
    %1431 = vrot.lane.b32.xlu0 %v1429, 32
    %v1432 = vpop.permute.xlu0 %1431
    %v1434 = vsel %vm165, %v1432, 0
    %1436 = vmatpush.bf16.msra.mxu0 0
    %1437 = vmatpush.bf16.msra.mxu0 0
    %1438 = vmatpush.bf16.msra.mxu0 0
    %1439 = vmatpush.bf16.msra.mxu0 0
    %1440 = vmatpush.bf16.msra.mxu0 0
    %1441 = vmatpush.bf16.msra.mxu0 0
    %1442 = vmatpush.bf16.msra.mxu0 %v1369
    %1443 = vmatpush.bf16.msra.mxu0 %v1368
    %1444 = vmatmul.bf16.gmra.mxu0 %v1434
    %v1445 = vpop.f32.mrf.mxu0
    %v1446 = vadd.f32 0.0, %v1445
    %v1447 = vpop.f32.mrf.mxu0
    %1448 = vdwg.mxu0
    %v1449 = vadd.f32 %v1428, %v1446
    %v1450 = vxor.u32 %v1449, 2147483648
    %v1451 = vmul.f32 %v1450, 1.442695
    %v1452 = vpow.pop %v1451
    %v1453 = vadd.f32 %v1452, 1.0
    %v1454 = vrcp.pop %v1453
    %v1455 = vmul.f32 %v1453, %v1454
    %v1456 = vsub.f32 1.0, %v1455
    %v1457 = vmul.f32 %v1454, %v1456
    %v1458 = vadd.f32 %v1454, %v1457
    %vm1459 = vweird.f32 %v1453
    %vm1460 = vweird.f32 %v1454
    %vm1461 = vmor %vm1459, %vm1460
    %v1462 = vsel %vm1461, %v1454, %v1458
    %v1463 = vand.u32 2147483647, %v1453
    %vm1464 = vcmp.eq.f32.partialorder %v1463, 8.507059e+37
    %v1465 = vand.u32 %v1453, 2147483648
    %v1466 = vor.u32 1.1754944e-38, %v1465
    %v1467 = vsel %vm1464, %v1466, %v1462
    %v1468 = vmul.f32 1.0, %v1467
    %v1469 = vtanh.pop %v1449
    %v1470 = vmul.f32 %v1468, %v1416
    %1472 = vrot.lane.b32.xlu0 %v1469, 64
    %v1473 = vpop.permute.xlu0 %1472
    %v1475 = vmul.f32 %v1468, %v1473
    %1477 = vrot.lane.b32.xlu0 %v1475, 32
    %v1478 = vpop.permute.xlu0 %1477
    %v1480 = vadd.f32 %v1470, %v1478
    %v1481 = vtanh.pop %v1480
    %1483 = vrot.lane.b32.xlu0 %v1481, 64
    %v1484 = vpop.permute.xlu0 %1483
    %v1486 = vmul.f32 %v1468, %v1484
    %1488 = vrot.lane.b32.xlu0 %v1486, 32
    %v1489 = vpop.permute.xlu0 %1488
    %1491 = vst.msk [vmem:[#allocation2 + $0x8] sm:$0xff] %vm165, %v1489
    %v1492 = vld [vmem:[#allocation3 + $0x10] sm:$0xff]
    %v1493 = vpack.c.bf16 %v1486, %v1486
    %1495 = vrot.lane.b32.xlu0 %v1493, 32
    %v1496 = vpop.permute.xlu0 %1495
    %v1498 = vsel %vm165, %v1496, 0
    %1500 = vmatpush.bf16.msra.mxu0 0
    %1501 = vmatpush.bf16.msra.mxu0 0
    %1502 = vmatpush.bf16.msra.mxu0 0
    %1503 = vmatpush.bf16.msra.mxu0 0
    %1504 = vmatpush.bf16.msra.mxu0 0
    %1505 = vmatpush.bf16.msra.mxu0 0
    %1506 = vmatpush.bf16.msra.mxu0 %v1369
    %1507 = vmatpush.bf16.msra.mxu0 %v1368
    %1508 = vmatmul.bf16.gmra.mxu0 %v1498
    %v1509 = vpop.f32.mrf.mxu0
    %v1510 = vadd.f32 0.0, %v1509
    %v1511 = vpop.f32.mrf.mxu0
    %1512 = vdwg.mxu0
    %v1513 = vadd.f32 %v1492, %v1510
    %v1514 = vxor.u32 %v1513, 2147483648
    %v1515 = vmul.f32 %v1514, 1.442695
    %v1516 = vpow.pop %v1515
    %v1517 = vadd.f32 %v1516, 1.0
    %v1518 = vrcp.pop %v1517
    %v1519 = vmul.f32 %v1517, %v1518
    %v1520 = vsub.f32 1.0, %v1519
    %v1521 = vmul.f32 %v1518, %v1520
    %v1522 = vadd.f32 %v1518, %v1521
    %vm1523 = vweird.f32 %v1517
    %vm1524 = vweird.f32 %v1518
    %vm1525 = vmor %vm1523, %vm1524
    %v1526 = vsel %vm1525, %v1518, %v1522
    %v1527 = vand.u32 2147483647, %v1517
    %vm1528 = vcmp.eq.f32.partialorder %v1527, 8.507059e+37
    %v1529 = vand.u32 %v1517, 2147483648
    %v1530 = vor.u32 1.1754944e-38, %v1529
    %v1531 = vsel %vm1528, %v1530, %v1526
    %v1532 = vmul.f32 1.0, %v1531
    %v1533 = vtanh.pop %v1513
    %v1534 = vmul.f32 %v1532, %v1480
    %1536 = vrot.lane.b32.xlu0 %v1533, 64
    %v1537 = vpop.permute.xlu0 %1536
    %v1539 = vmul.f32 %v1532, %v1537
    %1541 = vrot.lane.b32.xlu0 %v1539, 32
    %v1542 = vpop.permute.xlu0 %1541
    %v1544 = vadd.f32 %v1534, %v1542
    %v1545 = vtanh.pop %v1544
    %1547 = vrot.lane.b32.xlu0 %v1545, 64
    %v1548 = vpop.permute.xlu0 %1547
    %v1550 = vmul.f32 %v1532, %v1548
    %1552 = vrot.lane.b32.xlu0 %v1550, 32
    %v1553 = vpop.permute.xlu0 %1552
    %1555 = vst.msk [vmem:[#allocation2 + $0x10] sm:$0xff] %vm165, %v1553
    %v1556 = vld [vmem:[#allocation3 + $0x18] sm:$0xff]
    %v1557 = vpack.c.bf16 %v1550, %v1550
    %1559 = vrot.lane.b32.xlu0 %v1557, 32
    %v1560 = vpop.permute.xlu0 %1559
    %v1562 = vsel %vm165, %v1560, 0
    %1564 = vmatpush.bf16.msra.mxu0 0
    %1565 = vmatpush.bf16.msra.mxu0 0
    %1566 = vmatpush.bf16.msra.mxu0 0
    %1567 = vmatpush.bf16.msra.mxu0 0
    %1568 = vmatpush.bf16.msra.mxu0 0
    %1569 = vmatpush.bf16.msra.mxu0 0
    %1570 = vmatpush.bf16.msra.mxu0 %v1369
    %1571 = vmatpush.bf16.msra.mxu0 %v1368
    %1572 = vmatmul.bf16.gmra.mxu0 %v1562
    %v1573 = vpop.f32.mrf.mxu0
    %v1574 = vadd.f32 0.0, %v1573
    %v1575 = vpop.f32.mrf.mxu0
    %1576 = vdwg.mxu0
    %v1577 = vadd.f32 %v1556, %v1574
    %v1578 = vxor.u32 %v1577, 2147483648
    %v1579 = vmul.f32 %v1578, 1.442695
    %v1580 = vpow.pop %v1579
    %v1581 = vadd.f32 %v1580, 1.0
    %v1582 = vrcp.pop %v1581
    %v1583 = vmul.f32 %v1581, %v1582
    %v1584 = vsub.f32 1.0, %v1583
    %v1585 = vmul.f32 %v1582, %v1584
    %v1586 = vadd.f32 %v1582, %v1585
    %vm1587 = vweird.f32 %v1581
    %vm1588 = vweird.f32 %v1582
    %vm1589 = vmor %vm1587, %vm1588
    %v1590 = vsel %vm1589, %v1582, %v1586
    %v1591 = vand.u32 2147483647, %v1581
    %vm1592 = vcmp.eq.f32.partialorder %v1591, 8.507059e+37
    %v1593 = vand.u32 %v1581, 2147483648
    %v1594 = vor.u32 1.1754944e-38, %v1593
    %v1595 = vsel %vm1592, %v1594, %v1590
    %v1596 = vmul.f32 1.0, %v1595
    %v1597 = vtanh.pop %v1577
    %v1598 = vmul.f32 %v1596, %v1544
    %1600 = vrot.lane.b32.xlu0 %v1597, 64
    %v1601 = vpop.permute.xlu0 %1600
    %v1603 = vmul.f32 %v1596, %v1601
    %1605 = vrot.lane.b32.xlu0 %v1603, 32
    %v1606 = vpop.permute.xlu0 %1605
    %v1608 = vadd.f32 %v1598, %v1606
    %v1609 = vtanh.pop %v1608
    %1611 = vrot.lane.b32.xlu0 %v1609, 64
    %v1612 = vpop.permute.xlu0 %1611
    %v1614 = vmul.f32 %v1596, %v1612
    %1616 = vrot.lane.b32.xlu0 %v1614, 32
    %v1617 = vpop.permute.xlu0 %1616
    %1619 = vst.msk [vmem:[#allocation2 + $0x18] sm:$0xff] %vm165, %v1617
    %v1620 = vld [vmem:[#allocation3 + $0x20] sm:$0xff]
    %v1621 = vpack.c.bf16 %v1614, %v1614
    %1623 = vrot.lane.b32.xlu0 %v1621, 32
    %v1624 = vpop.permute.xlu0 %1623
    %v1626 = vsel %vm165, %v1624, 0
    %1628 = vmatpush.bf16.msra.mxu0 0
    %1629 = vmatpush.bf16.msra.mxu0 0
    %1630 = vmatpush.bf16.msra.mxu0 0
    %1631 = vmatpush.bf16.msra.mxu0 0
    %1632 = vmatpush.bf16.msra.mxu0 0
    %1633 = vmatpush.bf16.msra.mxu0 0
    %1634 = vmatpush.bf16.msra.mxu0 %v1369
    %1635 = vmatpush.bf16.msra.mxu0 %v1368
    %1636 = vmatmul.bf16.gmra.mxu0 %v1626
    %v1637 = vpop.f32.mrf.mxu0
    %v1638 = vadd.f32 0.0, %v1637
    %v1639 = vpop.f32.mrf.mxu0
    %1640 = vdwg.mxu0
    %v1641 = vadd.f32 %v1620, %v1638
    %v1642 = vxor.u32 %v1641, 2147483648
    %v1643 = vmul.f32 %v1642, 1.442695
    %v1644 = vpow.pop %v1643
    %v1645 = vadd.f32 %v1644, 1.0
    %v1646 = vrcp.pop %v1645
    %v1647 = vmul.f32 %v1645, %v1646
    %v1648 = vsub.f32 1.0, %v1647
    %v1649 = vmul.f32 %v1646, %v1648
    %v1650 = vadd.f32 %v1646, %v1649
    %vm1651 = vweird.f32 %v1645
    %vm1652 = vweird.f32 %v1646
    %vm1653 = vmor %vm1651, %vm1652
    %v1654 = vsel %vm1653, %v1646, %v1650
    %v1655 = vand.u32 2147483647, %v1645
    %vm1656 = vcmp.eq.f32.partialorder %v1655, 8.507059e+37
    %v1657 = vand.u32 %v1645, 2147483648
    %v1658 = vor.u32 1.1754944e-38, %v1657
    %v1659 = vsel %vm1656, %v1658, %v1654
    %v1660 = vmul.f32 1.0, %v1659
    %v1661 = vtanh.pop %v1641
    %v1662 = vmul.f32 %v1660, %v1608
    %1664 = vrot.lane.b32.xlu0 %v1661, 64
    %v1665 = vpop.permute.xlu0 %1664
    %v1667 = vmul.f32 %v1660, %v1665
    %1669 = vrot.lane.b32.xlu0 %v1667, 32
    %v1670 = vpop.permute.xlu0 %1669
    %v1672 = vadd.f32 %v1662, %v1670
    %v1673 = vtanh.pop %v1672
    %1675 = vrot.lane.b32.xlu0 %v1673, 64
    %v1676 = vpop.permute.xlu0 %1675
    %v1678 = vmul.f32 %v1660, %v1676
    %1680 = vrot.lane.b32.xlu0 %v1678, 32
    %v1681 = vpop.permute.xlu0 %1680
    %1683 = vst.msk [vmem:[#allocation2 + $0x20] sm:$0xff] %vm165, %v1681
    %v1684 = vld [vmem:[#allocation3 + $0x28] sm:$0xff]
    %v1685 = vpack.c.bf16 %v1678, %v1678
    %1687 = vrot.lane.b32.xlu0 %v1685, 32
    %v1688 = vpop.permute.xlu0 %1687
    %v1690 = vsel %vm165, %v1688, 0
    %1692 = vmatpush.bf16.msra.mxu0 0
    %1693 = vmatpush.bf16.msra.mxu0 0
    %1694 = vmatpush.bf16.msra.mxu0 0
    %1695 = vmatpush.bf16.msra.mxu0 0
    %1696 = vmatpush.bf16.msra.mxu0 0
    %1697 = vmatpush.bf16.msra.mxu0 0
    %1698 = vmatpush.bf16.msra.mxu0 %v1369
    %1699 = vmatpush.bf16.msra.mxu0 %v1368
    %1700 = vmatmul.bf16.gmra.mxu0 %v1690
    %v1701 = vpop.f32.mrf.mxu0
    %v1702 = vadd.f32 0.0, %v1701
    %v1703 = vpop.f32.mrf.mxu0
    %1704 = vdwg.mxu0
    %v1705 = vadd.f32 %v1684, %v1702
    %v1706 = vxor.u32 %v1705, 2147483648
    %v1707 = vmul.f32 %v1706, 1.442695
    %v1708 = vpow.pop %v1707
    %v1709 = vadd.f32 %v1708, 1.0
    %v1710 = vrcp.pop %v1709
    %v1711 = vmul.f32 %v1709, %v1710
    %v1712 = vsub.f32 1.0, %v1711
    %v1713 = vmul.f32 %v1710, %v1712
    %v1714 = vadd.f32 %v1710, %v1713
    %vm1715 = vweird.f32 %v1709
    %vm1716 = vweird.f32 %v1710
    %vm1717 = vmor %vm1715, %vm1716
    %v1718 = vsel %vm1717, %v1710, %v1714
    %v1719 = vand.u32 2147483647, %v1709
    %vm1720 = vcmp.eq.f32.partialorder %v1719, 8.507059e+37
    %v1721 = vand.u32 %v1709, 2147483648
    %v1722 = vor.u32 1.1754944e-38, %v1721
    %v1723 = vsel %vm1720, %v1722, %v1718
    %v1724 = vmul.f32 1.0, %v1723
    %v1725 = vtanh.pop %v1705
    %v1726 = vmul.f32 %v1724, %v1672
    %1728 = vrot.lane.b32.xlu0 %v1725, 64
    %v1729 = vpop.permute.xlu0 %1728
    %v1731 = vmul.f32 %v1724, %v1729
    %1733 = vrot.lane.b32.xlu0 %v1731, 32
    %v1734 = vpop.permute.xlu0 %1733
    %v1736 = vadd.f32 %v1726, %v1734
    %v1737 = vtanh.pop %v1736
    %1739 = vrot.lane.b32.xlu0 %v1737, 64
    %v1740 = vpop.permute.xlu0 %1739
    %v1742 = vmul.f32 %v1724, %v1740
    %1744 = vrot.lane.b32.xlu0 %v1742, 32
    %v1745 = vpop.permute.xlu0 %1744
    %1747 = vst.msk [vmem:[#allocation2 + $0x28] sm:$0xff] %vm165, %v1745
    %v1748 = vld [vmem:[#allocation3 + $0x30] sm:$0xff]
    %v1749 = vpack.c.bf16 %v1742, %v1742
    %1751 = vrot.lane.b32.xlu0 %v1749, 32
    %v1752 = vpop.permute.xlu0 %1751
    %v1754 = vsel %vm165, %v1752, 0
    %1756 = vmatpush.bf16.msra.mxu0 0
    %1757 = vmatpush.bf16.msra.mxu0 0
    %1758 = vmatpush.bf16.msra.mxu0 0
    %1759 = vmatpush.bf16.msra.mxu0 0
    %1760 = vmatpush.bf16.msra.mxu0 0
    %1761 = vmatpush.bf16.msra.mxu0 0
    %1762 = vmatpush.bf16.msra.mxu0 %v1369
    %1763 = vmatpush.bf16.msra.mxu0 %v1368
    %1764 = vmatmul.bf16.gmra.mxu0 %v1754
    %v1765 = vpop.f32.mrf.mxu0
    %v1766 = vadd.f32 0.0, %v1765
    %v1767 = vpop.f32.mrf.mxu0
    %1768 = vdwg.mxu0
    %v1769 = vadd.f32 %v1748, %v1766
    %v1770 = vxor.u32 %v1769, 2147483648
    %v1771 = vmul.f32 %v1770, 1.442695
    %v1772 = vpow.pop %v1771
    %v1773 = vadd.f32 %v1772, 1.0
    %v1774 = vrcp.pop %v1773
    %v1775 = vmul.f32 %v1773, %v1774
    %v1776 = vsub.f32 1.0, %v1775
    %v1777 = vmul.f32 %v1774, %v1776
    %v1778 = vadd.f32 %v1774, %v1777
    %vm1779 = vweird.f32 %v1773
    %vm1780 = vweird.f32 %v1774
    %vm1781 = vmor %vm1779, %vm1780
    %v1782 = vsel %vm1781, %v1774, %v1778
    %v1783 = vand.u32 2147483647, %v1773
    %vm1784 = vcmp.eq.f32.partialorder %v1783, 8.507059e+37
    %v1785 = vand.u32 %v1773, 2147483648
    %v1786 = vor.u32 1.1754944e-38, %v1785
    %v1787 = vsel %vm1784, %v1786, %v1782
    %v1788 = vmul.f32 1.0, %v1787
    %v1789 = vtanh.pop %v1769
    %v1790 = vmul.f32 %v1788, %v1736
    %1792 = vrot.lane.b32.xlu0 %v1789, 64
    %v1793 = vpop.permute.xlu0 %1792
    %v1795 = vmul.f32 %v1788, %v1793
    %1797 = vrot.lane.b32.xlu0 %v1795, 32
    %v1798 = vpop.permute.xlu0 %1797
    %v1800 = vadd.f32 %v1790, %v1798
    %v1801 = vtanh.pop %v1800
    %1803 = vrot.lane.b32.xlu0 %v1801, 64
    %v1804 = vpop.permute.xlu0 %1803
    %v1806 = vmul.f32 %v1788, %v1804
    %1808 = vrot.lane.b32.xlu0 %v1806, 32
    %v1809 = vpop.permute.xlu0 %1808
    %1811 = vst.msk [vmem:[#allocation2 + $0x30] sm:$0xff] %vm165, %v1809
    %v1812 = vld [vmem:[#allocation3 + $0x38] sm:$0xff]
    %v1813 = vpack.c.bf16 %v1806, %v1806
    %1815 = vrot.lane.b32.xlu0 %v1813, 32
    %v1816 = vpop.permute.xlu0 %1815
    %v1818 = vsel %vm165, %v1816, 0
    %1820 = vmatpush.bf16.msra.mxu0 0
    %1821 = vmatpush.bf16.msra.mxu0 0
    %1822 = vmatpush.bf16.msra.mxu0 0
    %1823 = vmatpush.bf16.msra.mxu0 0
    %1824 = vmatpush.bf16.msra.mxu0 0
    %1825 = vmatpush.bf16.msra.mxu0 0
    %1826 = vmatpush.bf16.msra.mxu0 %v1369
    %1827 = vmatpush.bf16.msra.mxu0 %v1368
    %1828 = vmatmul.bf16.gmra.mxu0 %v1818
    %v1829 = vpop.f32.mrf.mxu0
    %v1830 = vadd.f32 0.0, %v1829
    %v1831 = vpop.f32.mrf.mxu0
    %1832 = vdwg.mxu0
    %v1833 = vadd.f32 %v1812, %v1830
    %v1834 = vxor.u32 %v1833, 2147483648
    %v1835 = vmul.f32 %v1834, 1.442695
    %v1836 = vpow.pop %v1835
    %v1837 = vadd.f32 %v1836, 1.0
    %v1838 = vrcp.pop %v1837
    %v1839 = vmul.f32 %v1837, %v1838
    %v1840 = vsub.f32 1.0, %v1839
    %v1841 = vmul.f32 %v1838, %v1840
    %v1842 = vadd.f32 %v1838, %v1841
    %vm1843 = vweird.f32 %v1837
    %vm1844 = vweird.f32 %v1838
    %vm1845 = vmor %vm1843, %vm1844
    %v1846 = vsel %vm1845, %v1838, %v1842
    %v1847 = vand.u32 2147483647, %v1837
    %vm1848 = vcmp.eq.f32.partialorder %v1847, 8.507059e+37
    %v1849 = vand.u32 %v1837, 2147483648
    %v1850 = vor.u32 1.1754944e-38, %v1849
    %v1851 = vsel %vm1848, %v1850, %v1846
    %v1852 = vmul.f32 1.0, %v1851
    %v1853 = vtanh.pop %v1833
    %v1854 = vmul.f32 %v1852, %v1800
    %1856 = vrot.lane.b32.xlu0 %v1853, 64
    %v1857 = vpop.permute.xlu0 %1856
    %v1859 = vmul.f32 %v1852, %v1857
    %1861 = vrot.lane.b32.xlu0 %v1859, 32
    %v1862 = vpop.permute.xlu0 %1861
    %v1864 = vadd.f32 %v1854, %v1862
    %v1865 = vtanh.pop %v1864
    %1867 = vrot.lane.b32.xlu0 %v1865, 64
    %v1868 = vpop.permute.xlu0 %1867
    %v1870 = vmul.f32 %v1852, %v1868
    %1872 = vrot.lane.b32.xlu0 %v1870, 32
    %v1873 = vpop.permute.xlu0 %1872
    %1875 = vst.msk [vmem:[#allocation2 + $0x38] sm:$0xff] %vm165, %v1873
    %v1876 = vld [vmem:[#allocation2] sm:$0xff]
    %v1877 = vld [vmem:[#allocation2 + $0x8] sm:$0xff]
    %v1878 = vld [vmem:[#allocation2 + $0x10] sm:$0xff]
    %v1879 = vld [vmem:[#allocation2 + $0x18] sm:$0xff]
    %v1880 = vld [vmem:[#allocation2 + $0x20] sm:$0xff]
    %v1881 = vld [vmem:[#allocation2 + $0x28] sm:$0xff]
    %v1882 = vld [vmem:[#allocation2 + $0x30] sm:$0xff]
    %v1883 = vld [vmem:[#allocation2 + $0x38] sm:$0xff]
    %v1884 = vpack.c.bf16 %v1877, %v1876
    %v1885 = vpack.c.bf16 %v1879, %v1878
    %v1886 = vpack.c.bf16 %v1881, %v1880
    %v1887 = vpack.c.bf16 %v1883, %v1882
    %s1888 = scalar_lea.vmem [#allocation4], 32
    %v1889 = vld [vmem:[%s1888] sm:$0xf]
    %v1890 = vld [vmem:[%s1888 + $0x4] sm:$0xf]
    %v1891 = vld [vmem:[%s1888 + $0x8] sm:$0xf]
    %v1892 = vld [vmem:[%s1888 + $0xc] sm:$0xf]
    %v1893 = vld [vmem:[%s4 + $0x3] sm:$0x1]
    %v1894 = vperm.slane %v1893, 0
    %v1899 = vunpack.c.l.b16 %v1889
    %v1900 = vunpack.c.l.b16 %v1890
    %v1901 = vunpack.c.l.b16 %v1891
    %v1902 = vunpack.c.l.b16 %v1892
    %v1903 = vpack.c.b16 %v1900, %v1899
    %v1904 = vpack.c.b16 %v1902, %v1901
    %v1908 = vsel %vm165, %v1884, 0
    %v1911 = vsel %vm165, %v1885, 0
    %v1914 = vsel %vm165, %v1886, 0
    %v1917 = vsel %vm165, %v1887, 0
    %1919 = vmatpush.bf16.msra.mxu0 0
    %1920 = vmatpush.bf16.msra.mxu0 0
    %1921 = vmatpush.bf16.msra.mxu0 0
    %1922 = vmatpush.bf16.msra.mxu0 0
    %1923 = vmatpush.bf16.msra.mxu0 0
    %1924 = vmatpush.bf16.msra.mxu0 0
    %1925 = vmatpush.bf16.msra.mxu0 %v1904
    %1926 = vmatpush.bf16.msra.mxu0 %v1903
    %1927 = vmatmul.bf16.gmra.mxu0 %v1908
    %v1928 = vpop.f32.mrf.mxu0
    %v1929 = vadd.f32 %v1894, %v1928
    %v1930 = vpop.f32.mrf.mxu0
    %v1931 = vadd.f32 %v1894, %v1930
    %1932 = vmatmul.bf16.gmra.mxu0 %v1911
    %v1933 = vpop.f32.mrf.mxu0
    %v1934 = vadd.f32 %v1894, %v1933
    %v1935 = vpop.f32.mrf.mxu0
    %v1936 = vadd.f32 %v1894, %v1935
    %1937 = vmatmul.bf16.gmra.mxu0 %v1914
    %v1938 = vpop.f32.mrf.mxu0
    %v1939 = vadd.f32 %v1894, %v1938
    %v1940 = vpop.f32.mrf.mxu0
    %v1941 = vadd.f32 %v1894, %v1940
    %1942 = vmatmul.bf16.gmra.mxu0 %v1917
    %v1943 = vpop.f32.mrf.mxu0
    %v1944 = vadd.f32 %v1894, %v1943
    %v1945 = vpop.f32.mrf.mxu0
    %v1946 = vadd.f32 %v1894, %v1945
    %1947 = vdwg.mxu0
    %1948 = vst [vmem:[#allocation3] sm:$0xff] %v1929
    %1949 = vst [vmem:[#allocation3 + $0x8] sm:$0xff] %v1931
    %1950 = vst [vmem:[#allocation3 + $0x10] sm:$0xff] %v1934
    %1951 = vst [vmem:[#allocation3 + $0x18] sm:$0xff] %v1936
    %1952 = vst [vmem:[#allocation3 + $0x20] sm:$0xff] %v1939
    %1953 = vst [vmem:[#allocation3 + $0x28] sm:$0xff] %v1941
    %1954 = vst [vmem:[#allocation3 + $0x30] sm:$0xff] %v1944
    %1955 = vst [vmem:[#allocation3 + $0x38] sm:$0xff] %v1946
    %s1956 = scalar_lea.vmem [#allocation7], 48
    %v1957 = vld [vmem:[%s1956] sm:$0xf]
    %v1958 = vld [vmem:[%s1956 + $0x4] sm:$0xf]
    %v1959 = vld [vmem:[%s1956 + $0x8] sm:$0xf]
    %v1960 = vld [vmem:[%s1956 + $0xc] sm:$0xf]
    %v1961 = vld [vmem:[#allocation3] sm:$0xff]
    %v1966 = vunpack.c.l.b16 %v1957
    %v1967 = vunpack.c.l.b16 %v1958
    %v1968 = vunpack.c.l.b16 %v1959
    %v1969 = vunpack.c.l.b16 %v1960
    %v1970 = vpack.c.b16 %v1967, %v1966
    %v1971 = vpack.c.b16 %v1969, %v1968
    %1974 = vmatpush.bf16.msra.mxu0 0
    %1975 = vmatpush.bf16.msra.mxu0 0
    %1976 = vmatpush.bf16.msra.mxu0 0
    %1977 = vmatpush.bf16.msra.mxu0 0
    %1978 = vmatpush.bf16.msra.mxu0 0
    %1979 = vmatpush.bf16.msra.mxu0 0
    %1980 = vmatpush.bf16.msra.mxu0 %v1971
    %1981 = vmatpush.bf16.msra.mxu0 %v1970
    %1982 = vmatmul.bf16.gmra.mxu0 %v167
    %v1983 = vpop.f32.mrf.mxu0
    %v1984 = vadd.f32 0.0, %v1983
    %v1985 = vpop.f32.mrf.mxu0
    %1986 = vdwg.mxu0
    %v1987 = vadd.f32 %v1961, %v1984
    %v1988 = vxor.u32 %v1987, 2147483648
    %v1989 = vmul.f32 %v1988, 1.442695
    %v1990 = vpow.pop %v1989
    %v1991 = vadd.f32 %v1990, 1.0
    %v1992 = vrcp.pop %v1991
    %v1993 = vmul.f32 %v1991, %v1992
    %v1994 = vsub.f32 1.0, %v1993
    %v1995 = vmul.f32 %v1992, %v1994
    %v1996 = vadd.f32 %v1992, %v1995
    %vm1997 = vweird.f32 %v1991
    %vm1998 = vweird.f32 %v1992
    %vm1999 = vmor %vm1997, %vm1998
    %v2000 = vsel %vm1999, %v1992, %v1996
    %v2001 = vand.u32 2147483647, %v1991
    %vm2002 = vcmp.eq.f32.partialorder %v2001, 8.507059e+37
    %v2003 = vand.u32 %v1991, 2147483648
    %v2004 = vor.u32 1.1754944e-38, %v2003
    %v2005 = vsel %vm2002, %v2004, %v2000
    %v2006 = vmul.f32 1.0, %v2005
    %v2007 = vtanh.pop %v1987
    %v2008 = vmul.f32 %v2006, 0.0
    %2010 = vrot.lane.b32.xlu0 %v2007, 64
    %v2011 = vpop.permute.xlu0 %2010
    %v2013 = vmul.f32 %v2006, %v2011
    %2015 = vrot.lane.b32.xlu0 %v2013, 32
    %v2016 = vpop.permute.xlu0 %2015
    %v2018 = vadd.f32 %v2008, %v2016
    %v2019 = vtanh.pop %v2018
    %2021 = vrot.lane.b32.xlu0 %v2019, 64
    %v2022 = vpop.permute.xlu0 %2021
    %v2024 = vmul.f32 %v2006, %v2022
    %v2025 = vld [vmem:[#allocation3 + $0x8] sm:$0xff]
    %v2026 = vpack.c.bf16 %v2024, %v2024
    %2028 = vrot.lane.b32.xlu0 %v2026, 32
    %v2029 = vpop.permute.xlu0 %2028
    %v2031 = vsel %vm165, %v2029, 0
    %2033 = vmatpush.bf16.msra.mxu0 0
    %2034 = vmatpush.bf16.msra.mxu0 0
    %2035 = vmatpush.bf16.msra.mxu0 0
    %2036 = vmatpush.bf16.msra.mxu0 0
    %2037 = vmatpush.bf16.msra.mxu0 0
    %2038 = vmatpush.bf16.msra.mxu0 0
    %2039 = vmatpush.bf16.msra.mxu0 %v1971
    %2040 = vmatpush.bf16.msra.mxu0 %v1970
    %2041 = vmatmul.bf16.gmra.mxu0 %v2031
    %v2042 = vpop.f32.mrf.mxu0
    %v2043 = vadd.f32 0.0, %v2042
    %v2044 = vpop.f32.mrf.mxu0
    %2045 = vdwg.mxu0
    %v2046 = vadd.f32 %v2025, %v2043
    %v2047 = vxor.u32 %v2046, 2147483648
    %v2048 = vmul.f32 %v2047, 1.442695
    %v2049 = vpow.pop %v2048
    %v2050 = vadd.f32 %v2049, 1.0
    %v2051 = vrcp.pop %v2050
    %v2052 = vmul.f32 %v2050, %v2051
    %v2053 = vsub.f32 1.0, %v2052
    %v2054 = vmul.f32 %v2051, %v2053
    %v2055 = vadd.f32 %v2051, %v2054
    %vm2056 = vweird.f32 %v2050
    %vm2057 = vweird.f32 %v2051
    %vm2058 = vmor %vm2056, %vm2057
    %v2059 = vsel %vm2058, %v2051, %v2055
    %v2060 = vand.u32 2147483647, %v2050
    %vm2061 = vcmp.eq.f32.partialorder %v2060, 8.507059e+37
    %v2062 = vand.u32 %v2050, 2147483648
    %v2063 = vor.u32 1.1754944e-38, %v2062
    %v2064 = vsel %vm2061, %v2063, %v2059
    %v2065 = vmul.f32 1.0, %v2064
    %v2066 = vtanh.pop %v2046
    %v2067 = vmul.f32 %v2065, %v2018
    %2069 = vrot.lane.b32.xlu0 %v2066, 64
    %v2070 = vpop.permute.xlu0 %2069
    %v2072 = vmul.f32 %v2065, %v2070
    %2074 = vrot.lane.b32.xlu0 %v2072, 32
    %v2075 = vpop.permute.xlu0 %2074
    %v2077 = vadd.f32 %v2067, %v2075
    %v2078 = vtanh.pop %v2077
    %2080 = vrot.lane.b32.xlu0 %v2078, 64
    %v2081 = vpop.permute.xlu0 %2080
    %v2083 = vmul.f32 %v2065, %v2081
    %v2084 = vld [vmem:[#allocation3 + $0x10] sm:$0xff]
    %v2085 = vpack.c.bf16 %v2083, %v2083
    %2087 = vrot.lane.b32.xlu0 %v2085, 32
    %v2088 = vpop.permute.xlu0 %2087
    %v2090 = vsel %vm165, %v2088, 0
    %2092 = vmatpush.bf16.msra.mxu0 0
    %2093 = vmatpush.bf16.msra.mxu0 0
    %2094 = vmatpush.bf16.msra.mxu0 0
    %2095 = vmatpush.bf16.msra.mxu0 0
    %2096 = vmatpush.bf16.msra.mxu0 0
    %2097 = vmatpush.bf16.msra.mxu0 0
    %2098 = vmatpush.bf16.msra.mxu0 %v1971
    %2099 = vmatpush.bf16.msra.mxu0 %v1970
    %2100 = vmatmul.bf16.gmra.mxu0 %v2090
    %v2101 = vpop.f32.mrf.mxu0
    %v2102 = vadd.f32 0.0, %v2101
    %v2103 = vpop.f32.mrf.mxu0
    %2104 = vdwg.mxu0
    %v2105 = vadd.f32 %v2084, %v2102
    %v2106 = vxor.u32 %v2105, 2147483648
    %v2107 = vmul.f32 %v2106, 1.442695
    %v2108 = vpow.pop %v2107
    %v2109 = vadd.f32 %v2108, 1.0
    %v2110 = vrcp.pop %v2109
    %v2111 = vmul.f32 %v2109, %v2110
    %v2112 = vsub.f32 1.0, %v2111
    %v2113 = vmul.f32 %v2110, %v2112
    %v2114 = vadd.f32 %v2110, %v2113
    %vm2115 = vweird.f32 %v2109
    %vm2116 = vweird.f32 %v2110
    %vm2117 = vmor %vm2115, %vm2116
    %v2118 = vsel %vm2117, %v2110, %v2114
    %v2119 = vand.u32 2147483647, %v2109
    %vm2120 = vcmp.eq.f32.partialorder %v2119, 8.507059e+37
    %v2121 = vand.u32 %v2109, 2147483648
    %v2122 = vor.u32 1.1754944e-38, %v2121
    %v2123 = vsel %vm2120, %v2122, %v2118
    %v2124 = vmul.f32 1.0, %v2123
    %v2125 = vtanh.pop %v2105
    %v2126 = vmul.f32 %v2124, %v2077
    %2128 = vrot.lane.b32.xlu0 %v2125, 64
    %v2129 = vpop.permute.xlu0 %2128
    %v2131 = vmul.f32 %v2124, %v2129
    %2133 = vrot.lane.b32.xlu0 %v2131, 32
    %v2134 = vpop.permute.xlu0 %2133
    %v2136 = vadd.f32 %v2126, %v2134
    %v2137 = vtanh.pop %v2136
    %2139 = vrot.lane.b32.xlu0 %v2137, 64
    %v2140 = vpop.permute.xlu0 %2139
    %v2142 = vmul.f32 %v2124, %v2140
    %v2143 = vld [vmem:[#allocation3 + $0x18] sm:$0xff]
    %v2144 = vpack.c.bf16 %v2142, %v2142
    %2146 = vrot.lane.b32.xlu0 %v2144, 32
    %v2147 = vpop.permute.xlu0 %2146
    %v2149 = vsel %vm165, %v2147, 0
    %2151 = vmatpush.bf16.msra.mxu0 0
    %2152 = vmatpush.bf16.msra.mxu0 0
    %2153 = vmatpush.bf16.msra.mxu0 0
    %2154 = vmatpush.bf16.msra.mxu0 0
    %2155 = vmatpush.bf16.msra.mxu0 0
    %2156 = vmatpush.bf16.msra.mxu0 0
    %2157 = vmatpush.bf16.msra.mxu0 %v1971
    %2158 = vmatpush.bf16.msra.mxu0 %v1970
    %2159 = vmatmul.bf16.gmra.mxu0 %v2149
    %v2160 = vpop.f32.mrf.mxu0
    %v2161 = vadd.f32 0.0, %v2160
    %v2162 = vpop.f32.mrf.mxu0
    %2163 = vdwg.mxu0
    %v2164 = vadd.f32 %v2143, %v2161
    %v2165 = vxor.u32 %v2164, 2147483648
    %v2166 = vmul.f32 %v2165, 1.442695
    %v2167 = vpow.pop %v2166
    %v2168 = vadd.f32 %v2167, 1.0
    %v2169 = vrcp.pop %v2168
    %v2170 = vmul.f32 %v2168, %v2169
    %v2171 = vsub.f32 1.0, %v2170
    %v2172 = vmul.f32 %v2169, %v2171
    %v2173 = vadd.f32 %v2169, %v2172
    %vm2174 = vweird.f32 %v2168
    %vm2175 = vweird.f32 %v2169
    %vm2176 = vmor %vm2174, %vm2175
    %v2177 = vsel %vm2176, %v2169, %v2173
    %v2178 = vand.u32 2147483647, %v2168
    %vm2179 = vcmp.eq.f32.partialorder %v2178, 8.507059e+37
    %v2180 = vand.u32 %v2168, 2147483648
    %v2181 = vor.u32 1.1754944e-38, %v2180
    %v2182 = vsel %vm2179, %v2181, %v2177
    %v2183 = vmul.f32 1.0, %v2182
    %v2184 = vtanh.pop %v2164
    %v2185 = vmul.f32 %v2183, %v2136
    %2187 = vrot.lane.b32.xlu0 %v2184, 64
    %v2188 = vpop.permute.xlu0 %2187
    %v2190 = vmul.f32 %v2183, %v2188
    %2192 = vrot.lane.b32.xlu0 %v2190, 32
    %v2193 = vpop.permute.xlu0 %2192
    %v2195 = vadd.f32 %v2185, %v2193
    %v2196 = vtanh.pop %v2195
    %2198 = vrot.lane.b32.xlu0 %v2196, 64
    %v2199 = vpop.permute.xlu0 %2198
    %v2201 = vmul.f32 %v2183, %v2199
    %v2202 = vld [vmem:[#allocation3 + $0x20] sm:$0xff]
    %v2203 = vpack.c.bf16 %v2201, %v2201
    %2205 = vrot.lane.b32.xlu0 %v2203, 32
    %v2206 = vpop.permute.xlu0 %2205
    %v2208 = vsel %vm165, %v2206, 0
    %2210 = vmatpush.bf16.msra.mxu0 0
    %2211 = vmatpush.bf16.msra.mxu0 0
    %2212 = vmatpush.bf16.msra.mxu0 0
    %2213 = vmatpush.bf16.msra.mxu0 0
    %2214 = vmatpush.bf16.msra.mxu0 0
    %2215 = vmatpush.bf16.msra.mxu0 0
    %2216 = vmatpush.bf16.msra.mxu0 %v1971
    %2217 = vmatpush.bf16.msra.mxu0 %v1970
    %2218 = vmatmul.bf16.gmra.mxu0 %v2208
    %v2219 = vpop.f32.mrf.mxu0
    %v2220 = vadd.f32 0.0, %v2219
    %v2221 = vpop.f32.mrf.mxu0
    %2222 = vdwg.mxu0
    %v2223 = vadd.f32 %v2202, %v2220
    %v2224 = vxor.u32 %v2223, 2147483648
    %v2225 = vmul.f32 %v2224, 1.442695
    %v2226 = vpow.pop %v2225
    %v2227 = vadd.f32 %v2226, 1.0
    %v2228 = vrcp.pop %v2227
    %v2229 = vmul.f32 %v2227, %v2228
    %v2230 = vsub.f32 1.0, %v2229
    %v2231 = vmul.f32 %v2228, %v2230
    %v2232 = vadd.f32 %v2228, %v2231
    %vm2233 = vweird.f32 %v2227
    %vm2234 = vweird.f32 %v2228
    %vm2235 = vmor %vm2233, %vm2234
    %v2236 = vsel %vm2235, %v2228, %v2232
    %v2237 = vand.u32 2147483647, %v2227
    %vm2238 = vcmp.eq.f32.partialorder %v2237, 8.507059e+37
    %v2239 = vand.u32 %v2227, 2147483648
    %v2240 = vor.u32 1.1754944e-38, %v2239
    %v2241 = vsel %vm2238, %v2240, %v2236
    %v2242 = vmul.f32 1.0, %v2241
    %v2243 = vtanh.pop %v2223
    %v2244 = vmul.f32 %v2242, %v2195
    %2246 = vrot.lane.b32.xlu0 %v2243, 64
    %v2247 = vpop.permute.xlu0 %2246
    %v2249 = vmul.f32 %v2242, %v2247
    %2251 = vrot.lane.b32.xlu0 %v2249, 32
    %v2252 = vpop.permute.xlu0 %2251
    %v2254 = vadd.f32 %v2244, %v2252
    %v2255 = vtanh.pop %v2254
    %2257 = vrot.lane.b32.xlu0 %v2255, 64
    %v2258 = vpop.permute.xlu0 %2257
    %v2260 = vmul.f32 %v2242, %v2258
    %v2261 = vld [vmem:[#allocation3 + $0x28] sm:$0xff]
    %v2262 = vpack.c.bf16 %v2260, %v2260
    %2264 = vrot.lane.b32.xlu0 %v2262, 32
    %v2265 = vpop.permute.xlu0 %2264
    %v2267 = vsel %vm165, %v2265, 0
    %2269 = vmatpush.bf16.msra.mxu0 0
    %2270 = vmatpush.bf16.msra.mxu0 0
    %2271 = vmatpush.bf16.msra.mxu0 0
    %2272 = vmatpush.bf16.msra.mxu0 0
    %2273 = vmatpush.bf16.msra.mxu0 0
    %2274 = vmatpush.bf16.msra.mxu0 0
    %2275 = vmatpush.bf16.msra.mxu0 %v1971
    %2276 = vmatpush.bf16.msra.mxu0 %v1970
    %2277 = vmatmul.bf16.gmra.mxu0 %v2267
    %v2278 = vpop.f32.mrf.mxu0
    %v2279 = vadd.f32 0.0, %v2278
    %v2280 = vpop.f32.mrf.mxu0
    %2281 = vdwg.mxu0
    %v2282 = vadd.f32 %v2261, %v2279
    %v2283 = vxor.u32 %v2282, 2147483648
    %v2284 = vmul.f32 %v2283, 1.442695
    %v2285 = vpow.pop %v2284
    %v2286 = vadd.f32 %v2285, 1.0
    %v2287 = vrcp.pop %v2286
    %v2288 = vmul.f32 %v2286, %v2287
    %v2289 = vsub.f32 1.0, %v2288
    %v2290 = vmul.f32 %v2287, %v2289
    %v2291 = vadd.f32 %v2287, %v2290
    %vm2292 = vweird.f32 %v2286
    %vm2293 = vweird.f32 %v2287
    %vm2294 = vmor %vm2292, %vm2293
    %v2295 = vsel %vm2294, %v2287, %v2291
    %v2296 = vand.u32 2147483647, %v2286
    %vm2297 = vcmp.eq.f32.partialorder %v2296, 8.507059e+37
    %v2298 = vand.u32 %v2286, 2147483648
    %v2299 = vor.u32 1.1754944e-38, %v2298
    %v2300 = vsel %vm2297, %v2299, %v2295
    %v2301 = vmul.f32 1.0, %v2300
    %v2302 = vtanh.pop %v2282
    %v2303 = vmul.f32 %v2301, %v2254
    %2305 = vrot.lane.b32.xlu0 %v2302, 64
    %v2306 = vpop.permute.xlu0 %2305
    %v2308 = vmul.f32 %v2301, %v2306
    %2310 = vrot.lane.b32.xlu0 %v2308, 32
    %v2311 = vpop.permute.xlu0 %2310
    %v2313 = vadd.f32 %v2303, %v2311
    %v2314 = vtanh.pop %v2313
    %2316 = vrot.lane.b32.xlu0 %v2314, 64
    %v2317 = vpop.permute.xlu0 %2316
    %v2319 = vmul.f32 %v2301, %v2317
    %v2320 = vld [vmem:[#allocation3 + $0x30] sm:$0xff]
    %v2321 = vpack.c.bf16 %v2319, %v2319
    %2323 = vrot.lane.b32.xlu0 %v2321, 32
    %v2324 = vpop.permute.xlu0 %2323
    %v2326 = vsel %vm165, %v2324, 0
    %2328 = vmatpush.bf16.msra.mxu0 0
    %2329 = vmatpush.bf16.msra.mxu0 0
    %2330 = vmatpush.bf16.msra.mxu0 0
    %2331 = vmatpush.bf16.msra.mxu0 0
    %2332 = vmatpush.bf16.msra.mxu0 0
    %2333 = vmatpush.bf16.msra.mxu0 0
    %2334 = vmatpush.bf16.msra.mxu0 %v1971
    %2335 = vmatpush.bf16.msra.mxu0 %v1970
    %2336 = vmatmul.bf16.gmra.mxu0 %v2326
    %v2337 = vpop.f32.mrf.mxu0
    %v2338 = vadd.f32 0.0, %v2337
    %v2339 = vpop.f32.mrf.mxu0
    %2340 = vdwg.mxu0
    %v2341 = vadd.f32 %v2320, %v2338
    %v2342 = vxor.u32 %v2341, 2147483648
    %v2343 = vmul.f32 %v2342, 1.442695
    %v2344 = vpow.pop %v2343
    %v2345 = vadd.f32 %v2344, 1.0
    %v2346 = vrcp.pop %v2345
    %v2347 = vmul.f32 %v2345, %v2346
    %v2348 = vsub.f32 1.0, %v2347
    %v2349 = vmul.f32 %v2346, %v2348
    %v2350 = vadd.f32 %v2346, %v2349
    %vm2351 = vweird.f32 %v2345
    %vm2352 = vweird.f32 %v2346
    %vm2353 = vmor %vm2351, %vm2352
    %v2354 = vsel %vm2353, %v2346, %v2350
    %v2355 = vand.u32 2147483647, %v2345
    %vm2356 = vcmp.eq.f32.partialorder %v2355, 8.507059e+37
    %v2357 = vand.u32 %v2345, 2147483648
    %v2358 = vor.u32 1.1754944e-38, %v2357
    %v2359 = vsel %vm2356, %v2358, %v2354
    %v2360 = vmul.f32 1.0, %v2359
    %v2361 = vtanh.pop %v2341
    %v2362 = vmul.f32 %v2360, %v2313
    %2364 = vrot.lane.b32.xlu0 %v2361, 64
    %v2365 = vpop.permute.xlu0 %2364
    %v2367 = vmul.f32 %v2360, %v2365
    %2369 = vrot.lane.b32.xlu0 %v2367, 32
    %v2370 = vpop.permute.xlu0 %2369
    %v2372 = vadd.f32 %v2362, %v2370
    %v2373 = vtanh.pop %v2372
    %2375 = vrot.lane.b32.xlu0 %v2373, 64
    %v2376 = vpop.permute.xlu0 %2375
    %v2378 = vmul.f32 %v2360, %v2376
    %v2379 = vld [vmem:[#allocation3 + $0x38] sm:$0xff]
    %v2380 = vpack.c.bf16 %v2378, %v2378
    %2382 = vrot.lane.b32.xlu0 %v2380, 32
    %v2383 = vpop.permute.xlu0 %2382
    %v2385 = vsel %vm165, %v2383, 0
    %2387 = vmatpush.bf16.msra.mxu0 0
    %2388 = vmatpush.bf16.msra.mxu0 0
    %2389 = vmatpush.bf16.msra.mxu0 0
    %2390 = vmatpush.bf16.msra.mxu0 0
    %2391 = vmatpush.bf16.msra.mxu0 0
    %2392 = vmatpush.bf16.msra.mxu0 0
    %2393 = vmatpush.bf16.msra.mxu0 %v1971
    %2394 = vmatpush.bf16.msra.mxu0 %v1970
    %2395 = vmatmul.bf16.gmra.mxu0 %v2385
    %v2396 = vpop.f32.mrf.mxu0
    %v2397 = vadd.f32 0.0, %v2396
    %v2398 = vpop.f32.mrf.mxu0
    %2399 = vdwg.mxu0
    %v2400 = vadd.f32 %v2379, %v2397
    %v2401 = vxor.u32 %v2400, 2147483648
    %v2402 = vmul.f32 %v2401, 1.442695
    %v2403 = vpow.pop %v2402
    %v2404 = vadd.f32 %v2403, 1.0
    %v2405 = vrcp.pop %v2404
    %v2406 = vmul.f32 %v2404, %v2405
    %v2407 = vsub.f32 1.0, %v2406
    %v2408 = vmul.f32 %v2405, %v2407
    %v2409 = vadd.f32 %v2405, %v2408
    %vm2410 = vweird.f32 %v2404
    %vm2411 = vweird.f32 %v2405
    %vm2412 = vmor %vm2410, %vm2411
    %v2413 = vsel %vm2412, %v2405, %v2409
    %v2414 = vand.u32 2147483647, %v2404
    %vm2415 = vcmp.eq.f32.partialorder %v2414, 8.507059e+37
    %v2416 = vand.u32 %v2404, 2147483648
    %v2417 = vor.u32 1.1754944e-38, %v2416
    %v2418 = vsel %vm2415, %v2417, %v2413
    %v2419 = vmul.f32 1.0, %v2418
    %v2420 = vtanh.pop %v2400
    %v2421 = vmul.f32 %v2419, %v2372
    %2423 = vrot.lane.b32.xlu0 %v2420, 64
    %v2424 = vpop.permute.xlu0 %2423
    %v2426 = vmul.f32 %v2419, %v2424
    %2428 = vrot.lane.b32.xlu0 %v2426, 32
    %v2429 = vpop.permute.xlu0 %2428
    %v2431 = vadd.f32 %v2421, %v2429
    %v2432 = vtanh.pop %v2431
    %2434 = vrot.lane.b32.xlu0 %v2432, 64
    %v2435 = vpop.permute.xlu0 %2434
    %v2437 = vmul.f32 %v2419, %v2435
    %v2438 = vpack.c.bf16 %v2437, %v2437
    %v2439 = vld [vmem:[%s5] sm:$0xf]
    %v2440 = vld [vmem:[%s5 + $0x4] sm:$0xf]
    %v2441 = vld [vmem:[%s5 + $0x8] sm:$0xf]
    %v2442 = vld [vmem:[%s5 + $0xc] sm:$0xf]
    %v2443 = vld [vmem:[%s6] sm:$0x1]
    %v2445 = vperm.slane %v2443, 0
    %2448 = vrot.lane.b32.xlu0 %v2438, 32
    %v2449 = vpop.permute.xlu0 %2448
    %v2454 = vunpack.c.l.b16 %v2439
    %v2455 = vunpack.c.l.b16 %v2440
    %v2456 = vunpack.c.l.b16 %v2441
    %v2457 = vunpack.c.l.b16 %v2442
    %v2458 = vpack.c.b16 %v2455, %v2454
    %v2459 = vpack.c.b16 %v2457, %v2456
    %v2463 = vsel %vm165, %v2449, 0
    %2465 = vmatpush.bf16.msra.mxu0 0
    %2466 = vmatpush.bf16.msra.mxu0 0
    %2467 = vmatpush.bf16.msra.mxu0 0
    %2468 = vmatpush.bf16.msra.mxu0 0
    %2469 = vmatpush.bf16.msra.mxu0 0
    %2470 = vmatpush.bf16.msra.mxu0 0
    %2471 = vmatpush.bf16.msra.mxu0 %v2459
    %2472 = vmatpush.bf16.msra.mxu0 %v2458
    %2473 = vmatmul.bf16.gmra.mxu0 %v2463
    %v2474 = vpop.f32.mrf.mxu0
    %v2475 = vadd.f32 %v2445, %v2474
    %v2476 = vpop.f32.mrf.mxu0
    %2477 = vdwg.mxu0
    %2478 = vst [vmem:[#allocation9] sm:$0xff] %v2475
    // Predicated region
    $region38: #{tpu_custom_call.1} parent=1 // pred_check
      _
    $region39: #{tpu_custom_call.1} parent=1 // pred_check_branch
      %2480 = sbr.rel (0) target = $region41
    $region40: #{tpu_custom_call.1} parent=1 // pred_region
      %2482 = vsyncadd [#allocation6], 0
      %s2484 = sshll.u32 [#allocation9], 4
      %s2485 = int_to_ptr.vmem [resolvable:$true] %s2484
      %s2486 = sshll.u32 %s7, 4
      %s2487 = int_to_ptr.hbm [resolvable:$true] %s2486
      %2489 = dma.vmem_to_hbm [thread:$0]  %s2485, 128, %s2487, [#allocation6]
    $region41: #{tpu_custom_call.1} parent=1 // pred_fallthru
      _
    // Predicated region
    $region42: #{tpu_custom_call.1} parent=1 // pred_check
      _
    $region43: #{tpu_custom_call.1} parent=1 // pred_check_branch
      %2491 = sbr.rel (0) target = $region45
    $region44: #{tpu_custom_call.1} parent=1 // pred_region
      %2493 = dma.done [#allocation6], 128
    $region45: #{tpu_custom_call.1} parent=1 // pred_fallthru
      _
    %2494 = vsyncpa [#allocation5], 1
    %2495 = vsyncpa [#allocation8], 1
    %2496 = vsyncpa [#allocation6], 1

</llo_original>
